<compile_context>
chip_gen: v5e
topology: v5e:2x2
jax: 0.10.0
libtpu: 0.0.40
codegen_flags: <defaults>
</compile_context>

<pallas_src>
import jax
import jax.numpy as jnp
from jax import lax
from jax.experimental import pallas as pl
from jax.experimental.pallas import tpu as pltpu


LANE = 128  # TPU lane width: pad the hidden dim to this for lane-dense tiles.


# --------------------------------------------------------------------------- #
# Pallas kernel: full GRU sequence in a single program (grid=(1,)).
# --------------------------------------------------------------------------- #
def _encoder_gru_kernel(ids_ref,   # (T,)      int32 scalar-prefetch (SMEM)
                        emb_ref,   # (V, Hp)   embedding table, VMEM-resident
                        h0_ref,    # (1, Hp)   initial hidden (padded), f32
                        wih_ref,   # (Hp, 3Hp) W_ih^T, gates [r|z|n], weight dtype
                        whh_ref,   # (Hp, 3Hp) W_hh^T, gates [r|z|n], weight dtype
                        bx_ref,    # (1, 3Hp)  [b_ih_r+b_hh_r | b_ih_z+b_hh_z | b_ih_n], f32
                        bhn_ref,   # (1, Hp)   b_hh_n, f32
                        out_ref):  # (T, Hp)   per-step hidden states, f32 (resident slab)
    T = out_ref.shape[0]
    Hp = h0_ref.shape[-1]
    wdt = wih_ref.dtype  # MXU operand dtype (bf16 by default, f32 for exact check)

    def step(t, h):
        tok = ids_ref[t]                          # SMEM scalar read
        x = emb_ref[pl.ds(tok, 1), :]             # (1, Hp) in-VMEM embedding gather

        # Two fused MXU matmuls (gates [r|z|n] concatenated), f32 accumulation.
        gx = jnp.dot(x, wih_ref[...], preferred_element_type=jnp.float32) + bx_ref[...]
        gh = jnp.dot(h.astype(wdt), whh_ref[...], preferred_element_type=jnp.float32)

        # PyTorch GRU semantics; static lane-aligned slices; elementwise in f32.
        r = jax.nn.sigmoid(gx[:, 0 * Hp:1 * Hp] + gh[:, 0 * Hp:1 * Hp])
        z = jax.nn.sigmoid(gx[:, 1 * Hp:2 * Hp] + gh[:, 1 * Hp:2 * Hp])
        n = jnp.tanh(gx[:, 2 * Hp:3 * Hp] + r * (gh[:, 2 * Hp:3 * Hp] + bhn_ref[...]))
        h_new = n + z * (h - n)                   # == (1 - z) * n + z * h

        out_ref[pl.ds(t, 1), :] = h_new.astype(out_ref.dtype)
        return h_new

    lax.fori_loop(0, T, step, h0_ref[...].astype(jnp.float32), unroll=True)


def _run_gru_sequence(token_ids, emb, h0p, wih, whh, bx, bhn):
    """One pallas_call, one program, for the whole sequence. token_ids: (T,) int32."""
    T = int(token_ids.shape[0])
    V, Hp = emb.shape
    wbytes = emb.dtype.itemsize
    cost = pl.CostEstimate(
        flops=int(T * 2 * (2 * Hp * 3 * Hp)),              # two (1,Hp)x(Hp,3Hp) per step
        transcendentals=int(T * 3 * Hp),                   # 2x sigmoid + 1x tanh per step
        bytes_accessed=int(V * Hp * wbytes                 # embedding table
                           + 2 * Hp * 3 * Hp * wbytes      # W_ih^T, W_hh^T
                           + (3 * Hp + Hp + Hp) * 4        # biases + h0
                           + T * Hp * 4 + T * 4),          # output slab + ids
    )
    grid_spec = pltpu.PrefetchScalarGridSpec(
        num_scalar_prefetch=1,
        grid=(1,),
        in_specs=[
            # all inputs: constant index_map -> DMA'd once, resident in VMEM
            pl.BlockSpec((V, Hp), lambda i, ids: (0, 0)),          # embedding table
            pl.BlockSpec((1, Hp), lambda i, ids: (0, 0)),          # h0
            pl.BlockSpec((Hp, 3 * Hp), lambda i, ids: (0, 0)),     # W_ih^T
            pl.BlockSpec((Hp, 3 * Hp), lambda i, ids: (0, 0)),     # W_hh^T
            pl.BlockSpec((1, 3 * Hp), lambda i, ids: (0, 0)),      # fused bias (gx)
            pl.BlockSpec((1, Hp), lambda i, ids: (0, 0)),          # b_hh_n
        ],
        out_specs=pl.BlockSpec((T, Hp), lambda i, ids: (0, 0)),    # resident output slab
    )
    return pl.pallas_call(
        _encoder_gru_kernel,
        out_shape=jax.ShapeDtypeStruct((T, Hp), jnp.float32),
        grid_spec=grid_spec,
        compiler_params=pltpu.CompilerParams(
            dimension_semantics=("arbitrary",),   # single serialized program
        ),
        cost_estimate=cost,
    )(token_ids, emb, h0p, wih, whh, bx, bhn)


# --------------------------------------------------------------------------- #
# Parameter construction / host-side packing.
# --------------------------------------------------------------------------- #
def init_encoder_params(key, input_size, hidden_size):
    """PyTorch-shaped parameters for nn.Embedding(V, H) + nn.GRU(H, H)."""
    k_emb, k_wih, k_whh, k_bih, k_bhh = jax.random.split(key, 5)
    bound = 1.0 / jnp.sqrt(hidden_size)
    return {
        "embedding": jax.random.normal(k_emb, (input_size, hidden_size), jnp.float32),
        # nn.GRU weight_ih_l0 / weight_hh_l0: (3H, H), gate order [r, z, n]
        "w_ih": jax.random.uniform(k_wih, (3 * hidden_size, hidden_size),
                                   jnp.float32, -bound, bound),
        "w_hh": jax.random.uniform(k_whh, (3 * hidden_size, hidden_size),
                                   jnp.float32, -bound, bound),
        "b_ih": jax.random.uniform(k_bih, (3 * hidden_size,), jnp.float32, -bound, bound),
        "b_hh": jax.random.uniform(k_bhh, (3 * hidden_size,), jnp.float32, -bound, bound),
    }


def pack_encoder_params(params, lane=LANE, weight_dtype=jnp.bfloat16):
    """Transpose, gate-concatenate, zero-pad and bias-fuse parameters.

    Lane-dense (Hp, 3Hp) weights, (V, Hp) embedding table, (1, 3Hp)/(1, Hp)
    biases. Padding is exact: padded rows/cols are zero so padded hidden lanes
    stay identically 0. weight_dtype=bfloat16 (default) gives true bf16 MXU
    operands; pass float32 for a bit-tight correctness path.
    """
    V, H = params["embedding"].shape
    Hp = max(lane, ((H + lane - 1) // lane) * lane)
    emb = jnp.zeros((V, Hp), jnp.float32).at[:, :H].set(params["embedding"])
    wih = jnp.zeros((Hp, 3 * Hp), jnp.float32)
    whh = jnp.zeros((Hp, 3 * Hp), jnp.float32)
    bx = jnp.zeros((1, 3 * Hp), jnp.float32)
    for g in range(3):  # PyTorch gate order [r, z, n]
        wih = wih.at[:H, g * Hp:g * Hp + H].set(params["w_ih"][g * H:(g + 1) * H, :].T)
        whh = whh.at[:H, g * Hp:g * Hp + H].set(params["w_hh"][g * H:(g + 1) * H, :].T)
        b = params["b_ih"][g * H:(g + 1) * H]
        if g < 2:  # fold b_hh into the r and z lanes; keep b_hh_n separate (r * (...))
            b = b + params["b_hh"][g * H:(g + 1) * H]
        bx = bx.at[0, g * Hp:g * Hp + H].set(b)
    bhn = jnp.zeros((1, Hp), jnp.float32).at[0, :H].set(params["b_hh"][2 * H:3 * H])
    return {
        "emb": emb.astype(weight_dtype),
        "w_ih_cat": wih.astype(weight_dtype),
        "w_hh_cat": whh.astype(weight_dtype),
        "b_x": bx,
        "b_hn": bhn,
        "H": H,
        "Hp": Hp,
    }


# --------------------------------------------------------------------------- #
# Public forward API (mirrors EncoderRNN.forward semantics).
# --------------------------------------------------------------------------- #
def encoder_rnn_sequence(packed, token_ids, hidden):
    """Encode a whole source sentence in one fused kernel call.

    token_ids : (T,) int32 word indices
    hidden    : (1, 1, H) initial hidden state
    returns   : (outputs (T, 1, H), hidden (1, 1, H)) — identical to calling
                EncoderRNN.forward once per token.
    """
    H, Hp = packed["H"], packed["Hp"]
    h0p = jnp.zeros((1, Hp), jnp.float32).at[:, :H].set(hidden.reshape(1, H))
    out_seq = _run_gru_sequence(
        token_ids.astype(jnp.int32), packed["emb"], h0p,
        packed["w_ih_cat"], packed["w_hh_cat"], packed["b_x"], packed["b_hn"],
    )
    outputs = out_seq[:, :H].reshape(-1, 1, H)        # strip lane padding -> (T, 1, H)
    hidden_out = out_seq[-1, :H].reshape(1, 1, H)     # final hidden = last output
    return outputs, hidden_out


def encoder_rnn_forward(packed, token_id, hidden):
    """Single-token EncoderRNN.forward: returns (output, hidden), both (1, 1, H)."""
    token_ids = jnp.reshape(jnp.asarray(token_id, jnp.int32), (1,))
    outputs, hidden_out = encoder_rnn_sequence(packed, token_ids, hidden)
    return outputs.reshape(1, 1, packed["H"]), hidden_out


# --------------------------------------------------------------------------- #
# Pure-JAX reference (PyTorch GRU semantics) for the correctness check.
# --------------------------------------------------------------------------- #
def gru_sequence_reference(params, token_ids, hidden):
    H = params["embedding"].shape[1]
    h = hidden.reshape(1, H)
    hi = jax.lax.Precision.HIGHEST
    outs = []
    for tok in token_ids:
        x = params["embedding"][tok].reshape(1, H)
        gx = jnp.dot(x, params["w_ih"].T, precision=hi) + params["b_ih"]
        gh = jnp.dot(h, params["w_hh"].T, precision=hi) + params["b_hh"]
        r = jax.nn.sigmoid(gx[:, 0:H] + gh[:, 0:H])
        z = jax.nn.sigmoid(gx[:, H:2 * H] + gh[:, H:2 * H])
        n = jnp.tanh(gx[:, 2 * H:] + r * gh[:, 2 * H:])
        h = (1.0 - z) * n + z * h
        outs.append(h)
    return jnp.stack(outs, axis=0), h.reshape(1, 1, H)


if __name__ == "__main__":
    input_size = 64     # source-language vocabulary size (small, synthetic)
    hidden_size = 32    # GRU hidden size == embedding dim
    seq_len = 8         # source sentence length for the fused sequence pass

    key = jax.random.PRNGKey(0)
    params = init_encoder_params(key, input_size, hidden_size)

    token_ids = jax.random.randint(jax.random.PRNGKey(1), (seq_len,), 0,
                                   input_size, dtype=jnp.int32)
    hidden0 = jnp.zeros((1, 1, hidden_size), jnp.float32)   # EncoderRNN.initHidden()

    ref_outs, ref_hT = gru_sequence_reference(params, [int(t) for t in token_ids], hidden0)

    # ---- f32 weight path: bit-tight check of the fused kernel math ---------- #
    packed_f32 = pack_encoder_params(params, weight_dtype=jnp.float32)
    outs_f32, hT_f32 = encoder_rnn_sequence(packed_f32, token_ids, hidden0)
    outs_f32 = jax.block_until_ready(outs_f32)
    hT_f32 = jax.block_until_ready(hT_f32)
    assert outs_f32.shape == (seq_len, 1, hidden_size)
    assert hT_f32.shape == (1, 1, hidden_size)
    assert jnp.allclose(outs_f32, ref_outs, atol=1e-4, rtol=1e-4), "f32 sequence mismatch"
    assert jnp.allclose(hT_f32, ref_hT, atol=1e-4, rtol=1e-4), "f32 final hidden mismatch"

    # Single-step call matching the module API exactly (f32 path).
    out1, hid1 = encoder_rnn_forward(packed_f32, token_ids[0], hidden0)
    out1 = jax.block_until_ready(out1)
    hid1 = jax.block_until_ready(hid1)
    assert out1.shape == (1, 1, hidden_size) and hid1.shape == (1, 1, hidden_size)
    assert jnp.allclose(out1, ref_outs[0:1], atol=1e-4, rtol=1e-4), "single-step mismatch"
    assert jnp.allclose(out1, hid1), "single-step output must equal new hidden"

    # ---- bf16 MXU-operand path (default / perf path on v5e, v6e, v7x) ------ #
    packed_bf16 = pack_encoder_params(params)   # weight_dtype=bfloat16 default
    outputs, hidden_T = encoder_rnn_sequence(packed_bf16, token_ids, hidden0)
    outputs = jax.block_until_ready(outputs)
    hidden_T = jax.block_until_ready(hidden_T)
    assert outputs.shape == (seq_len, 1, hidden_size)
    assert hidden_T.shape == (1, 1, hidden_size)
    assert jnp.allclose(outputs, ref_outs, atol=3e-2, rtol=3e-2), "bf16 sequence mismatch"
    assert jnp.allclose(hidden_T, ref_hT, atol=3e-2, rtol=3e-2), "bf16 final hidden mismatch"

    print("KERNEL_OK")
</pallas_src>

<mosaic_0001>
module attributes {stable_mosaic.version = 11 : i64} {
  func.func @_encoder_gru_kernel(%arg0: i32, %arg1: memref<8xi32, #tpu.memory_space<smem>>, %arg2: memref<64x128xf32, #tpu.memory_space<vmem>>, %arg3: memref<1x128xf32, #tpu.memory_space<vmem>>, %arg4: memref<128x384xf32, #tpu.memory_space<vmem>>, %arg5: memref<128x384xf32, #tpu.memory_space<vmem>>, %arg6: memref<1x384xf32, #tpu.memory_space<vmem>>, %arg7: memref<1x128xf32, #tpu.memory_space<vmem>>, %arg8: memref<8x128xf32, #tpu.memory_space<vmem>>) attributes {dimension_semantics = [#tpu.dimension_semantics<arbitrary>], iteration_bounds = array<i64: 1>, scalar_prefetch = 1 : i64, scratch_operands = 0 : i64, tpu.core_type = #tpu.core_type<tc>, window_params = [{pipeline_mode = #tpu.pipeline_mode<synchronous>, transform_indices = @transform_0, window_bounds = array<i64: 64, 128>}, {pipeline_mode = #tpu.pipeline_mode<synchronous>, transform_indices = @transform_1, window_bounds = array<i64: 1, 128>}, {pipeline_mode = #tpu.pipeline_mode<synchronous>, transform_indices = @transform_2, window_bounds = array<i64: 128, 384>}, {pipeline_mode = #tpu.pipeline_mode<synchronous>, transform_indices = @transform_3, window_bounds = array<i64: 128, 384>}, {pipeline_mode = #tpu.pipeline_mode<synchronous>, transform_indices = @transform_4, window_bounds = array<i64: 1, 384>}, {pipeline_mode = #tpu.pipeline_mode<synchronous>, transform_indices = @transform_5, window_bounds = array<i64: 1, 128>}, {pipeline_mode = #tpu.pipeline_mode<synchronous>, transform_indices = @transform_6, window_bounds = array<i64: 8, 128>}]} {
    %c0 = arith.constant 0 : index
    %c0_0 = arith.constant 0 : index
    %0 = vector.load %arg3[%c0, %c0_0] : memref<1x128xf32, #tpu.memory_space<vmem>>, vector<1x128xf32>
    %c0_i32 = arith.constant 0 : i32
    %1 = arith.index_cast %c0_i32 : i32 to index
    %2 = memref.load %arg1[%1] : memref<8xi32, #tpu.memory_space<smem>>
    %3 = arith.index_cast %2 : i32 to index
    %c0_1 = arith.constant 0 : index
    %4 = vector.load %arg2[%3, %c0_1] : memref<64x128xf32, #tpu.memory_space<vmem>>, vector<1x128xf32>
    %c0_2 = arith.constant 0 : index
    %c0_3 = arith.constant 0 : index
    %5 = vector.load %arg4[%c0_2, %c0_3] : memref<128x384xf32, #tpu.memory_space<vmem>>, vector<128x384xf32>
    %cst = arith.constant dense<0.000000e+00> : vector<1x384xf32>
    %6 = tpu.matmul %4, %5, %cst {dimension_numbers = #tpu.dot_dimension_numbers<[1], [0], [0], [1], [0, 0, 1, 1], [], []>} : vector<1x128xf32>, vector<128x384xf32>, vector<1x384xf32> -> vector<1x384xf32>
    %c0_4 = arith.constant 0 : index
    %c0_5 = arith.constant 0 : index
    %7 = vector.load %arg6[%c0_4, %c0_5] : memref<1x384xf32, #tpu.memory_space<vmem>>, vector<1x384xf32>
    %8 = arith.addf %6, %7 : vector<1x384xf32>
    %c0_6 = arith.constant 0 : index
    %c0_7 = arith.constant 0 : index
    %9 = vector.load %arg5[%c0_6, %c0_7] : memref<128x384xf32, #tpu.memory_space<vmem>>, vector<128x384xf32>
    %cst_8 = arith.constant dense<0.000000e+00> : vector<1x384xf32>
    %10 = tpu.matmul %0, %9, %cst_8 {dimension_numbers = #tpu.dot_dimension_numbers<[1], [0], [0], [1], [0, 0, 1, 1], [], []>} : vector<1x128xf32>, vector<128x384xf32>, vector<1x384xf32> -> vector<1x384xf32>
    %11 = vector.extract_strided_slice %8 {offsets = [0, 0], sizes = [1, 128], strides = [1, 1]} : vector<1x384xf32> to vector<1x128xf32>
    %12 = vector.extract_strided_slice %10 {offsets = [0, 0], sizes = [1, 128], strides = [1, 1]} : vector<1x384xf32> to vector<1x128xf32>
    %13 = arith.addf %11, %12 : vector<1x128xf32>
    %14 = arith.negf %13 : vector<1x128xf32>
    %15 = math.exp %14 : vector<1x128xf32>
    %cst_9 = arith.constant 1.000000e+00 : f32
    %16 = vector.broadcast %cst_9 : f32 to vector<1x128xf32>
    %17 = arith.addf %16, %15 : vector<1x128xf32>
    %18 = arith.divf %16, %17 : vector<1x128xf32>
    %19 = vector.extract_strided_slice %8 {offsets = [0, 128], sizes = [1, 128], strides = [1, 1]} : vector<1x384xf32> to vector<1x128xf32>
    %20 = vector.extract_strided_slice %10 {offsets = [0, 128], sizes = [1, 128], strides = [1, 1]} : vector<1x384xf32> to vector<1x128xf32>
    %21 = arith.addf %19, %20 : vector<1x128xf32>
    %22 = arith.negf %21 : vector<1x128xf32>
    %23 = math.exp %22 : vector<1x128xf32>
    %cst_10 = arith.constant 1.000000e+00 : f32
    %24 = vector.broadcast %cst_10 : f32 to vector<1x128xf32>
    %25 = arith.addf %24, %23 : vector<1x128xf32>
    %26 = arith.divf %24, %25 : vector<1x128xf32>
    %27 = vector.extract_strided_slice %8 {offsets = [0, 256], sizes = [1, 128], strides = [1, 1]} : vector<1x384xf32> to vector<1x128xf32>
    %28 = vector.extract_strided_slice %10 {offsets = [0, 256], sizes = [1, 128], strides = [1, 1]} : vector<1x384xf32> to vector<1x128xf32>
    %c0_11 = arith.constant 0 : index
    %c0_12 = arith.constant 0 : index
    %29 = vector.load %arg7[%c0_11, %c0_12] : memref<1x128xf32, #tpu.memory_space<vmem>>, vector<1x128xf32>
    %30 = arith.addf %28, %29 : vector<1x128xf32>
    %31 = arith.mulf %18, %30 : vector<1x128xf32>
    %32 = arith.addf %27, %31 : vector<1x128xf32>
    %33 = math.tanh %32 : vector<1x128xf32>
    %34 = arith.subf %0, %33 : vector<1x128xf32>
    %35 = arith.mulf %26, %34 : vector<1x128xf32>
    %36 = arith.addf %33, %35 : vector<1x128xf32>
    %37 = arith.index_cast %c0_i32 : i32 to index
    %c0_13 = arith.constant 0 : index
    %38 = vector.load %arg8[%37, %c0_13] : memref<8x128xf32, #tpu.memory_space<vmem>>, vector<1x128xf32>
    tpu.vector_store %arg8[%37, %c0_13], %36 {strides = array<i32>} : memref<8x128xf32, #tpu.memory_space<vmem>>, vector<1x128xf32>,
    %c1_i32 = arith.constant 1 : i32
    %39 = arith.index_cast %c1_i32 : i32 to index
    %40 = memref.load %arg1[%39] : memref<8xi32, #tpu.memory_space<smem>>
    %41 = arith.index_cast %40 : i32 to index
    %c0_14 = arith.constant 0 : index
    %42 = vector.load %arg2[%41, %c0_14] : memref<64x128xf32, #tpu.memory_space<vmem>>, vector<1x128xf32>
    %c0_15 = arith.constant 0 : index
    %c0_16 = arith.constant 0 : index
    %43 = vector.load %arg4[%c0_15, %c0_16] : memref<128x384xf32, #tpu.memory_space<vmem>>, vector<128x384xf32>
    %cst_17 = arith.constant dense<0.000000e+00> : vector<1x384xf32>
    %44 = tpu.matmul %42, %43, %cst_17 {dimension_numbers = #tpu.dot_dimension_numbers<[1], [0], [0], [1], [0, 0, 1, 1], [], []>} : vector<1x128xf32>, vector<128x384xf32>, vector<1x384xf32> -> vector<1x384xf32>
    %c0_18 = arith.constant 0 : index
    %c0_19 = arith.constant 0 : index
    %45 = vector.load %arg6[%c0_18, %c0_19] : memref<1x384xf32, #tpu.memory_space<vmem>>, vector<1x384xf32>
    %46 = arith.addf %44, %45 : vector<1x384xf32>
    %c0_20 = arith.constant 0 : index
    %c0_21 = arith.constant 0 : index
    %47 = vector.load %arg5[%c0_20, %c0_21] : memref<128x384xf32, #tpu.memory_space<vmem>>, vector<128x384xf32>
    %cst_22 = arith.constant dense<0.000000e+00> : vector<1x384xf32>
    %48 = tpu.matmul %36, %47, %cst_22 {dimension_numbers = #tpu.dot_dimension_numbers<[1], [0], [0], [1], [0, 0, 1, 1], [], []>} : vector<1x128xf32>, vector<128x384xf32>, vector<1x384xf32> -> vector<1x384xf32>
    %49 = vector.extract_strided_slice %46 {offsets = [0, 0], sizes = [1, 128], strides = [1, 1]} : vector<1x384xf32> to vector<1x128xf32>
    %50 = vector.extract_strided_slice %48 {offsets = [0, 0], sizes = [1, 128], strides = [1, 1]} : vector<1x384xf32> to vector<1x128xf32>
    %51 = arith.addf %49, %50 : vector<1x128xf32>
    %52 = arith.negf %51 : vector<1x128xf32>
    %53 = math.exp %52 : vector<1x128xf32>
    %cst_23 = arith.constant 1.000000e+00 : f32
    %54 = vector.broadcast %cst_23 : f32 to vector<1x128xf32>
    %55 = arith.addf %54, %53 : vector<1x128xf32>
    %56 = arith.divf %54, %55 : vector<1x128xf32>
    %57 = vector.extract_strided_slice %46 {offsets = [0, 128], sizes = [1, 128], strides = [1, 1]} : vector<1x384xf32> to vector<1x128xf32>
    %58 = vector.extract_strided_slice %48 {offsets = [0, 128], sizes = [1, 128], strides = [1, 1]} : vector<1x384xf32> to vector<1x128xf32>
    %59 = arith.addf %57, %58 : vector<1x128xf32>
    %60 = arith.negf %59 : vector<1x128xf32>
    %61 = math.exp %60 : vector<1x128xf32>
    %cst_24 = arith.constant 1.000000e+00 : f32
    %62 = vector.broadcast %cst_24 : f32 to vector<1x128xf32>
    %63 = arith.addf %62, %61 : vector<1x128xf32>
    %64 = arith.divf %62, %63 : vector<1x128xf32>
    %65 = vector.extract_strided_slice %46 {offsets = [0, 256], sizes = [1, 128], strides = [1, 1]} : vector<1x384xf32> to vector<1x128xf32>
    %66 = vector.extract_strided_slice %48 {offsets = [0, 256], sizes = [1, 128], strides = [1, 1]} : vector<1x384xf32> to vector<1x128xf32>
    %c0_25 = arith.constant 0 : index
    %c0_26 = arith.constant 0 : index
    %67 = vector.load %arg7[%c0_25, %c0_26] : memref<1x128xf32, #tpu.memory_space<vmem>>, vector<1x128xf32>
    %68 = arith.addf %66, %67 : vector<1x128xf32>
    %69 = arith.mulf %56, %68 : vector<1x128xf32>
    %70 = arith.addf %65, %69 : vector<1x128xf32>
    %71 = math.tanh %70 : vector<1x128xf32>
    %72 = arith.subf %36, %71 : vector<1x128xf32>
    %73 = arith.mulf %64, %72 : vector<1x128xf32>
    %74 = arith.addf %71, %73 : vector<1x128xf32>
    %75 = arith.index_cast %c1_i32 : i32 to index
    %c0_27 = arith.constant 0 : index
    %76 = vector.load %arg8[%75, %c0_27] : memref<8x128xf32, #tpu.memory_space<vmem>>, vector<1x128xf32>
    tpu.vector_store %arg8[%75, %c0_27], %74 {strides = array<i32>} : memref<8x128xf32, #tpu.memory_space<vmem>>, vector<1x128xf32>,
    %c2_i32 = arith.constant 2 : i32
    %77 = arith.index_cast %c2_i32 : i32 to index
    %78 = memref.load %arg1[%77] : memref<8xi32, #tpu.memory_space<smem>>
    %79 = arith.index_cast %78 : i32 to index
    %c0_28 = arith.constant 0 : index
    %80 = vector.load %arg2[%79, %c0_28] : memref<64x128xf32, #tpu.memory_space<vmem>>, vector<1x128xf32>
    %c0_29 = arith.constant 0 : index
    %c0_30 = arith.constant 0 : index
    %81 = vector.load %arg4[%c0_29, %c0_30] : memref<128x384xf32, #tpu.memory_space<vmem>>, vector<128x384xf32>
    %cst_31 = arith.constant dense<0.000000e+00> : vector<1x384xf32>
    %82 = tpu.matmul %80, %81, %cst_31 {dimension_numbers = #tpu.dot_dimension_numbers<[1], [0], [0], [1], [0, 0, 1, 1], [], []>} : vector<1x128xf32>, vector<128x384xf32>, vector<1x384xf32> -> vector<1x384xf32>
    %c0_32 = arith.constant 0 : index
    %c0_33 = arith.constant 0 : index
    %83 = vector.load %arg6[%c0_32, %c0_33] : memref<1x384xf32, #tpu.memory_space<vmem>>, vector<1x384xf32>
    %84 = arith.addf %82, %83 : vector<1x384xf32>
    %c0_34 = arith.constant 0 : index
    %c0_35 = arith.constant 0 : index
    %85 = vector.load %arg5[%c0_34, %c0_35] : memref<128x384xf32, #tpu.memory_space<vmem>>, vector<128x384xf32>
    %cst_36 = arith.constant dense<0.000000e+00> : vector<1x384xf32>
    %86 = tpu.matmul %74, %85, %cst_36 {dimension_numbers = #tpu.dot_dimension_numbers<[1], [0], [0], [1], [0, 0, 1, 1], [], []>} : vector<1x128xf32>, vector<128x384xf32>, vector<1x384xf32> -> vector<1x384xf32>
    %87 = vector.extract_strided_slice %84 {offsets = [0, 0], sizes = [1, 128], strides = [1, 1]} : vector<1x384xf32> to vector<1x128xf32>
    %88 = vector.extract_strided_slice %86 {offsets = [0, 0], sizes = [1, 128], strides = [1, 1]} : vector<1x384xf32> to vector<1x128xf32>
    %89 = arith.addf %87, %88 : vector<1x128xf32>
    %90 = arith.negf %89 : vector<1x128xf32>
    %91 = math.exp %90 : vector<1x128xf32>
    %cst_37 = arith.constant 1.000000e+00 : f32
    %92 = vector.broadcast %cst_37 : f32 to vector<1x128xf32>
    %93 = arith.addf %92, %91 : vector<1x128xf32>
    %94 = arith.divf %92, %93 : vector<1x128xf32>
    %95 = vector.extract_strided_slice %84 {offsets = [0, 128], sizes = [1, 128], strides = [1, 1]} : vector<1x384xf32> to vector<1x128xf32>
    %96 = vector.extract_strided_slice %86 {offsets = [0, 128], sizes = [1, 128], strides = [1, 1]} : vector<1x384xf32> to vector<1x128xf32>
    %97 = arith.addf %95, %96 : vector<1x128xf32>
    %98 = arith.negf %97 : vector<1x128xf32>
    %99 = math.exp %98 : vector<1x128xf32>
    %cst_38 = arith.constant 1.000000e+00 : f32
    %100 = vector.broadcast %cst_38 : f32 to vector<1x128xf32>
    %101 = arith.addf %100, %99 : vector<1x128xf32>
    %102 = arith.divf %100, %101 : vector<1x128xf32>
    %103 = vector.extract_strided_slice %84 {offsets = [0, 256], sizes = [1, 128], strides = [1, 1]} : vector<1x384xf32> to vector<1x128xf32>
    %104 = vector.extract_strided_slice %86 {offsets = [0, 256], sizes = [1, 128], strides = [1, 1]} : vector<1x384xf32> to vector<1x128xf32>
    %c0_39 = arith.constant 0 : index
    %c0_40 = arith.constant 0 : index
    %105 = vector.load %arg7[%c0_39, %c0_40] : memref<1x128xf32, #tpu.memory_space<vmem>>, vector<1x128xf32>
    %106 = arith.addf %104, %105 : vector<1x128xf32>
    %107 = arith.mulf %94, %106 : vector<1x128xf32>
    %108 = arith.addf %103, %107 : vector<1x128xf32>
    %109 = math.tanh %108 : vector<1x128xf32>
    %110 = arith.subf %74, %109 : vector<1x128xf32>
    %111 = arith.mulf %102, %110 : vector<1x128xf32>
    %112 = arith.addf %109, %111 : vector<1x128xf32>
    %113 = arith.index_cast %c2_i32 : i32 to index
    %c0_41 = arith.constant 0 : index
    %114 = vector.load %arg8[%113, %c0_41] : memref<8x128xf32, #tpu.memory_space<vmem>>, vector<1x128xf32>
    tpu.vector_store %arg8[%113, %c0_41], %112 {strides = array<i32>} : memref<8x128xf32, #tpu.memory_space<vmem>>, vector<1x128xf32>,
    %c3_i32 = arith.constant 3 : i32
    %115 = arith.index_cast %c3_i32 : i32 to index
    %116 = memref.load %arg1[%115] : memref<8xi32, #tpu.memory_space<smem>>
    %117 = arith.index_cast %116 : i32 to index
    %c0_42 = arith.constant 0 : index
    %118 = vector.load %arg2[%117, %c0_42] : memref<64x128xf32, #tpu.memory_space<vmem>>, vector<1x128xf32>
    %c0_43 = arith.constant 0 : index
    %c0_44 = arith.constant 0 : index
    %119 = vector.load %arg4[%c0_43, %c0_44] : memref<128x384xf32, #tpu.memory_space<vmem>>, vector<128x384xf32>
    %cst_45 = arith.constant dense<0.000000e+00> : vector<1x384xf32>
    %120 = tpu.matmul %118, %119, %cst_45 {dimension_numbers = #tpu.dot_dimension_numbers<[1], [0], [0], [1], [0, 0, 1, 1], [], []>} : vector<1x128xf32>, vector<128x384xf32>, vector<1x384xf32> -> vector<1x384xf32>
    %c0_46 = arith.constant 0 : index
    %c0_47 = arith.constant 0 : index
    %121 = vector.load %arg6[%c0_46, %c0_47] : memref<1x384xf32, #tpu.memory_space<vmem>>, vector<1x384xf32>
    %122 = arith.addf %120, %121 : vector<1x384xf32>
    %c0_48 = arith.constant 0 : index
    %c0_49 = arith.constant 0 : index
    %123 = vector.load %arg5[%c0_48, %c0_49] : memref<128x384xf32, #tpu.memory_space<vmem>>, vector<128x384xf32>
    %cst_50 = arith.constant dense<0.000000e+00> : vector<1x384xf32>
    %124 = tpu.matmul %112, %123, %cst_50 {dimension_numbers = #tpu.dot_dimension_numbers<[1], [0], [0], [1], [0, 0, 1, 1], [], []>} : vector<1x128xf32>, vector<128x384xf32>, vector<1x384xf32> -> vector<1x384xf32>
    %125 = vector.extract_strided_slice %122 {offsets = [0, 0], sizes = [1, 128], strides = [1, 1]} : vector<1x384xf32> to vector<1x128xf32>
    %126 = vector.extract_strided_slice %124 {offsets = [0, 0], sizes = [1, 128], strides = [1, 1]} : vector<1x384xf32> to vector<1x128xf32>
    %127 = arith.addf %125, %126 : vector<1x128xf32>
    %128 = arith.negf %127 : vector<1x128xf32>
    %129 = math.exp %128 : vector<1x128xf32>
    %cst_51 = arith.constant 1.000000e+00 : f32
    %130 = vector.broadcast %cst_51 : f32 to vector<1x128xf32>
    %131 = arith.addf %130, %129 : vector<1x128xf32>
    %132 = arith.divf %130, %131 : vector<1x128xf32>
    %133 = vector.extract_strided_slice %122 {offsets = [0, 128], sizes = [1, 128], strides = [1, 1]} : vector<1x384xf32> to vector<1x128xf32>
    %134 = vector.extract_strided_slice %124 {offsets = [0, 128], sizes = [1, 128], strides = [1, 1]} : vector<1x384xf32> to vector<1x128xf32>
    %135 = arith.addf %133, %134 : vector<1x128xf32>
    %136 = arith.negf %135 : vector<1x128xf32>
    %137 = math.exp %136 : vector<1x128xf32>
    %cst_52 = arith.constant 1.000000e+00 : f32
    %138 = vector.broadcast %cst_52 : f32 to vector<1x128xf32>
    %139 = arith.addf %138, %137 : vector<1x128xf32>
    %140 = arith.divf %138, %139 : vector<1x128xf32>
    %141 = vector.extract_strided_slice %122 {offsets = [0, 256], sizes = [1, 128], strides = [1, 1]} : vector<1x384xf32> to vector<1x128xf32>
    %142 = vector.extract_strided_slice %124 {offsets = [0, 256], sizes = [1, 128], strides = [1, 1]} : vector<1x384xf32> to vector<1x128xf32>
    %c0_53 = arith.constant 0 : index
    %c0_54 = arith.constant 0 : index
    %143 = vector.load %arg7[%c0_53, %c0_54] : memref<1x128xf32, #tpu.memory_space<vmem>>, vector<1x128xf32>
    %144 = arith.addf %142, %143 : vector<1x128xf32>
    %145 = arith.mulf %132, %144 : vector<1x128xf32>
    %146 = arith.addf %141, %145 : vector<1x128xf32>
    %147 = math.tanh %146 : vector<1x128xf32>
    %148 = arith.subf %112, %147 : vector<1x128xf32>
    %149 = arith.mulf %140, %148 : vector<1x128xf32>
    %150 = arith.addf %147, %149 : vector<1x128xf32>
    %151 = arith.index_cast %c3_i32 : i32 to index
    %c0_55 = arith.constant 0 : index
    %152 = vector.load %arg8[%151, %c0_55] : memref<8x128xf32, #tpu.memory_space<vmem>>, vector<1x128xf32>
    tpu.vector_store %arg8[%151, %c0_55], %150 {strides = array<i32>} : memref<8x128xf32, #tpu.memory_space<vmem>>, vector<1x128xf32>,
    %c4_i32 = arith.constant 4 : i32
    %153 = arith.index_cast %c4_i32 : i32 to index
    %154 = memref.load %arg1[%153] : memref<8xi32, #tpu.memory_space<smem>>
    %155 = arith.index_cast %154 : i32 to index
    %c0_56 = arith.constant 0 : index
    %156 = vector.load %arg2[%155, %c0_56] : memref<64x128xf32, #tpu.memory_space<vmem>>, vector<1x128xf32>
    %c0_57 = arith.constant 0 : index
    %c0_58 = arith.constant 0 : index
    %157 = vector.load %arg4[%c0_57, %c0_58] : memref<128x384xf32, #tpu.memory_space<vmem>>, vector<128x384xf32>
    %cst_59 = arith.constant dense<0.000000e+00> : vector<1x384xf32>
    %158 = tpu.matmul %156, %157, %cst_59 {dimension_numbers = #tpu.dot_dimension_numbers<[1], [0], [0], [1], [0, 0, 1, 1], [], []>} : vector<1x128xf32>, vector<128x384xf32>, vector<1x384xf32> -> vector<1x384xf32>
    %c0_60 = arith.constant 0 : index
    %c0_61 = arith.constant 0 : index
    %159 = vector.load %arg6[%c0_60, %c0_61] : memref<1x384xf32, #tpu.memory_space<vmem>>, vector<1x384xf32>
    %160 = arith.addf %158, %159 : vector<1x384xf32>
    %c0_62 = arith.constant 0 : index
    %c0_63 = arith.constant 0 : index
    %161 = vector.load %arg5[%c0_62, %c0_63] : memref<128x384xf32, #tpu.memory_space<vmem>>, vector<128x384xf32>
    %cst_64 = arith.constant dense<0.000000e+00> : vector<1x384xf32>
    %162 = tpu.matmul %150, %161, %cst_64 {dimension_numbers = #tpu.dot_dimension_numbers<[1], [0], [0], [1], [0, 0, 1, 1], [], []>} : vector<1x128xf32>, vector<128x384xf32>, vector<1x384xf32> -> vector<1x384xf32>
    %163 = vector.extract_strided_slice %160 {offsets = [0, 0], sizes = [1, 128], strides = [1, 1]} : vector<1x384xf32> to vector<1x128xf32>
    %164 = vector.extract_strided_slice %162 {offsets = [0, 0], sizes = [1, 128], strides = [1, 1]} : vector<1x384xf32> to vector<1x128xf32>
    %165 = arith.addf %163, %164 : vector<1x128xf32>
    %166 = arith.negf %165 : vector<1x128xf32>
    %167 = math.exp %166 : vector<1x128xf32>
    %cst_65 = arith.constant 1.000000e+00 : f32
    %168 = vector.broadcast %cst_65 : f32 to vector<1x128xf32>
    %169 = arith.addf %168, %167 : vector<1x128xf32>
    %170 = arith.divf %168, %169 : vector<1x128xf32>
    %171 = vector.extract_strided_slice %160 {offsets = [0, 128], sizes = [1, 128], strides = [1, 1]} : vector<1x384xf32> to vector<1x128xf32>
    %172 = vector.extract_strided_slice %162 {offsets = [0, 128], sizes = [1, 128], strides = [1, 1]} : vector<1x384xf32> to vector<1x128xf32>
    %173 = arith.addf %171, %172 : vector<1x128xf32>
    %174 = arith.negf %173 : vector<1x128xf32>
    %175 = math.exp %174 : vector<1x128xf32>
    %cst_66 = arith.constant 1.000000e+00 : f32
    %176 = vector.broadcast %cst_66 : f32 to vector<1x128xf32>
    %177 = arith.addf %176, %175 : vector<1x128xf32>
    %178 = arith.divf %176, %177 : vector<1x128xf32>
    %179 = vector.extract_strided_slice %160 {offsets = [0, 256], sizes = [1, 128], strides = [1, 1]} : vector<1x384xf32> to vector<1x128xf32>
    %180 = vector.extract_strided_slice %162 {offsets = [0, 256], sizes = [1, 128], strides = [1, 1]} : vector<1x384xf32> to vector<1x128xf32>
    %c0_67 = arith.constant 0 : index
    %c0_68 = arith.constant 0 : index
    %181 = vector.load %arg7[%c0_67, %c0_68] : memref<1x128xf32, #tpu.memory_space<vmem>>, vector<1x128xf32>
    %182 = arith.addf %180, %181 : vector<1x128xf32>
    %183 = arith.mulf %170, %182 : vector<1x128xf32>
    %184 = arith.addf %179, %183 : vector<1x128xf32>
    %185 = math.tanh %184 : vector<1x128xf32>
    %186 = arith.subf %150, %185 : vector<1x128xf32>
    %187 = arith.mulf %178, %186 : vector<1x128xf32>
    %188 = arith.addf %185, %187 : vector<1x128xf32>
    %189 = arith.index_cast %c4_i32 : i32 to index
    %c0_69 = arith.constant 0 : index
    %190 = vector.load %arg8[%189, %c0_69] : memref<8x128xf32, #tpu.memory_space<vmem>>, vector<1x128xf32>
    tpu.vector_store %arg8[%189, %c0_69], %188 {strides = array<i32>} : memref<8x128xf32, #tpu.memory_space<vmem>>, vector<1x128xf32>,
    %c5_i32 = arith.constant 5 : i32
    %191 = arith.index_cast %c5_i32 : i32 to index
    %192 = memref.load %arg1[%191] : memref<8xi32, #tpu.memory_space<smem>>
    %193 = arith.index_cast %192 : i32 to index
    %c0_70 = arith.constant 0 : index
    %194 = vector.load %arg2[%193, %c0_70] : memref<64x128xf32, #tpu.memory_space<vmem>>, vector<1x128xf32>
    %c0_71 = arith.constant 0 : index
    %c0_72 = arith.constant 0 : index
    %195 = vector.load %arg4[%c0_71, %c0_72] : memref<128x384xf32, #tpu.memory_space<vmem>>, vector<128x384xf32>
    %cst_73 = arith.constant dense<0.000000e+00> : vector<1x384xf32>
    %196 = tpu.matmul %194, %195, %cst_73 {dimension_numbers = #tpu.dot_dimension_numbers<[1], [0], [0], [1], [0, 0, 1, 1], [], []>} : vector<1x128xf32>, vector<128x384xf32>, vector<1x384xf32> -> vector<1x384xf32>
    %c0_74 = arith.constant 0 : index
    %c0_75 = arith.constant 0 : index
    %197 = vector.load %arg6[%c0_74, %c0_75] : memref<1x384xf32, #tpu.memory_space<vmem>>, vector<1x384xf32>
    %198 = arith.addf %196, %197 : vector<1x384xf32>
    %c0_76 = arith.constant 0 : index
    %c0_77 = arith.constant 0 : index
    %199 = vector.load %arg5[%c0_76, %c0_77] : memref<128x384xf32, #tpu.memory_space<vmem>>, vector<128x384xf32>
    %cst_78 = arith.constant dense<0.000000e+00> : vector<1x384xf32>
    %200 = tpu.matmul %188, %199, %cst_78 {dimension_numbers = #tpu.dot_dimension_numbers<[1], [0], [0], [1], [0, 0, 1, 1], [], []>} : vector<1x128xf32>, vector<128x384xf32>, vector<1x384xf32> -> vector<1x384xf32>
    %201 = vector.extract_strided_slice %198 {offsets = [0, 0], sizes = [1, 128], strides = [1, 1]} : vector<1x384xf32> to vector<1x128xf32>
    %202 = vector.extract_strided_slice %200 {offsets = [0, 0], sizes = [1, 128], strides = [1, 1]} : vector<1x384xf32> to vector<1x128xf32>
    %203 = arith.addf %201, %202 : vector<1x128xf32>
    %204 = arith.negf %203 : vector<1x128xf32>
    %205 = math.exp %204 : vector<1x128xf32>
    %cst_79 = arith.constant 1.000000e+00 : f32
    %206 = vector.broadcast %cst_79 : f32 to vector<1x128xf32>
    %207 = arith.addf %206, %205 : vector<1x128xf32>
    %208 = arith.divf %206, %207 : vector<1x128xf32>
    %209 = vector.extract_strided_slice %198 {offsets = [0, 128], sizes = [1, 128], strides = [1, 1]} : vector<1x384xf32> to vector<1x128xf32>
    %210 = vector.extract_strided_slice %200 {offsets = [0, 128], sizes = [1, 128], strides = [1, 1]} : vector<1x384xf32> to vector<1x128xf32>
    %211 = arith.addf %209, %210 : vector<1x128xf32>
    %212 = arith.negf %211 : vector<1x128xf32>
    %213 = math.exp %212 : vector<1x128xf32>
    %cst_80 = arith.constant 1.000000e+00 : f32
    %214 = vector.broadcast %cst_80 : f32 to vector<1x128xf32>
    %215 = arith.addf %214, %213 : vector<1x128xf32>
    %216 = arith.divf %214, %215 : vector<1x128xf32>
    %217 = vector.extract_strided_slice %198 {offsets = [0, 256], sizes = [1, 128], strides = [1, 1]} : vector<1x384xf32> to vector<1x128xf32>
    %218 = vector.extract_strided_slice %200 {offsets = [0, 256], sizes = [1, 128], strides = [1, 1]} : vector<1x384xf32> to vector<1x128xf32>
    %c0_81 = arith.constant 0 : index
    %c0_82 = arith.constant 0 : index
    %219 = vector.load %arg7[%c0_81, %c0_82] : memref<1x128xf32, #tpu.memory_space<vmem>>, vector<1x128xf32>
    %220 = arith.addf %218, %219 : vector<1x128xf32>
    %221 = arith.mulf %208, %220 : vector<1x128xf32>
    %222 = arith.addf %217, %221 : vector<1x128xf32>
    %223 = math.tanh %222 : vector<1x128xf32>
    %224 = arith.subf %188, %223 : vector<1x128xf32>
    %225 = arith.mulf %216, %224 : vector<1x128xf32>
    %226 = arith.addf %223, %225 : vector<1x128xf32>
    %227 = arith.index_cast %c5_i32 : i32 to index
    %c0_83 = arith.constant 0 : index
    %228 = vector.load %arg8[%227, %c0_83] : memref<8x128xf32, #tpu.memory_space<vmem>>, vector<1x128xf32>
    tpu.vector_store %arg8[%227, %c0_83], %226 {strides = array<i32>} : memref<8x128xf32, #tpu.memory_space<vmem>>, vector<1x128xf32>,
    %c6_i32 = arith.constant 6 : i32
    %229 = arith.index_cast %c6_i32 : i32 to index
    %230 = memref.load %arg1[%229] : memref<8xi32, #tpu.memory_space<smem>>
    %231 = arith.index_cast %230 : i32 to index
    %c0_84 = arith.constant 0 : index
    %232 = vector.load %arg2[%231, %c0_84] : memref<64x128xf32, #tpu.memory_space<vmem>>, vector<1x128xf32>
    %c0_85 = arith.constant 0 : index
    %c0_86 = arith.constant 0 : index
    %233 = vector.load %arg4[%c0_85, %c0_86] : memref<128x384xf32, #tpu.memory_space<vmem>>, vector<128x384xf32>
    %cst_87 = arith.constant dense<0.000000e+00> : vector<1x384xf32>
    %234 = tpu.matmul %232, %233, %cst_87 {dimension_numbers = #tpu.dot_dimension_numbers<[1], [0], [0], [1], [0, 0, 1, 1], [], []>} : vector<1x128xf32>, vector<128x384xf32>, vector<1x384xf32> -> vector<1x384xf32>
    %c0_88 = arith.constant 0 : index
    %c0_89 = arith.constant 0 : index
    %235 = vector.load %arg6[%c0_88, %c0_89] : memref<1x384xf32, #tpu.memory_space<vmem>>, vector<1x384xf32>
    %236 = arith.addf %234, %235 : vector<1x384xf32>
    %c0_90 = arith.constant 0 : index
    %c0_91 = arith.constant 0 : index
    %237 = vector.load %arg5[%c0_90, %c0_91] : memref<128x384xf32, #tpu.memory_space<vmem>>, vector<128x384xf32>
    %cst_92 = arith.constant dense<0.000000e+00> : vector<1x384xf32>
    %238 = tpu.matmul %226, %237, %cst_92 {dimension_numbers = #tpu.dot_dimension_numbers<[1], [0], [0], [1], [0, 0, 1, 1], [], []>} : vector<1x128xf32>, vector<128x384xf32>, vector<1x384xf32> -> vector<1x384xf32>
    %239 = vector.extract_strided_slice %236 {offsets = [0, 0], sizes = [1, 128], strides = [1, 1]} : vector<1x384xf32> to vector<1x128xf32>
    %240 = vector.extract_strided_slice %238 {offsets = [0, 0], sizes = [1, 128], strides = [1, 1]} : vector<1x384xf32> to vector<1x128xf32>
    %241 = arith.addf %239, %240 : vector<1x128xf32>
    %242 = arith.negf %241 : vector<1x128xf32>
    %243 = math.exp %242 : vector<1x128xf32>
    %cst_93 = arith.constant 1.000000e+00 : f32
    %244 = vector.broadcast %cst_93 : f32 to vector<1x128xf32>
    %245 = arith.addf %244, %243 : vector<1x128xf32>
    %246 = arith.divf %244, %245 : vector<1x128xf32>
    %247 = vector.extract_strided_slice %236 {offsets = [0, 128], sizes = [1, 128], strides = [1, 1]} : vector<1x384xf32> to vector<1x128xf32>
    %248 = vector.extract_strided_slice %238 {offsets = [0, 128], sizes = [1, 128], strides = [1, 1]} : vector<1x384xf32> to vector<1x128xf32>
    %249 = arith.addf %247, %248 : vector<1x128xf32>
    %250 = arith.negf %249 : vector<1x128xf32>
    %251 = math.exp %250 : vector<1x128xf32>
    %cst_94 = arith.constant 1.000000e+00 : f32
    %252 = vector.broadcast %cst_94 : f32 to vector<1x128xf32>
    %253 = arith.addf %252, %251 : vector<1x128xf32>
    %254 = arith.divf %252, %253 : vector<1x128xf32>
    %255 = vector.extract_strided_slice %236 {offsets = [0, 256], sizes = [1, 128], strides = [1, 1]} : vector<1x384xf32> to vector<1x128xf32>
    %256 = vector.extract_strided_slice %238 {offsets = [0, 256], sizes = [1, 128], strides = [1, 1]} : vector<1x384xf32> to vector<1x128xf32>
    %c0_95 = arith.constant 0 : index
    %c0_96 = arith.constant 0 : index
    %257 = vector.load %arg7[%c0_95, %c0_96] : memref<1x128xf32, #tpu.memory_space<vmem>>, vector<1x128xf32>
    %258 = arith.addf %256, %257 : vector<1x128xf32>
    %259 = arith.mulf %246, %258 : vector<1x128xf32>
    %260 = arith.addf %255, %259 : vector<1x128xf32>
    %261 = math.tanh %260 : vector<1x128xf32>
    %262 = arith.subf %226, %261 : vector<1x128xf32>
    %263 = arith.mulf %254, %262 : vector<1x128xf32>
    %264 = arith.addf %261, %263 : vector<1x128xf32>
    %265 = arith.index_cast %c6_i32 : i32 to index
    %c0_97 = arith.constant 0 : index
    %266 = vector.load %arg8[%265, %c0_97] : memref<8x128xf32, #tpu.memory_space<vmem>>, vector<1x128xf32>
    tpu.vector_store %arg8[%265, %c0_97], %264 {strides = array<i32>} : memref<8x128xf32, #tpu.memory_space<vmem>>, vector<1x128xf32>,
    %c7_i32 = arith.constant 7 : i32
    %267 = arith.index_cast %c7_i32 : i32 to index
    %268 = memref.load %arg1[%267] : memref<8xi32, #tpu.memory_space<smem>>
    %269 = arith.index_cast %268 : i32 to index
    %c0_98 = arith.constant 0 : index
    %270 = vector.load %arg2[%269, %c0_98] : memref<64x128xf32, #tpu.memory_space<vmem>>, vector<1x128xf32>
    %c0_99 = arith.constant 0 : index
    %c0_100 = arith.constant 0 : index
    %271 = vector.load %arg4[%c0_99, %c0_100] : memref<128x384xf32, #tpu.memory_space<vmem>>, vector<128x384xf32>
    %cst_101 = arith.constant dense<0.000000e+00> : vector<1x384xf32>
    %272 = tpu.matmul %270, %271, %cst_101 {dimension_numbers = #tpu.dot_dimension_numbers<[1], [0], [0], [1], [0, 0, 1, 1], [], []>} : vector<1x128xf32>, vector<128x384xf32>, vector<1x384xf32> -> vector<1x384xf32>
    %c0_102 = arith.constant 0 : index
    %c0_103 = arith.constant 0 : index
    %273 = vector.load %arg6[%c0_102, %c0_103] : memref<1x384xf32, #tpu.memory_space<vmem>>, vector<1x384xf32>
    %274 = arith.addf %272, %273 : vector<1x384xf32>
    %c0_104 = arith.constant 0 : index
    %c0_105 = arith.constant 0 : index
    %275 = vector.load %arg5[%c0_104, %c0_105] : memref<128x384xf32, #tpu.memory_space<vmem>>, vector<128x384xf32>
    %cst_106 = arith.constant dense<0.000000e+00> : vector<1x384xf32>
    %276 = tpu.matmul %264, %275, %cst_106 {dimension_numbers = #tpu.dot_dimension_numbers<[1], [0], [0], [1], [0, 0, 1, 1], [], []>} : vector<1x128xf32>, vector<128x384xf32>, vector<1x384xf32> -> vector<1x384xf32>
    %277 = vector.extract_strided_slice %274 {offsets = [0, 0], sizes = [1, 128], strides = [1, 1]} : vector<1x384xf32> to vector<1x128xf32>
    %278 = vector.extract_strided_slice %276 {offsets = [0, 0], sizes = [1, 128], strides = [1, 1]} : vector<1x384xf32> to vector<1x128xf32>
    %279 = arith.addf %277, %278 : vector<1x128xf32>
    %280 = arith.negf %279 : vector<1x128xf32>
    %281 = math.exp %280 : vector<1x128xf32>
    %cst_107 = arith.constant 1.000000e+00 : f32
    %282 = vector.broadcast %cst_107 : f32 to vector<1x128xf32>
    %283 = arith.addf %282, %281 : vector<1x128xf32>
    %284 = arith.divf %282, %283 : vector<1x128xf32>
    %285 = vector.extract_strided_slice %274 {offsets = [0, 128], sizes = [1, 128], strides = [1, 1]} : vector<1x384xf32> to vector<1x128xf32>
    %286 = vector.extract_strided_slice %276 {offsets = [0, 128], sizes = [1, 128], strides = [1, 1]} : vector<1x384xf32> to vector<1x128xf32>
    %287 = arith.addf %285, %286 : vector<1x128xf32>
    %288 = arith.negf %287 : vector<1x128xf32>
    %289 = math.exp %288 : vector<1x128xf32>
    %cst_108 = arith.constant 1.000000e+00 : f32
    %290 = vector.broadcast %cst_108 : f32 to vector<1x128xf32>
    %291 = arith.addf %290, %289 : vector<1x128xf32>
    %292 = arith.divf %290, %291 : vector<1x128xf32>
    %293 = vector.extract_strided_slice %274 {offsets = [0, 256], sizes = [1, 128], strides = [1, 1]} : vector<1x384xf32> to vector<1x128xf32>
    %294 = vector.extract_strided_slice %276 {offsets = [0, 256], sizes = [1, 128], strides = [1, 1]} : vector<1x384xf32> to vector<1x128xf32>
    %c0_109 = arith.constant 0 : index
    %c0_110 = arith.constant 0 : index
    %295 = vector.load %arg7[%c0_109, %c0_110] : memref<1x128xf32, #tpu.memory_space<vmem>>, vector<1x128xf32>
    %296 = arith.addf %294, %295 : vector<1x128xf32>
    %297 = arith.mulf %284, %296 : vector<1x128xf32>
    %298 = arith.addf %293, %297 : vector<1x128xf32>
    %299 = math.tanh %298 : vector<1x128xf32>
    %300 = arith.subf %264, %299 : vector<1x128xf32>
    %301 = arith.mulf %292, %300 : vector<1x128xf32>
    %302 = arith.addf %299, %301 : vector<1x128xf32>
    %303 = arith.index_cast %c7_i32 : i32 to index
    %c0_111 = arith.constant 0 : index
    %304 = vector.load %arg8[%303, %c0_111] : memref<8x128xf32, #tpu.memory_space<vmem>>, vector<1x128xf32>
    tpu.vector_store %arg8[%303, %c0_111], %302 {strides = array<i32>} : memref<8x128xf32, #tpu.memory_space<vmem>>, vector<1x128xf32>,
    %c8_i32 = arith.constant 8 : i32
    return
  }
  func.func @transform_0(%arg0: i32, %arg1: memref<8xi32, #tpu.memory_space<smem>>) -> (i32, i32) {
    %c0_i32 = arith.constant 0 : i32
    %c0_i32_0 = arith.constant 0 : i32
    %c0_i32_1 = arith.constant 0 : i32
    return %c0_i32, %c0_i32_0 : i32, i32
  }
  func.func @transform_1(%arg0: i32, %arg1: memref<8xi32, #tpu.memory_space<smem>>) -> (i32, i32) {
    %c0_i32 = arith.constant 0 : i32
    %c0_i32_0 = arith.constant 0 : i32
    %c0_i32_1 = arith.constant 0 : i32
    return %c0_i32, %c0_i32_0 : i32, i32
  }
  func.func @transform_2(%arg0: i32, %arg1: memref<8xi32, #tpu.memory_space<smem>>) -> (i32, i32) {
    %c0_i32 = arith.constant 0 : i32
    %c0_i32_0 = arith.constant 0 : i32
    %c0_i32_1 = arith.constant 0 : i32
    return %c0_i32, %c0_i32_0 : i32, i32
  }
  func.func @transform_3(%arg0: i32, %arg1: memref<8xi32, #tpu.memory_space<smem>>) -> (i32, i32) {
    %c0_i32 = arith.constant 0 : i32
    %c0_i32_0 = arith.constant 0 : i32
    %c0_i32_1 = arith.constant 0 : i32
    return %c0_i32, %c0_i32_0 : i32, i32
  }
  func.func @transform_4(%arg0: i32, %arg1: memref<8xi32, #tpu.memory_space<smem>>) -> (i32, i32) {
    %c0_i32 = arith.constant 0 : i32
    %c0_i32_0 = arith.constant 0 : i32
    %c0_i32_1 = arith.constant 0 : i32
    return %c0_i32, %c0_i32_0 : i32, i32
  }
  func.func @transform_5(%arg0: i32, %arg1: memref<8xi32, #tpu.memory_space<smem>>) -> (i32, i32) {
    %c0_i32 = arith.constant 0 : i32
    %c0_i32_0 = arith.constant 0 : i32
    %c0_i32_1 = arith.constant 0 : i32
    return %c0_i32, %c0_i32_0 : i32, i32
  }
  func.func @transform_6(%arg0: i32, %arg1: memref<8xi32, #tpu.memory_space<smem>>) -> (i32, i32) {
    %c0_i32 = arith.constant 0 : i32
    %c0_i32_0 = arith.constant 0 : i32
    %c0_i32_1 = arith.constant 0 : i32
    return %c0_i32, %c0_i32_0 : i32, i32
  }
}

</mosaic_0001>

<llo_original>
// kernel: tpu_custom_call.1
$region0: #{tpu_custom_call.1}
  #allocation0 [shape = 'u32[]', space=smem, size = 0x4, offset = 0x4, fixed_abs, tag = 'smem constant byte address 0x4 - core index']
  #allocation1 [shape = 'u32[72,128]{1,0:T(1,128)}', space=vmem, size = 0x9000, scoped, tag = 'internal scratch']
  #allocation2 [shape = 's32[1]{0}', space=sflag, size = 0x4, scoped, tag = 'scoped memory for tpu_custom_call.1']
  #allocation3 [shape = 'u8[512]{0}', space=smem, size = 0x200, scoped, tag = 'prefetched SMEM operand 0']
  %s0 = inlined_call_operand.hbm [shape: s32[8], index: 0, kind: input, shape index: {}]
  %s1 = inlined_call_operand.hbm [shape: f32[64,128], index: 1, kind: input, shape index: {}]
  %s2 = inlined_call_operand.vmem [shape: f32[1,128], index: 2, kind: input, shape index: {}]
  %s3 = inlined_call_operand.hbm [shape: f32[128,384], index: 3, kind: input, shape index: {}]
  %s4 = inlined_call_operand.hbm [shape: f32[128,384], index: 4, kind: input, shape index: {}]
  %s5 = inlined_call_operand.vmem [shape: f32[1,384], index: 5, kind: input, shape index: {}]
  %s6 = inlined_call_operand.vmem [shape: f32[1,128], index: 6, kind: input, shape index: {}]
  %s7 = inlined_call_operand.hbm [shape: f32[8,128], index: 7, kind: output, shape index: {}]
  %s8 = sld [smem:[#allocation0]]
  $region46: #{tpu_custom_call.1} parent=0
    _
  %s10 = ssub.s32 1, %s8
  %s11 = scalar_select 0, %s10, %s8
  %s13 = sshll.u32 %s0, 4
  %s14 = int_to_ptr.hbm [resolvable:$true] %s13
  %16 = dma.hbm_to_smem %s14, 16, [#allocation3], [#allocation2]
  %18 = dma.done [#allocation2], 16
  %19 = sfence
  $region1: #{tpu_custom_call.1} parent=0
    #allocation4 [shape = 'u8[32768]{0}', space=vmem, size = 0x8000, scoped, tag = 'input window, operand 1, single buffered']
    #allocation5 [shape = 's32[1]{0}', space=sflag, size = 0x4, scoped, tag = 'scoped memory for tpu_custom_call.1']
    #allocation6 [shape = 's32[1]{0}', space=sflag, size = 0x4, scoped, tag = 'scoped memory for tpu_custom_call.1']
    #allocation7 [shape = 'u8[196608]{0}', space=vmem, size = 0x30000, scoped, tag = 'input window, operand 3, single buffered']
    #allocation8 [shape = 's32[1]{0}', space=sflag, size = 0x4, scoped, tag = 'scoped memory for tpu_custom_call.1']
    #allocation9 [shape = 'u8[196608]{0}', space=vmem, size = 0x30000, scoped, tag = 'input window, operand 4, single buffered']
    #allocation10 [shape = 'u8[4096]{0}', space=vmem, size = 0x1000, scoped, tag = 'output window, operand 0, single buffered']
    %20 = vsyncpa [#allocation5], 0
    %21 = vsyncpa [#allocation8], 0
    %22 = vsyncpa [#allocation6], 0
    // Predicated region
    $region2: #{tpu_custom_call.1} parent=1 // pred_check
      _
    $region3: #{tpu_custom_call.1} parent=1 // pred_check_branch
      %24 = sbr.rel (0) target = $region5
    $region4: #{tpu_custom_call.1} parent=1 // pred_region
      %26 = vsyncadd [#allocation5], 0
      %s27 = sshll.u32 %s1, 4
      %s28 = int_to_ptr.hbm [resolvable:$true] %s27
      %s29 = sshll.u32 [#allocation4], 4
      %s30 = int_to_ptr.vmem [resolvable:$true] %s29
      %35 = dma.hbm_to_vmem [thread:$0]  %s28, 1024, %s30, [#allocation5], 128, 128, 8
    $region5: #{tpu_custom_call.1} parent=1 // pred_fallthru
      _
    // Predicated region
    $region6: #{tpu_custom_call.1} parent=1 // pred_check
      _
    $region7: #{tpu_custom_call.1} parent=1 // pred_check_branch
      %37 = sbr.rel (0) target = $region9
    $region8: #{tpu_custom_call.1} parent=1 // pred_region
      _
    $region9: #{tpu_custom_call.1} parent=1 // pred_fallthru
      _
    // Predicated region
    $region10: #{tpu_custom_call.1} parent=1 // pred_check
      _
    $region11: #{tpu_custom_call.1} parent=1 // pred_check_branch
      %39 = sbr.rel (0) target = $region13
    $region12: #{tpu_custom_call.1} parent=1 // pred_region
      %41 = vsyncadd [#allocation8], 0
      %s42 = sshll.u32 %s3, 4
      %s43 = int_to_ptr.hbm [resolvable:$true] %s42
      %s44 = sshll.u32 [#allocation7], 4
      %s45 = int_to_ptr.vmem [resolvable:$true] %s44
      %50 = dma.hbm_to_vmem [thread:$0]  %s43, 6144, %s45, [#allocation8], 384, 384, 24
    $region13: #{tpu_custom_call.1} parent=1 // pred_fallthru
      _
    // Predicated region
    $region14: #{tpu_custom_call.1} parent=1 // pred_check
      _
    $region15: #{tpu_custom_call.1} parent=1 // pred_check_branch
      %52 = sbr.rel (0) target = $region17
    $region16: #{tpu_custom_call.1} parent=1 // pred_region
      %54 = vsyncadd [#allocation8], 0
      %s55 = sshll.u32 %s4, 4
      %s56 = int_to_ptr.hbm [resolvable:$true] %s55
      %s57 = sshll.u32 [#allocation9], 4
      %s58 = int_to_ptr.vmem [resolvable:$true] %s57
      %63 = dma.hbm_to_vmem [thread:$0]  %s56, 6144, %s58, [#allocation8], 384, 384, 24
    $region17: #{tpu_custom_call.1} parent=1 // pred_fallthru
      _
    // Predicated region
    $region18: #{tpu_custom_call.1} parent=1 // pred_check
      _
    $region19: #{tpu_custom_call.1} parent=1 // pred_check_branch
      %65 = sbr.rel (0) target = $region21
    $region20: #{tpu_custom_call.1} parent=1 // pred_region
      _
    $region21: #{tpu_custom_call.1} parent=1 // pred_fallthru
      _
    // Predicated region
    $region22: #{tpu_custom_call.1} parent=1 // pred_check
      _
    $region23: #{tpu_custom_call.1} parent=1 // pred_check_branch
      %67 = sbr.rel (0) target = $region25
    $region24: #{tpu_custom_call.1} parent=1 // pred_region
      _
    $region25: #{tpu_custom_call.1} parent=1 // pred_fallthru
      _
    // Predicated region
    $region26: #{tpu_custom_call.1} parent=1 // pred_check
      _
    $region27: #{tpu_custom_call.1} parent=1 // pred_check_branch
      %69 = sbr.rel (0) target = $region29
    $region28: #{tpu_custom_call.1} parent=1 // pred_region
      %71 = dma.done [#allocation5], 1024
    $region29: #{tpu_custom_call.1} parent=1 // pred_fallthru
      _
    // Predicated region
    $region30: #{tpu_custom_call.1} parent=1 // pred_check
      _
    $region31: #{tpu_custom_call.1} parent=1 // pred_check_branch
      %73 = sbr.rel (0) target = $region33
    $region32: #{tpu_custom_call.1} parent=1 // pred_region
      %75 = dma.done [#allocation8], 6144
    $region33: #{tpu_custom_call.1} parent=1 // pred_fallthru
      _
    // Predicated region
    $region34: #{tpu_custom_call.1} parent=1 // pred_check
      _
    $region35: #{tpu_custom_call.1} parent=1 // pred_check_branch
      %77 = sbr.rel (0) target = $region37
    $region36: #{tpu_custom_call.1} parent=1 // pred_region
      %79 = dma.done [#allocation8], 6144
    $region37: #{tpu_custom_call.1} parent=1 // pred_fallthru
      _
    %v80 = vld [vmem:[%s2] sm:$0x1]
    %s81 = sld [smem:[#allocation3]]
    %s82 = scalar_lea.vmem [#allocation4], %s81
    %v83 = vld [vmem:[%s82] sm:$0x1]
    %v84 = vld [vmem:[#allocation7] sm:$0xff]
    %v85 = vld [vmem:[#allocation7 + $0x8] sm:$0xff]
    %v86 = vld [vmem:[#allocation7 + $0x10] sm:$0xff]
    %v87 = vld [vmem:[#allocation7 + $0x18] sm:$0xff]
    %v88 = vld [vmem:[#allocation7 + $0x20] sm:$0xff]
    %v89 = vld [vmem:[#allocation7 + $0x28] sm:$0xff]
    %v90 = vld [vmem:[#allocation7 + $0x30] sm:$0xff]
    %v91 = vld [vmem:[#allocation7 + $0x38] sm:$0xff]
    %v92 = vld [vmem:[#allocation7 + $0x40] sm:$0xff]
    %v93 = vld [vmem:[#allocation7 + $0x48] sm:$0xff]
    %v94 = vld [vmem:[#allocation7 + $0x50] sm:$0xff]
    %v95 = vld [vmem:[#allocation7 + $0x58] sm:$0xff]
    %v96 = vld [vmem:[#allocation7 + $0x60] sm:$0xff]
    %v97 = vld [vmem:[#allocation7 + $0x68] sm:$0xff]
    %v98 = vld [vmem:[#allocation7 + $0x70] sm:$0xff]
    %v99 = vld [vmem:[#allocation7 + $0x78] sm:$0xff]
    %v100 = vld [vmem:[#allocation7 + $0x80] sm:$0xff]
    %v101 = vld [vmem:[#allocation7 + $0x88] sm:$0xff]
    %v102 = vld [vmem:[#allocation7 + $0x90] sm:$0xff]
    %v103 = vld [vmem:[#allocation7 + $0x98] sm:$0xff]
    %v104 = vld [vmem:[#allocation7 + $0xa0] sm:$0xff]
    %v105 = vld [vmem:[#allocation7 + $0xa8] sm:$0xff]
    %v106 = vld [vmem:[#allocation7 + $0xb0] sm:$0xff]
    %v107 = vld [vmem:[#allocation7 + $0xb8] sm:$0xff]
    %v108 = vld [vmem:[#allocation7 + $0xc0] sm:$0xff]
    %v109 = vld [vmem:[#allocation7 + $0xc8] sm:$0xff]
    %v110 = vld [vmem:[#allocation7 + $0xd0] sm:$0xff]
    %v111 = vld [vmem:[#allocation7 + $0xd8] sm:$0xff]
    %v112 = vld [vmem:[#allocation7 + $0xe0] sm:$0xff]
    %v113 = vld [vmem:[#allocation7 + $0xe8] sm:$0xff]
    %v114 = vld [vmem:[#allocation7 + $0xf0] sm:$0xff]
    %v115 = vld [vmem:[#allocation7 + $0xf8] sm:$0xff]
    %v116 = vld [vmem:[#allocation7 + $0x100] sm:$0xff]
    %v117 = vld [vmem:[#allocation7 + $0x108] sm:$0xff]
    %v118 = vld [vmem:[#allocation7 + $0x110] sm:$0xff]
    %v119 = vld [vmem:[#allocation7 + $0x118] sm:$0xff]
    %v120 = vld [vmem:[#allocation7 + $0x120] sm:$0xff]
    %v121 = vld [vmem:[#allocation7 + $0x128] sm:$0xff]
    %v122 = vld [vmem:[#allocation7 + $0x130] sm:$0xff]
    %v123 = vld [vmem:[#allocation7 + $0x138] sm:$0xff]
    %v124 = vld [vmem:[#allocation7 + $0x140] sm:$0xff]
    %v125 = vld [vmem:[#allocation7 + $0x148] sm:$0xff]
    %v126 = vld [vmem:[#allocation7 + $0x150] sm:$0xff]
    %v127 = vld [vmem:[#allocation7 + $0x158] sm:$0xff]
    %v128 = vld [vmem:[#allocation7 + $0x160] sm:$0xff]
    %v129 = vld [vmem:[#allocation7 + $0x168] sm:$0xff]
    %v130 = vld [vmem:[#allocation7 + $0x170] sm:$0xff]
    %v131 = vld [vmem:[#allocation7 + $0x178] sm:$0xff]
    %v132 = vld [vmem:[%s5] sm:$0x7]
    %v134 = vperm.slane %v132, 0
    %v135 = vperm.slane %v132, 1
    %v136 = vperm.slane %v132, 2
    %140 = vmatpush.msra.mxu0 %v129
    %141 = vmatpush.msra.mxu0 %v126
    %142 = vmatpush.msra.mxu0 %v123
    %143 = vmatpush.msra.mxu0 %v120
    %144 = vmatpush.msra.mxu0 %v117
    %145 = vmatpush.msra.mxu0 %v114
    %146 = vmatpush.msra.mxu0 %v111
    %147 = vmatpush.msra.mxu0 %v108
    %148 = vmatpush.msra.mxu0 %v105
    %149 = vmatpush.msra.mxu0 %v102
    %150 = vmatpush.msra.mxu0 %v99
    %151 = vmatpush.msra.mxu0 %v96
    %152 = vmatpush.msra.mxu0 %v93
    %153 = vmatpush.msra.mxu0 %v90
    %154 = vmatpush.msra.mxu0 %v87
    %155 = vmatpush.msra.mxu0 %v84
    %156 = vmatmul.f32.gmra.mxu0 %v83
    %v157 = vpop.f32.mrf.mxu0
    %v158 = vadd.f32 %v134, %v157
    %159 = vdwg.mxu0
    %160 = vmatpush.msra.mxu0 %v130
    %161 = vmatpush.msra.mxu0 %v127
    %162 = vmatpush.msra.mxu0 %v124
    %163 = vmatpush.msra.mxu0 %v121
    %164 = vmatpush.msra.mxu0 %v118
    %165 = vmatpush.msra.mxu0 %v115
    %166 = vmatpush.msra.mxu0 %v112
    %167 = vmatpush.msra.mxu0 %v109
    %168 = vmatpush.msra.mxu0 %v106
    %169 = vmatpush.msra.mxu0 %v103
    %170 = vmatpush.msra.mxu0 %v100
    %171 = vmatpush.msra.mxu0 %v97
    %172 = vmatpush.msra.mxu0 %v94
    %173 = vmatpush.msra.mxu0 %v91
    %174 = vmatpush.msra.mxu0 %v88
    %175 = vmatpush.msra.mxu0 %v85
    %176 = vmatmul.f32.gmra.mxu0 %v83
    %v177 = vpop.f32.mrf.mxu0
    %v178 = vadd.f32 %v135, %v177
    %179 = vdwg.mxu0
    %180 = vmatpush.msra.mxu0 %v131
    %181 = vmatpush.msra.mxu0 %v128
    %182 = vmatpush.msra.mxu0 %v125
    %183 = vmatpush.msra.mxu0 %v122
    %184 = vmatpush.msra.mxu0 %v119
    %185 = vmatpush.msra.mxu0 %v116
    %186 = vmatpush.msra.mxu0 %v113
    %187 = vmatpush.msra.mxu0 %v110
    %188 = vmatpush.msra.mxu0 %v107
    %189 = vmatpush.msra.mxu0 %v104
    %190 = vmatpush.msra.mxu0 %v101
    %191 = vmatpush.msra.mxu0 %v98
    %192 = vmatpush.msra.mxu0 %v95
    %193 = vmatpush.msra.mxu0 %v92
    %194 = vmatpush.msra.mxu0 %v89
    %195 = vmatpush.msra.mxu0 %v86
    %196 = vmatmul.f32.gmra.mxu0 %v83
    %v197 = vpop.f32.mrf.mxu0
    %v198 = vadd.f32 %v136, %v197
    %199 = vdwg.mxu0
    %v200 = vld [vmem:[#allocation9] sm:$0xff]
    %v201 = vld [vmem:[#allocation9 + $0x8] sm:$0xff]
    %v202 = vld [vmem:[#allocation9 + $0x10] sm:$0xff]
    %v203 = vld [vmem:[#allocation9 + $0x18] sm:$0xff]
    %v204 = vld [vmem:[#allocation9 + $0x20] sm:$0xff]
    %v205 = vld [vmem:[#allocation9 + $0x28] sm:$0xff]
    %v206 = vld [vmem:[#allocation9 + $0x30] sm:$0xff]
    %v207 = vld [vmem:[#allocation9 + $0x38] sm:$0xff]
    %v208 = vld [vmem:[#allocation9 + $0x40] sm:$0xff]
    %v209 = vld [vmem:[#allocation9 + $0x48] sm:$0xff]
    %v210 = vld [vmem:[#allocation9 + $0x50] sm:$0xff]
    %v211 = vld [vmem:[#allocation9 + $0x58] sm:$0xff]
    %v212 = vld [vmem:[#allocation9 + $0x60] sm:$0xff]
    %v213 = vld [vmem:[#allocation9 + $0x68] sm:$0xff]
    %v214 = vld [vmem:[#allocation9 + $0x70] sm:$0xff]
    %v215 = vld [vmem:[#allocation9 + $0x78] sm:$0xff]
    %v216 = vld [vmem:[#allocation9 + $0x80] sm:$0xff]
    %v217 = vld [vmem:[#allocation9 + $0x88] sm:$0xff]
    %v218 = vld [vmem:[#allocation9 + $0x90] sm:$0xff]
    %v219 = vld [vmem:[#allocation9 + $0x98] sm:$0xff]
    %v220 = vld [vmem:[#allocation9 + $0xa0] sm:$0xff]
    %v221 = vld [vmem:[#allocation9 + $0xa8] sm:$0xff]
    %v222 = vld [vmem:[#allocation9 + $0xb0] sm:$0xff]
    %v223 = vld [vmem:[#allocation9 + $0xb8] sm:$0xff]
    %v224 = vld [vmem:[#allocation9 + $0xc0] sm:$0xff]
    %v225 = vld [vmem:[#allocation9 + $0xc8] sm:$0xff]
    %v226 = vld [vmem:[#allocation9 + $0xd0] sm:$0xff]
    %v227 = vld [vmem:[#allocation9 + $0xd8] sm:$0xff]
    %v228 = vld [vmem:[#allocation9 + $0xe0] sm:$0xff]
    %v229 = vld [vmem:[#allocation9 + $0xe8] sm:$0xff]
    %v230 = vld [vmem:[#allocation9 + $0xf0] sm:$0xff]
    %v231 = vld [vmem:[#allocation9 + $0xf8] sm:$0xff]
    %v232 = vld [vmem:[#allocation9 + $0x100] sm:$0xff]
    %v233 = vld [vmem:[#allocation9 + $0x108] sm:$0xff]
    %v234 = vld [vmem:[#allocation9 + $0x110] sm:$0xff]
    %v235 = vld [vmem:[#allocation9 + $0x118] sm:$0xff]
    %v236 = vld [vmem:[#allocation9 + $0x120] sm:$0xff]
    %v237 = vld [vmem:[#allocation9 + $0x128] sm:$0xff]
    %v238 = vld [vmem:[#allocation9 + $0x130] sm:$0xff]
    %v239 = vld [vmem:[#allocation9 + $0x138] sm:$0xff]
    %v240 = vld [vmem:[#allocation9 + $0x140] sm:$0xff]
    %v241 = vld [vmem:[#allocation9 + $0x148] sm:$0xff]
    %v242 = vld [vmem:[#allocation9 + $0x150] sm:$0xff]
    %v243 = vld [vmem:[#allocation9 + $0x158] sm:$0xff]
    %v244 = vld [vmem:[#allocation9 + $0x160] sm:$0xff]
    %v245 = vld [vmem:[#allocation9 + $0x168] sm:$0xff]
    %v246 = vld [vmem:[#allocation9 + $0x170] sm:$0xff]
    %v247 = vld [vmem:[#allocation9 + $0x178] sm:$0xff]
    %248 = vmatpush.msra.mxu0 %v245
    %249 = vmatpush.msra.mxu0 %v242
    %250 = vmatpush.msra.mxu0 %v239
    %251 = vmatpush.msra.mxu0 %v236
    %252 = vmatpush.msra.mxu0 %v233
    %253 = vmatpush.msra.mxu0 %v230
    %254 = vmatpush.msra.mxu0 %v227
    %255 = vmatpush.msra.mxu0 %v224
    %256 = vmatpush.msra.mxu0 %v221
    %257 = vmatpush.msra.mxu0 %v218
    %258 = vmatpush.msra.mxu0 %v215
    %259 = vmatpush.msra.mxu0 %v212
    %260 = vmatpush.msra.mxu0 %v209
    %261 = vmatpush.msra.mxu0 %v206
    %262 = vmatpush.msra.mxu0 %v203
    %263 = vmatpush.msra.mxu0 %v200
    %264 = vmatmul.f32.gmra.mxu0 %v80
    %v265 = vpop.f32.mrf.mxu0
    %v266 = vadd.f32 0.0, %v265
    %267 = vdwg.mxu0
    %268 = vmatpush.msra.mxu0 %v246
    %269 = vmatpush.msra.mxu0 %v243
    %270 = vmatpush.msra.mxu0 %v240
    %271 = vmatpush.msra.mxu0 %v237
    %272 = vmatpush.msra.mxu0 %v234
    %273 = vmatpush.msra.mxu0 %v231
    %274 = vmatpush.msra.mxu0 %v228
    %275 = vmatpush.msra.mxu0 %v225
    %276 = vmatpush.msra.mxu0 %v222
    %277 = vmatpush.msra.mxu0 %v219
    %278 = vmatpush.msra.mxu0 %v216
    %279 = vmatpush.msra.mxu0 %v213
    %280 = vmatpush.msra.mxu0 %v210
    %281 = vmatpush.msra.mxu0 %v207
    %282 = vmatpush.msra.mxu0 %v204
    %283 = vmatpush.msra.mxu0 %v201
    %284 = vmatmul.f32.gmra.mxu0 %v80
    %v285 = vpop.f32.mrf.mxu0
    %v286 = vadd.f32 0.0, %v285
    %287 = vdwg.mxu0
    %288 = vmatpush.msra.mxu0 %v247
    %289 = vmatpush.msra.mxu0 %v244
    %290 = vmatpush.msra.mxu0 %v241
    %291 = vmatpush.msra.mxu0 %v238
    %292 = vmatpush.msra.mxu0 %v235
    %293 = vmatpush.msra.mxu0 %v232
    %294 = vmatpush.msra.mxu0 %v229
    %295 = vmatpush.msra.mxu0 %v226
    %296 = vmatpush.msra.mxu0 %v223
    %297 = vmatpush.msra.mxu0 %v220
    %298 = vmatpush.msra.mxu0 %v217
    %299 = vmatpush.msra.mxu0 %v214
    %300 = vmatpush.msra.mxu0 %v211
    %301 = vmatpush.msra.mxu0 %v208
    %302 = vmatpush.msra.mxu0 %v205
    %303 = vmatpush.msra.mxu0 %v202
    %304 = vmatmul.f32.gmra.mxu0 %v80
    %v305 = vpop.f32.mrf.mxu0
    %v306 = vadd.f32 0.0, %v305
    %307 = vdwg.mxu0
    %v308 = vadd.f32 %v158, %v266
    %v309 = vxor.u32 %v308, 2147483648
    %v310 = vmul.f32 %v309, 1.442695
    %v311 = vpow.pop %v310
    %v312 = vadd.f32 %v311, 1.0
    %v313 = vrcp.pop %v312
    %v314 = vmul.f32 %v312, %v313
    %v315 = vsub.f32 1.0, %v314
    %v316 = vmul.f32 %v313, %v315
    %v317 = vadd.f32 %v313, %v316
    %vm318 = vweird.f32 %v312
    %vm319 = vweird.f32 %v313
    %vm320 = vmor %vm318, %vm319
    %v321 = vsel %vm320, %v313, %v317
    %v322 = vand.u32 2147483647, %v312
    %vm323 = vcmp.eq.f32.partialorder %v322, 8.507059e+37
    %v324 = vand.u32 %v312, 2147483648
    %v325 = vor.u32 1.1754944e-38, %v324
    %v326 = vsel %vm323, %v325, %v321
    %v327 = vmul.f32 1.0, %v326
    %v328 = vadd.f32 %v178, %v286
    %v329 = vxor.u32 %v328, 2147483648
    %v330 = vmul.f32 %v329, 1.442695
    %v331 = vpow.pop %v330
    %v332 = vadd.f32 %v331, 1.0
    %v333 = vrcp.pop %v332
    %v334 = vmul.f32 %v332, %v333
    %v335 = vsub.f32 1.0, %v334
    %v336 = vmul.f32 %v333, %v335
    %v337 = vadd.f32 %v333, %v336
    %vm338 = vweird.f32 %v332
    %vm339 = vweird.f32 %v333
    %vm340 = vmor %vm338, %vm339
    %v341 = vsel %vm340, %v333, %v337
    %v342 = vand.u32 2147483647, %v332
    %vm343 = vcmp.eq.f32.partialorder %v342, 8.507059e+37
    %v344 = vand.u32 %v332, 2147483648
    %v345 = vor.u32 1.1754944e-38, %v344
    %v346 = vsel %vm343, %v345, %v341
    %v347 = vmul.f32 1.0, %v346
    %v348 = vld [vmem:[%s6] sm:$0x1]
    %v349 = vadd.f32 %v306, %v348
    %v350 = vmul.f32 %v327, %v349
    %v351 = vadd.f32 %v198, %v350
    %v352 = vtanh.pop %v351
    %v353 = vsub.f32 %v80, %v352
    %v354 = vmul.f32 %v347, %v353
    %v355 = vadd.f32 %v352, %v354
    %356 = vst [vmem:[#allocation10] sm:$0x1] %v355
    %s357 = sld [smem:[#allocation3 + $0x1]]
    %s358 = scalar_lea.vmem [#allocation4], %s357
    %v359 = vld [vmem:[%s358] sm:$0x1]
    %v360 = vld [vmem:[#allocation7] sm:$0xff]
    %v361 = vld [vmem:[#allocation7 + $0x8] sm:$0xff]
    %v362 = vld [vmem:[#allocation7 + $0x10] sm:$0xff]
    %v363 = vld [vmem:[#allocation7 + $0x18] sm:$0xff]
    %v364 = vld [vmem:[#allocation7 + $0x20] sm:$0xff]
    %v365 = vld [vmem:[#allocation7 + $0x28] sm:$0xff]
    %v366 = vld [vmem:[#allocation7 + $0x30] sm:$0xff]
    %v367 = vld [vmem:[#allocation7 + $0x38] sm:$0xff]
    %v368 = vld [vmem:[#allocation7 + $0x40] sm:$0xff]
    %v369 = vld [vmem:[#allocation7 + $0x48] sm:$0xff]
    %v370 = vld [vmem:[#allocation7 + $0x50] sm:$0xff]
    %v371 = vld [vmem:[#allocation7 + $0x58] sm:$0xff]
    %v372 = vld [vmem:[#allocation7 + $0x60] sm:$0xff]
    %v373 = vld [vmem:[#allocation7 + $0x68] sm:$0xff]
    %v374 = vld [vmem:[#allocation7 + $0x70] sm:$0xff]
    %v375 = vld [vmem:[#allocation7 + $0x78] sm:$0xff]
    %v376 = vld [vmem:[#allocation7 + $0x80] sm:$0xff]
    %v377 = vld [vmem:[#allocation7 + $0x88] sm:$0xff]
    %v378 = vld [vmem:[#allocation7 + $0x90] sm:$0xff]
    %v379 = vld [vmem:[#allocation7 + $0x98] sm:$0xff]
    %v380 = vld [vmem:[#allocation7 + $0xa0] sm:$0xff]
    %v381 = vld [vmem:[#allocation7 + $0xa8] sm:$0xff]
    %v382 = vld [vmem:[#allocation7 + $0xb0] sm:$0xff]
    %v383 = vld [vmem:[#allocation7 + $0xb8] sm:$0xff]
    %v384 = vld [vmem:[#allocation7 + $0xc0] sm:$0xff]
    %v385 = vld [vmem:[#allocation7 + $0xc8] sm:$0xff]
    %v386 = vld [vmem:[#allocation7 + $0xd0] sm:$0xff]
    %v387 = vld [vmem:[#allocation7 + $0xd8] sm:$0xff]
    %v388 = vld [vmem:[#allocation7 + $0xe0] sm:$0xff]
    %v389 = vld [vmem:[#allocation7 + $0xe8] sm:$0xff]
    %v390 = vld [vmem:[#allocation7 + $0xf0] sm:$0xff]
    %v391 = vld [vmem:[#allocation7 + $0xf8] sm:$0xff]
    %v392 = vld [vmem:[#allocation7 + $0x100] sm:$0xff]
    %v393 = vld [vmem:[#allocation7 + $0x108] sm:$0xff]
    %v394 = vld [vmem:[#allocation7 + $0x110] sm:$0xff]
    %v395 = vld [vmem:[#allocation7 + $0x118] sm:$0xff]
    %v396 = vld [vmem:[#allocation7 + $0x120] sm:$0xff]
    %v397 = vld [vmem:[#allocation7 + $0x128] sm:$0xff]
    %v398 = vld [vmem:[#allocation7 + $0x130] sm:$0xff]
    %v399 = vld [vmem:[#allocation7 + $0x138] sm:$0xff]
    %v400 = vld [vmem:[#allocation7 + $0x140] sm:$0xff]
    %v401 = vld [vmem:[#allocation7 + $0x148] sm:$0xff]
    %v402 = vld [vmem:[#allocation7 + $0x150] sm:$0xff]
    %v403 = vld [vmem:[#allocation7 + $0x158] sm:$0xff]
    %v404 = vld [vmem:[#allocation7 + $0x160] sm:$0xff]
    %v405 = vld [vmem:[#allocation7 + $0x168] sm:$0xff]
    %v406 = vld [vmem:[#allocation7 + $0x170] sm:$0xff]
    %v407 = vld [vmem:[#allocation7 + $0x178] sm:$0xff]
    %v408 = vld [vmem:[%s5] sm:$0x7]
    %v410 = vperm.slane %v408, 0
    %v411 = vperm.slane %v408, 1
    %v412 = vperm.slane %v408, 2
    %416 = vmatpush.msra.mxu0 %v405
    %417 = vmatpush.msra.mxu0 %v402
    %418 = vmatpush.msra.mxu0 %v399
    %419 = vmatpush.msra.mxu0 %v396
    %420 = vmatpush.msra.mxu0 %v393
    %421 = vmatpush.msra.mxu0 %v390
    %422 = vmatpush.msra.mxu0 %v387
    %423 = vmatpush.msra.mxu0 %v384
    %424 = vmatpush.msra.mxu0 %v381
    %425 = vmatpush.msra.mxu0 %v378
    %426 = vmatpush.msra.mxu0 %v375
    %427 = vmatpush.msra.mxu0 %v372
    %428 = vmatpush.msra.mxu0 %v369
    %429 = vmatpush.msra.mxu0 %v366
    %430 = vmatpush.msra.mxu0 %v363
    %431 = vmatpush.msra.mxu0 %v360
    %432 = vmatmul.f32.gmra.mxu0 %v359
    %v433 = vpop.f32.mrf.mxu0
    %v434 = vadd.f32 %v410, %v433
    %435 = vdwg.mxu0
    %436 = vmatpush.msra.mxu0 %v406
    %437 = vmatpush.msra.mxu0 %v403
    %438 = vmatpush.msra.mxu0 %v400
    %439 = vmatpush.msra.mxu0 %v397
    %440 = vmatpush.msra.mxu0 %v394
    %441 = vmatpush.msra.mxu0 %v391
    %442 = vmatpush.msra.mxu0 %v388
    %443 = vmatpush.msra.mxu0 %v385
    %444 = vmatpush.msra.mxu0 %v382
    %445 = vmatpush.msra.mxu0 %v379
    %446 = vmatpush.msra.mxu0 %v376
    %447 = vmatpush.msra.mxu0 %v373
    %448 = vmatpush.msra.mxu0 %v370
    %449 = vmatpush.msra.mxu0 %v367
    %450 = vmatpush.msra.mxu0 %v364
    %451 = vmatpush.msra.mxu0 %v361
    %452 = vmatmul.f32.gmra.mxu0 %v359
    %v453 = vpop.f32.mrf.mxu0
    %v454 = vadd.f32 %v411, %v453
    %455 = vdwg.mxu0
    %456 = vmatpush.msra.mxu0 %v407
    %457 = vmatpush.msra.mxu0 %v404
    %458 = vmatpush.msra.mxu0 %v401
    %459 = vmatpush.msra.mxu0 %v398
    %460 = vmatpush.msra.mxu0 %v395
    %461 = vmatpush.msra.mxu0 %v392
    %462 = vmatpush.msra.mxu0 %v389
    %463 = vmatpush.msra.mxu0 %v386
    %464 = vmatpush.msra.mxu0 %v383
    %465 = vmatpush.msra.mxu0 %v380
    %466 = vmatpush.msra.mxu0 %v377
    %467 = vmatpush.msra.mxu0 %v374
    %468 = vmatpush.msra.mxu0 %v371
    %469 = vmatpush.msra.mxu0 %v368
    %470 = vmatpush.msra.mxu0 %v365
    %471 = vmatpush.msra.mxu0 %v362
    %472 = vmatmul.f32.gmra.mxu0 %v359
    %v473 = vpop.f32.mrf.mxu0
    %v474 = vadd.f32 %v412, %v473
    %475 = vdwg.mxu0
    %v476 = vld [vmem:[#allocation9] sm:$0xff]
    %v477 = vld [vmem:[#allocation9 + $0x8] sm:$0xff]
    %v478 = vld [vmem:[#allocation9 + $0x10] sm:$0xff]
    %v479 = vld [vmem:[#allocation9 + $0x18] sm:$0xff]
    %v480 = vld [vmem:[#allocation9 + $0x20] sm:$0xff]
    %v481 = vld [vmem:[#allocation9 + $0x28] sm:$0xff]
    %v482 = vld [vmem:[#allocation9 + $0x30] sm:$0xff]
    %v483 = vld [vmem:[#allocation9 + $0x38] sm:$0xff]
    %v484 = vld [vmem:[#allocation9 + $0x40] sm:$0xff]
    %v485 = vld [vmem:[#allocation9 + $0x48] sm:$0xff]
    %v486 = vld [vmem:[#allocation9 + $0x50] sm:$0xff]
    %v487 = vld [vmem:[#allocation9 + $0x58] sm:$0xff]
    %v488 = vld [vmem:[#allocation9 + $0x60] sm:$0xff]
    %v489 = vld [vmem:[#allocation9 + $0x68] sm:$0xff]
    %v490 = vld [vmem:[#allocation9 + $0x70] sm:$0xff]
    %v491 = vld [vmem:[#allocation9 + $0x78] sm:$0xff]
    %v492 = vld [vmem:[#allocation9 + $0x80] sm:$0xff]
    %v493 = vld [vmem:[#allocation9 + $0x88] sm:$0xff]
    %v494 = vld [vmem:[#allocation9 + $0x90] sm:$0xff]
    %v495 = vld [vmem:[#allocation9 + $0x98] sm:$0xff]
    %v496 = vld [vmem:[#allocation9 + $0xa0] sm:$0xff]
    %v497 = vld [vmem:[#allocation9 + $0xa8] sm:$0xff]
    %v498 = vld [vmem:[#allocation9 + $0xb0] sm:$0xff]
    %v499 = vld [vmem:[#allocation9 + $0xb8] sm:$0xff]
    %v500 = vld [vmem:[#allocation9 + $0xc0] sm:$0xff]
    %v501 = vld [vmem:[#allocation9 + $0xc8] sm:$0xff]
    %v502 = vld [vmem:[#allocation9 + $0xd0] sm:$0xff]
    %v503 = vld [vmem:[#allocation9 + $0xd8] sm:$0xff]
    %v504 = vld [vmem:[#allocation9 + $0xe0] sm:$0xff]
    %v505 = vld [vmem:[#allocation9 + $0xe8] sm:$0xff]
    %v506 = vld [vmem:[#allocation9 + $0xf0] sm:$0xff]
    %v507 = vld [vmem:[#allocation9 + $0xf8] sm:$0xff]
    %v508 = vld [vmem:[#allocation9 + $0x100] sm:$0xff]
    %v509 = vld [vmem:[#allocation9 + $0x108] sm:$0xff]
    %v510 = vld [vmem:[#allocation9 + $0x110] sm:$0xff]
    %v511 = vld [vmem:[#allocation9 + $0x118] sm:$0xff]
    %v512 = vld [vmem:[#allocation9 + $0x120] sm:$0xff]
    %v513 = vld [vmem:[#allocation9 + $0x128] sm:$0xff]
    %v514 = vld [vmem:[#allocation9 + $0x130] sm:$0xff]
    %v515 = vld [vmem:[#allocation9 + $0x138] sm:$0xff]
    %v516 = vld [vmem:[#allocation9 + $0x140] sm:$0xff]
    %v517 = vld [vmem:[#allocation9 + $0x148] sm:$0xff]
    %v518 = vld [vmem:[#allocation9 + $0x150] sm:$0xff]
    %v519 = vld [vmem:[#allocation9 + $0x158] sm:$0xff]
    %v520 = vld [vmem:[#allocation9 + $0x160] sm:$0xff]
    %v521 = vld [vmem:[#allocation9 + $0x168] sm:$0xff]
    %v522 = vld [vmem:[#allocation9 + $0x170] sm:$0xff]
    %v523 = vld [vmem:[#allocation9 + $0x178] sm:$0xff]
    %524 = vmatpush.msra.mxu0 %v521
    %525 = vmatpush.msra.mxu0 %v518
    %526 = vmatpush.msra.mxu0 %v515
    %527 = vmatpush.msra.mxu0 %v512
    %528 = vmatpush.msra.mxu0 %v509
    %529 = vmatpush.msra.mxu0 %v506
    %530 = vmatpush.msra.mxu0 %v503
    %531 = vmatpush.msra.mxu0 %v500
    %532 = vmatpush.msra.mxu0 %v497
    %533 = vmatpush.msra.mxu0 %v494
    %534 = vmatpush.msra.mxu0 %v491
    %535 = vmatpush.msra.mxu0 %v488
    %536 = vmatpush.msra.mxu0 %v485
    %537 = vmatpush.msra.mxu0 %v482
    %538 = vmatpush.msra.mxu0 %v479
    %539 = vmatpush.msra.mxu0 %v476
    %540 = vmatmul.f32.gmra.mxu0 %v355
    %v541 = vpop.f32.mrf.mxu0
    %v542 = vadd.f32 0.0, %v541
    %543 = vdwg.mxu0
    %544 = vmatpush.msra.mxu0 %v522
    %545 = vmatpush.msra.mxu0 %v519
    %546 = vmatpush.msra.mxu0 %v516
    %547 = vmatpush.msra.mxu0 %v513
    %548 = vmatpush.msra.mxu0 %v510
    %549 = vmatpush.msra.mxu0 %v507
    %550 = vmatpush.msra.mxu0 %v504
    %551 = vmatpush.msra.mxu0 %v501
    %552 = vmatpush.msra.mxu0 %v498
    %553 = vmatpush.msra.mxu0 %v495
    %554 = vmatpush.msra.mxu0 %v492
    %555 = vmatpush.msra.mxu0 %v489
    %556 = vmatpush.msra.mxu0 %v486
    %557 = vmatpush.msra.mxu0 %v483
    %558 = vmatpush.msra.mxu0 %v480
    %559 = vmatpush.msra.mxu0 %v477
    %560 = vmatmul.f32.gmra.mxu0 %v355
    %v561 = vpop.f32.mrf.mxu0
    %v562 = vadd.f32 0.0, %v561
    %563 = vdwg.mxu0
    %564 = vmatpush.msra.mxu0 %v523
    %565 = vmatpush.msra.mxu0 %v520
    %566 = vmatpush.msra.mxu0 %v517
    %567 = vmatpush.msra.mxu0 %v514
    %568 = vmatpush.msra.mxu0 %v511
    %569 = vmatpush.msra.mxu0 %v508
    %570 = vmatpush.msra.mxu0 %v505
    %571 = vmatpush.msra.mxu0 %v502
    %572 = vmatpush.msra.mxu0 %v499
    %573 = vmatpush.msra.mxu0 %v496
    %574 = vmatpush.msra.mxu0 %v493
    %575 = vmatpush.msra.mxu0 %v490
    %576 = vmatpush.msra.mxu0 %v487
    %577 = vmatpush.msra.mxu0 %v484
    %578 = vmatpush.msra.mxu0 %v481
    %579 = vmatpush.msra.mxu0 %v478
    %580 = vmatmul.f32.gmra.mxu0 %v355
    %v581 = vpop.f32.mrf.mxu0
    %v582 = vadd.f32 0.0, %v581
    %583 = vdwg.mxu0
    %v584 = vadd.f32 %v434, %v542
    %v585 = vxor.u32 %v584, 2147483648
    %v586 = vmul.f32 %v585, 1.442695
    %v587 = vpow.pop %v586
    %v588 = vadd.f32 %v587, 1.0
    %v589 = vrcp.pop %v588
    %v590 = vmul.f32 %v588, %v589
    %v591 = vsub.f32 1.0, %v590
    %v592 = vmul.f32 %v589, %v591
    %v593 = vadd.f32 %v589, %v592
    %vm594 = vweird.f32 %v588
    %vm595 = vweird.f32 %v589
    %vm596 = vmor %vm594, %vm595
    %v597 = vsel %vm596, %v589, %v593
    %v598 = vand.u32 2147483647, %v588
    %vm599 = vcmp.eq.f32.partialorder %v598, 8.507059e+37
    %v600 = vand.u32 %v588, 2147483648
    %v601 = vor.u32 1.1754944e-38, %v600
    %v602 = vsel %vm599, %v601, %v597
    %v603 = vmul.f32 1.0, %v602
    %v604 = vadd.f32 %v454, %v562
    %v605 = vxor.u32 %v604, 2147483648
    %v606 = vmul.f32 %v605, 1.442695
    %v607 = vpow.pop %v606
    %v608 = vadd.f32 %v607, 1.0
    %v609 = vrcp.pop %v608
    %v610 = vmul.f32 %v608, %v609
    %v611 = vsub.f32 1.0, %v610
    %v612 = vmul.f32 %v609, %v611
    %v613 = vadd.f32 %v609, %v612
    %vm614 = vweird.f32 %v608
    %vm615 = vweird.f32 %v609
    %vm616 = vmor %vm614, %vm615
    %v617 = vsel %vm616, %v609, %v613
    %v618 = vand.u32 2147483647, %v608
    %vm619 = vcmp.eq.f32.partialorder %v618, 8.507059e+37
    %v620 = vand.u32 %v608, 2147483648
    %v621 = vor.u32 1.1754944e-38, %v620
    %v622 = vsel %vm619, %v621, %v617
    %v623 = vmul.f32 1.0, %v622
    %v624 = vld [vmem:[%s6] sm:$0x1]
    %v625 = vadd.f32 %v582, %v624
    %v626 = vmul.f32 %v603, %v625
    %v627 = vadd.f32 %v474, %v626
    %v628 = vtanh.pop %v627
    %v629 = vsub.f32 %v355, %v628
    %v630 = vmul.f32 %v623, %v629
    %v631 = vadd.f32 %v628, %v630
    %632 = vst [vmem:[#allocation10 + $0x1] sm:$0x1] %v631
    %s633 = sld [smem:[#allocation3 + $0x2]]
    %s634 = scalar_lea.vmem [#allocation4], %s633
    %v635 = vld [vmem:[%s634] sm:$0x1]
    %v636 = vld [vmem:[#allocation7] sm:$0xff]
    %v637 = vld [vmem:[#allocation7 + $0x8] sm:$0xff]
    %v638 = vld [vmem:[#allocation7 + $0x10] sm:$0xff]
    %v639 = vld [vmem:[#allocation7 + $0x18] sm:$0xff]
    %v640 = vld [vmem:[#allocation7 + $0x20] sm:$0xff]
    %v641 = vld [vmem:[#allocation7 + $0x28] sm:$0xff]
    %v642 = vld [vmem:[#allocation7 + $0x30] sm:$0xff]
    %v643 = vld [vmem:[#allocation7 + $0x38] sm:$0xff]
    %v644 = vld [vmem:[#allocation7 + $0x40] sm:$0xff]
    %v645 = vld [vmem:[#allocation7 + $0x48] sm:$0xff]
    %v646 = vld [vmem:[#allocation7 + $0x50] sm:$0xff]
    %v647 = vld [vmem:[#allocation7 + $0x58] sm:$0xff]
    %v648 = vld [vmem:[#allocation7 + $0x60] sm:$0xff]
    %v649 = vld [vmem:[#allocation7 + $0x68] sm:$0xff]
    %v650 = vld [vmem:[#allocation7 + $0x70] sm:$0xff]
    %v651 = vld [vmem:[#allocation7 + $0x78] sm:$0xff]
    %v652 = vld [vmem:[#allocation7 + $0x80] sm:$0xff]
    %v653 = vld [vmem:[#allocation7 + $0x88] sm:$0xff]
    %v654 = vld [vmem:[#allocation7 + $0x90] sm:$0xff]
    %v655 = vld [vmem:[#allocation7 + $0x98] sm:$0xff]
    %v656 = vld [vmem:[#allocation7 + $0xa0] sm:$0xff]
    %v657 = vld [vmem:[#allocation7 + $0xa8] sm:$0xff]
    %v658 = vld [vmem:[#allocation7 + $0xb0] sm:$0xff]
    %v659 = vld [vmem:[#allocation7 + $0xb8] sm:$0xff]
    %v660 = vld [vmem:[#allocation7 + $0xc0] sm:$0xff]
    %v661 = vld [vmem:[#allocation7 + $0xc8] sm:$0xff]
    %v662 = vld [vmem:[#allocation7 + $0xd0] sm:$0xff]
    %v663 = vld [vmem:[#allocation7 + $0xd8] sm:$0xff]
    %v664 = vld [vmem:[#allocation7 + $0xe0] sm:$0xff]
    %v665 = vld [vmem:[#allocation7 + $0xe8] sm:$0xff]
    %v666 = vld [vmem:[#allocation7 + $0xf0] sm:$0xff]
    %v667 = vld [vmem:[#allocation7 + $0xf8] sm:$0xff]
    %v668 = vld [vmem:[#allocation7 + $0x100] sm:$0xff]
    %v669 = vld [vmem:[#allocation7 + $0x108] sm:$0xff]
    %v670 = vld [vmem:[#allocation7 + $0x110] sm:$0xff]
    %v671 = vld [vmem:[#allocation7 + $0x118] sm:$0xff]
    %v672 = vld [vmem:[#allocation7 + $0x120] sm:$0xff]
    %v673 = vld [vmem:[#allocation7 + $0x128] sm:$0xff]
    %v674 = vld [vmem:[#allocation7 + $0x130] sm:$0xff]
    %v675 = vld [vmem:[#allocation7 + $0x138] sm:$0xff]
    %v676 = vld [vmem:[#allocation7 + $0x140] sm:$0xff]
    %v677 = vld [vmem:[#allocation7 + $0x148] sm:$0xff]
    %v678 = vld [vmem:[#allocation7 + $0x150] sm:$0xff]
    %v679 = vld [vmem:[#allocation7 + $0x158] sm:$0xff]
    %v680 = vld [vmem:[#allocation7 + $0x160] sm:$0xff]
    %v681 = vld [vmem:[#allocation7 + $0x168] sm:$0xff]
    %v682 = vld [vmem:[#allocation7 + $0x170] sm:$0xff]
    %v683 = vld [vmem:[#allocation7 + $0x178] sm:$0xff]
    %v684 = vld [vmem:[%s5] sm:$0x7]
    %v686 = vperm.slane %v684, 0
    %v687 = vperm.slane %v684, 1
    %v688 = vperm.slane %v684, 2
    %692 = vmatpush.msra.mxu0 %v681
    %693 = vmatpush.msra.mxu0 %v678
    %694 = vmatpush.msra.mxu0 %v675
    %695 = vmatpush.msra.mxu0 %v672
    %696 = vmatpush.msra.mxu0 %v669
    %697 = vmatpush.msra.mxu0 %v666
    %698 = vmatpush.msra.mxu0 %v663
    %699 = vmatpush.msra.mxu0 %v660
    %700 = vmatpush.msra.mxu0 %v657
    %701 = vmatpush.msra.mxu0 %v654
    %702 = vmatpush.msra.mxu0 %v651
    %703 = vmatpush.msra.mxu0 %v648
    %704 = vmatpush.msra.mxu0 %v645
    %705 = vmatpush.msra.mxu0 %v642
    %706 = vmatpush.msra.mxu0 %v639
    %707 = vmatpush.msra.mxu0 %v636
    %708 = vmatmul.f32.gmra.mxu0 %v635
    %v709 = vpop.f32.mrf.mxu0
    %v710 = vadd.f32 %v686, %v709
    %711 = vdwg.mxu0
    %712 = vmatpush.msra.mxu0 %v682
    %713 = vmatpush.msra.mxu0 %v679
    %714 = vmatpush.msra.mxu0 %v676
    %715 = vmatpush.msra.mxu0 %v673
    %716 = vmatpush.msra.mxu0 %v670
    %717 = vmatpush.msra.mxu0 %v667
    %718 = vmatpush.msra.mxu0 %v664
    %719 = vmatpush.msra.mxu0 %v661
    %720 = vmatpush.msra.mxu0 %v658
    %721 = vmatpush.msra.mxu0 %v655
    %722 = vmatpush.msra.mxu0 %v652
    %723 = vmatpush.msra.mxu0 %v649
    %724 = vmatpush.msra.mxu0 %v646
    %725 = vmatpush.msra.mxu0 %v643
    %726 = vmatpush.msra.mxu0 %v640
    %727 = vmatpush.msra.mxu0 %v637
    %728 = vmatmul.f32.gmra.mxu0 %v635
    %v729 = vpop.f32.mrf.mxu0
    %v730 = vadd.f32 %v687, %v729
    %731 = vdwg.mxu0
    %732 = vmatpush.msra.mxu0 %v683
    %733 = vmatpush.msra.mxu0 %v680
    %734 = vmatpush.msra.mxu0 %v677
    %735 = vmatpush.msra.mxu0 %v674
    %736 = vmatpush.msra.mxu0 %v671
    %737 = vmatpush.msra.mxu0 %v668
    %738 = vmatpush.msra.mxu0 %v665
    %739 = vmatpush.msra.mxu0 %v662
    %740 = vmatpush.msra.mxu0 %v659
    %741 = vmatpush.msra.mxu0 %v656
    %742 = vmatpush.msra.mxu0 %v653
    %743 = vmatpush.msra.mxu0 %v650
    %744 = vmatpush.msra.mxu0 %v647
    %745 = vmatpush.msra.mxu0 %v644
    %746 = vmatpush.msra.mxu0 %v641
    %747 = vmatpush.msra.mxu0 %v638
    %748 = vmatmul.f32.gmra.mxu0 %v635
    %v749 = vpop.f32.mrf.mxu0
    %v750 = vadd.f32 %v688, %v749
    %751 = vdwg.mxu0
    %v752 = vld [vmem:[#allocation9] sm:$0xff]
    %v753 = vld [vmem:[#allocation9 + $0x8] sm:$0xff]
    %v754 = vld [vmem:[#allocation9 + $0x10] sm:$0xff]
    %v755 = vld [vmem:[#allocation9 + $0x18] sm:$0xff]
    %v756 = vld [vmem:[#allocation9 + $0x20] sm:$0xff]
    %v757 = vld [vmem:[#allocation9 + $0x28] sm:$0xff]
    %v758 = vld [vmem:[#allocation9 + $0x30] sm:$0xff]
    %v759 = vld [vmem:[#allocation9 + $0x38] sm:$0xff]
    %v760 = vld [vmem:[#allocation9 + $0x40] sm:$0xff]
    %v761 = vld [vmem:[#allocation9 + $0x48] sm:$0xff]
    %v762 = vld [vmem:[#allocation9 + $0x50] sm:$0xff]
    %v763 = vld [vmem:[#allocation9 + $0x58] sm:$0xff]
    %v764 = vld [vmem:[#allocation9 + $0x60] sm:$0xff]
    %v765 = vld [vmem:[#allocation9 + $0x68] sm:$0xff]
    %v766 = vld [vmem:[#allocation9 + $0x70] sm:$0xff]
    %v767 = vld [vmem:[#allocation9 + $0x78] sm:$0xff]
    %v768 = vld [vmem:[#allocation9 + $0x80] sm:$0xff]
    %v769 = vld [vmem:[#allocation9 + $0x88] sm:$0xff]
    %v770 = vld [vmem:[#allocation9 + $0x90] sm:$0xff]
    %v771 = vld [vmem:[#allocation9 + $0x98] sm:$0xff]
    %v772 = vld [vmem:[#allocation9 + $0xa0] sm:$0xff]
    %v773 = vld [vmem:[#allocation9 + $0xa8] sm:$0xff]
    %v774 = vld [vmem:[#allocation9 + $0xb0] sm:$0xff]
    %v775 = vld [vmem:[#allocation9 + $0xb8] sm:$0xff]
    %v776 = vld [vmem:[#allocation9 + $0xc0] sm:$0xff]
    %v777 = vld [vmem:[#allocation9 + $0xc8] sm:$0xff]
    %v778 = vld [vmem:[#allocation9 + $0xd0] sm:$0xff]
    %v779 = vld [vmem:[#allocation9 + $0xd8] sm:$0xff]
    %v780 = vld [vmem:[#allocation9 + $0xe0] sm:$0xff]
    %v781 = vld [vmem:[#allocation9 + $0xe8] sm:$0xff]
    %v782 = vld [vmem:[#allocation9 + $0xf0] sm:$0xff]
    %v783 = vld [vmem:[#allocation9 + $0xf8] sm:$0xff]
    %v784 = vld [vmem:[#allocation9 + $0x100] sm:$0xff]
    %v785 = vld [vmem:[#allocation9 + $0x108] sm:$0xff]
    %v786 = vld [vmem:[#allocation9 + $0x110] sm:$0xff]
    %v787 = vld [vmem:[#allocation9 + $0x118] sm:$0xff]
    %v788 = vld [vmem:[#allocation9 + $0x120] sm:$0xff]
    %v789 = vld [vmem:[#allocation9 + $0x128] sm:$0xff]
    %v790 = vld [vmem:[#allocation9 + $0x130] sm:$0xff]
    %v791 = vld [vmem:[#allocation9 + $0x138] sm:$0xff]
    %v792 = vld [vmem:[#allocation9 + $0x140] sm:$0xff]
    %v793 = vld [vmem:[#allocation9 + $0x148] sm:$0xff]
    %v794 = vld [vmem:[#allocation9 + $0x150] sm:$0xff]
    %v795 = vld [vmem:[#allocation9 + $0x158] sm:$0xff]
    %v796 = vld [vmem:[#allocation9 + $0x160] sm:$0xff]
    %v797 = vld [vmem:[#allocation9 + $0x168] sm:$0xff]
    %v798 = vld [vmem:[#allocation9 + $0x170] sm:$0xff]
    %v799 = vld [vmem:[#allocation9 + $0x178] sm:$0xff]
    %800 = vmatpush.msra.mxu0 %v797
    %801 = vmatpush.msra.mxu0 %v794
    %802 = vmatpush.msra.mxu0 %v791
    %803 = vmatpush.msra.mxu0 %v788
    %804 = vmatpush.msra.mxu0 %v785
    %805 = vmatpush.msra.mxu0 %v782
    %806 = vmatpush.msra.mxu0 %v779
    %807 = vmatpush.msra.mxu0 %v776
    %808 = vmatpush.msra.mxu0 %v773
    %809 = vmatpush.msra.mxu0 %v770
    %810 = vmatpush.msra.mxu0 %v767
    %811 = vmatpush.msra.mxu0 %v764
    %812 = vmatpush.msra.mxu0 %v761
    %813 = vmatpush.msra.mxu0 %v758
    %814 = vmatpush.msra.mxu0 %v755
    %815 = vmatpush.msra.mxu0 %v752
    %816 = vmatmul.f32.gmra.mxu0 %v631
    %v817 = vpop.f32.mrf.mxu0
    %v818 = vadd.f32 0.0, %v817
    %819 = vdwg.mxu0
    %820 = vmatpush.msra.mxu0 %v798
    %821 = vmatpush.msra.mxu0 %v795
    %822 = vmatpush.msra.mxu0 %v792
    %823 = vmatpush.msra.mxu0 %v789
    %824 = vmatpush.msra.mxu0 %v786
    %825 = vmatpush.msra.mxu0 %v783
    %826 = vmatpush.msra.mxu0 %v780
    %827 = vmatpush.msra.mxu0 %v777
    %828 = vmatpush.msra.mxu0 %v774
    %829 = vmatpush.msra.mxu0 %v771
    %830 = vmatpush.msra.mxu0 %v768
    %831 = vmatpush.msra.mxu0 %v765
    %832 = vmatpush.msra.mxu0 %v762
    %833 = vmatpush.msra.mxu0 %v759
    %834 = vmatpush.msra.mxu0 %v756
    %835 = vmatpush.msra.mxu0 %v753
    %836 = vmatmul.f32.gmra.mxu0 %v631
    %v837 = vpop.f32.mrf.mxu0
    %v838 = vadd.f32 0.0, %v837
    %839 = vdwg.mxu0
    %840 = vmatpush.msra.mxu0 %v799
    %841 = vmatpush.msra.mxu0 %v796
    %842 = vmatpush.msra.mxu0 %v793
    %843 = vmatpush.msra.mxu0 %v790
    %844 = vmatpush.msra.mxu0 %v787
    %845 = vmatpush.msra.mxu0 %v784
    %846 = vmatpush.msra.mxu0 %v781
    %847 = vmatpush.msra.mxu0 %v778
    %848 = vmatpush.msra.mxu0 %v775
    %849 = vmatpush.msra.mxu0 %v772
    %850 = vmatpush.msra.mxu0 %v769
    %851 = vmatpush.msra.mxu0 %v766
    %852 = vmatpush.msra.mxu0 %v763
    %853 = vmatpush.msra.mxu0 %v760
    %854 = vmatpush.msra.mxu0 %v757
    %855 = vmatpush.msra.mxu0 %v754
    %856 = vmatmul.f32.gmra.mxu0 %v631
    %v857 = vpop.f32.mrf.mxu0
    %v858 = vadd.f32 0.0, %v857
    %859 = vdwg.mxu0
    %v860 = vadd.f32 %v710, %v818
    %v861 = vxor.u32 %v860, 2147483648
    %v862 = vmul.f32 %v861, 1.442695
    %v863 = vpow.pop %v862
    %v864 = vadd.f32 %v863, 1.0
    %v865 = vrcp.pop %v864
    %v866 = vmul.f32 %v864, %v865
    %v867 = vsub.f32 1.0, %v866
    %v868 = vmul.f32 %v865, %v867
    %v869 = vadd.f32 %v865, %v868
    %vm870 = vweird.f32 %v864
    %vm871 = vweird.f32 %v865
    %vm872 = vmor %vm870, %vm871
    %v873 = vsel %vm872, %v865, %v869
    %v874 = vand.u32 2147483647, %v864
    %vm875 = vcmp.eq.f32.partialorder %v874, 8.507059e+37
    %v876 = vand.u32 %v864, 2147483648
    %v877 = vor.u32 1.1754944e-38, %v876
    %v878 = vsel %vm875, %v877, %v873
    %v879 = vmul.f32 1.0, %v878
    %v880 = vadd.f32 %v730, %v838
    %v881 = vxor.u32 %v880, 2147483648
    %v882 = vmul.f32 %v881, 1.442695
    %v883 = vpow.pop %v882
    %v884 = vadd.f32 %v883, 1.0
    %v885 = vrcp.pop %v884
    %v886 = vmul.f32 %v884, %v885
    %v887 = vsub.f32 1.0, %v886
    %v888 = vmul.f32 %v885, %v887
    %v889 = vadd.f32 %v885, %v888
    %vm890 = vweird.f32 %v884
    %vm891 = vweird.f32 %v885
    %vm892 = vmor %vm890, %vm891
    %v893 = vsel %vm892, %v885, %v889
    %v894 = vand.u32 2147483647, %v884
    %vm895 = vcmp.eq.f32.partialorder %v894, 8.507059e+37
    %v896 = vand.u32 %v884, 2147483648
    %v897 = vor.u32 1.1754944e-38, %v896
    %v898 = vsel %vm895, %v897, %v893
    %v899 = vmul.f32 1.0, %v898
    %v900 = vld [vmem:[%s6] sm:$0x1]
    %v901 = vadd.f32 %v858, %v900
    %v902 = vmul.f32 %v879, %v901
    %v903 = vadd.f32 %v750, %v902
    %v904 = vtanh.pop %v903
    %v905 = vsub.f32 %v631, %v904
    %v906 = vmul.f32 %v899, %v905
    %v907 = vadd.f32 %v904, %v906
    %908 = vst [vmem:[#allocation10 + $0x2] sm:$0x1] %v907
    %s909 = sld [smem:[#allocation3 + $0x3]]
    %s910 = scalar_lea.vmem [#allocation4], %s909
    %v911 = vld [vmem:[%s910] sm:$0x1]
    %v912 = vld [vmem:[#allocation7] sm:$0xff]
    %v913 = vld [vmem:[#allocation7 + $0x8] sm:$0xff]
    %v914 = vld [vmem:[#allocation7 + $0x10] sm:$0xff]
    %v915 = vld [vmem:[#allocation7 + $0x18] sm:$0xff]
    %v916 = vld [vmem:[#allocation7 + $0x20] sm:$0xff]
    %v917 = vld [vmem:[#allocation7 + $0x28] sm:$0xff]
    %v918 = vld [vmem:[#allocation7 + $0x30] sm:$0xff]
    %v919 = vld [vmem:[#allocation7 + $0x38] sm:$0xff]
    %v920 = vld [vmem:[#allocation7 + $0x40] sm:$0xff]
    %v921 = vld [vmem:[#allocation7 + $0x48] sm:$0xff]
    %v922 = vld [vmem:[#allocation7 + $0x50] sm:$0xff]
    %v923 = vld [vmem:[#allocation7 + $0x58] sm:$0xff]
    %v924 = vld [vmem:[#allocation7 + $0x60] sm:$0xff]
    %v925 = vld [vmem:[#allocation7 + $0x68] sm:$0xff]
    %v926 = vld [vmem:[#allocation7 + $0x70] sm:$0xff]
    %v927 = vld [vmem:[#allocation7 + $0x78] sm:$0xff]
    %v928 = vld [vmem:[#allocation7 + $0x80] sm:$0xff]
    %v929 = vld [vmem:[#allocation7 + $0x88] sm:$0xff]
    %v930 = vld [vmem:[#allocation7 + $0x90] sm:$0xff]
    %v931 = vld [vmem:[#allocation7 + $0x98] sm:$0xff]
    %v932 = vld [vmem:[#allocation7 + $0xa0] sm:$0xff]
    %v933 = vld [vmem:[#allocation7 + $0xa8] sm:$0xff]
    %v934 = vld [vmem:[#allocation7 + $0xb0] sm:$0xff]
    %v935 = vld [vmem:[#allocation7 + $0xb8] sm:$0xff]
    %v936 = vld [vmem:[#allocation7 + $0xc0] sm:$0xff]
    %v937 = vld [vmem:[#allocation7 + $0xc8] sm:$0xff]
    %v938 = vld [vmem:[#allocation7 + $0xd0] sm:$0xff]
    %v939 = vld [vmem:[#allocation7 + $0xd8] sm:$0xff]
    %v940 = vld [vmem:[#allocation7 + $0xe0] sm:$0xff]
    %v941 = vld [vmem:[#allocation7 + $0xe8] sm:$0xff]
    %v942 = vld [vmem:[#allocation7 + $0xf0] sm:$0xff]
    %v943 = vld [vmem:[#allocation7 + $0xf8] sm:$0xff]
    %v944 = vld [vmem:[#allocation7 + $0x100] sm:$0xff]
    %v945 = vld [vmem:[#allocation7 + $0x108] sm:$0xff]
    %v946 = vld [vmem:[#allocation7 + $0x110] sm:$0xff]
    %v947 = vld [vmem:[#allocation7 + $0x118] sm:$0xff]
    %v948 = vld [vmem:[#allocation7 + $0x120] sm:$0xff]
    %v949 = vld [vmem:[#allocation7 + $0x128] sm:$0xff]
    %v950 = vld [vmem:[#allocation7 + $0x130] sm:$0xff]
    %v951 = vld [vmem:[#allocation7 + $0x138] sm:$0xff]
    %v952 = vld [vmem:[#allocation7 + $0x140] sm:$0xff]
    %v953 = vld [vmem:[#allocation7 + $0x148] sm:$0xff]
    %v954 = vld [vmem:[#allocation7 + $0x150] sm:$0xff]
    %v955 = vld [vmem:[#allocation7 + $0x158] sm:$0xff]
    %v956 = vld [vmem:[#allocation7 + $0x160] sm:$0xff]
    %v957 = vld [vmem:[#allocation7 + $0x168] sm:$0xff]
    %v958 = vld [vmem:[#allocation7 + $0x170] sm:$0xff]
    %v959 = vld [vmem:[#allocation7 + $0x178] sm:$0xff]
    %v960 = vld [vmem:[%s5] sm:$0x7]
    %v962 = vperm.slane %v960, 0
    %v963 = vperm.slane %v960, 1
    %v964 = vperm.slane %v960, 2
    %968 = vmatpush.msra.mxu0 %v957
    %969 = vmatpush.msra.mxu0 %v954
    %970 = vmatpush.msra.mxu0 %v951
    %971 = vmatpush.msra.mxu0 %v948
    %972 = vmatpush.msra.mxu0 %v945
    %973 = vmatpush.msra.mxu0 %v942
    %974 = vmatpush.msra.mxu0 %v939
    %975 = vmatpush.msra.mxu0 %v936
    %976 = vmatpush.msra.mxu0 %v933
    %977 = vmatpush.msra.mxu0 %v930
    %978 = vmatpush.msra.mxu0 %v927
    %979 = vmatpush.msra.mxu0 %v924
    %980 = vmatpush.msra.mxu0 %v921
    %981 = vmatpush.msra.mxu0 %v918
    %982 = vmatpush.msra.mxu0 %v915
    %983 = vmatpush.msra.mxu0 %v912
    %984 = vmatmul.f32.gmra.mxu0 %v911
    %v985 = vpop.f32.mrf.mxu0
    %v986 = vadd.f32 %v962, %v985
    %987 = vdwg.mxu0
    %988 = vmatpush.msra.mxu0 %v958
    %989 = vmatpush.msra.mxu0 %v955
    %990 = vmatpush.msra.mxu0 %v952
    %991 = vmatpush.msra.mxu0 %v949
    %992 = vmatpush.msra.mxu0 %v946
    %993 = vmatpush.msra.mxu0 %v943
    %994 = vmatpush.msra.mxu0 %v940
    %995 = vmatpush.msra.mxu0 %v937
    %996 = vmatpush.msra.mxu0 %v934
    %997 = vmatpush.msra.mxu0 %v931
    %998 = vmatpush.msra.mxu0 %v928
    %999 = vmatpush.msra.mxu0 %v925
    %1000 = vmatpush.msra.mxu0 %v922
    %1001 = vmatpush.msra.mxu0 %v919
    %1002 = vmatpush.msra.mxu0 %v916
    %1003 = vmatpush.msra.mxu0 %v913
    %1004 = vmatmul.f32.gmra.mxu0 %v911
    %v1005 = vpop.f32.mrf.mxu0
    %v1006 = vadd.f32 %v963, %v1005
    %1007 = vdwg.mxu0
    %1008 = vmatpush.msra.mxu0 %v959
    %1009 = vmatpush.msra.mxu0 %v956
    %1010 = vmatpush.msra.mxu0 %v953
    %1011 = vmatpush.msra.mxu0 %v950
    %1012 = vmatpush.msra.mxu0 %v947
    %1013 = vmatpush.msra.mxu0 %v944
    %1014 = vmatpush.msra.mxu0 %v941
    %1015 = vmatpush.msra.mxu0 %v938
    %1016 = vmatpush.msra.mxu0 %v935
    %1017 = vmatpush.msra.mxu0 %v932
    %1018 = vmatpush.msra.mxu0 %v929
    %1019 = vmatpush.msra.mxu0 %v926
    %1020 = vmatpush.msra.mxu0 %v923
    %1021 = vmatpush.msra.mxu0 %v920
    %1022 = vmatpush.msra.mxu0 %v917
    %1023 = vmatpush.msra.mxu0 %v914
    %1024 = vmatmul.f32.gmra.mxu0 %v911
    %v1025 = vpop.f32.mrf.mxu0
    %v1026 = vadd.f32 %v964, %v1025
    %1027 = vdwg.mxu0
    %v1028 = vld [vmem:[#allocation9] sm:$0xff]
    %v1029 = vld [vmem:[#allocation9 + $0x8] sm:$0xff]
    %v1030 = vld [vmem:[#allocation9 + $0x10] sm:$0xff]
    %v1031 = vld [vmem:[#allocation9 + $0x18] sm:$0xff]
    %v1032 = vld [vmem:[#allocation9 + $0x20] sm:$0xff]
    %v1033 = vld [vmem:[#allocation9 + $0x28] sm:$0xff]
    %v1034 = vld [vmem:[#allocation9 + $0x30] sm:$0xff]
    %v1035 = vld [vmem:[#allocation9 + $0x38] sm:$0xff]
    %v1036 = vld [vmem:[#allocation9 + $0x40] sm:$0xff]
    %v1037 = vld [vmem:[#allocation9 + $0x48] sm:$0xff]
    %v1038 = vld [vmem:[#allocation9 + $0x50] sm:$0xff]
    %v1039 = vld [vmem:[#allocation9 + $0x58] sm:$0xff]
    %v1040 = vld [vmem:[#allocation9 + $0x60] sm:$0xff]
    %v1041 = vld [vmem:[#allocation9 + $0x68] sm:$0xff]
    %v1042 = vld [vmem:[#allocation9 + $0x70] sm:$0xff]
    %v1043 = vld [vmem:[#allocation9 + $0x78] sm:$0xff]
    %v1044 = vld [vmem:[#allocation9 + $0x80] sm:$0xff]
    %v1045 = vld [vmem:[#allocation9 + $0x88] sm:$0xff]
    %v1046 = vld [vmem:[#allocation9 + $0x90] sm:$0xff]
    %v1047 = vld [vmem:[#allocation9 + $0x98] sm:$0xff]
    %v1048 = vld [vmem:[#allocation9 + $0xa0] sm:$0xff]
    %v1049 = vld [vmem:[#allocation9 + $0xa8] sm:$0xff]
    %v1050 = vld [vmem:[#allocation9 + $0xb0] sm:$0xff]
    %v1051 = vld [vmem:[#allocation9 + $0xb8] sm:$0xff]
    %v1052 = vld [vmem:[#allocation9 + $0xc0] sm:$0xff]
    %v1053 = vld [vmem:[#allocation9 + $0xc8] sm:$0xff]
    %v1054 = vld [vmem:[#allocation9 + $0xd0] sm:$0xff]
    %v1055 = vld [vmem:[#allocation9 + $0xd8] sm:$0xff]
    %v1056 = vld [vmem:[#allocation9 + $0xe0] sm:$0xff]
    %v1057 = vld [vmem:[#allocation9 + $0xe8] sm:$0xff]
    %v1058 = vld [vmem:[#allocation9 + $0xf0] sm:$0xff]
    %v1059 = vld [vmem:[#allocation9 + $0xf8] sm:$0xff]
    %v1060 = vld [vmem:[#allocation9 + $0x100] sm:$0xff]
    %v1061 = vld [vmem:[#allocation9 + $0x108] sm:$0xff]
    %v1062 = vld [vmem:[#allocation9 + $0x110] sm:$0xff]
    %v1063 = vld [vmem:[#allocation9 + $0x118] sm:$0xff]
    %v1064 = vld [vmem:[#allocation9 + $0x120] sm:$0xff]
    %v1065 = vld [vmem:[#allocation9 + $0x128] sm:$0xff]
    %v1066 = vld [vmem:[#allocation9 + $0x130] sm:$0xff]
    %v1067 = vld [vmem:[#allocation9 + $0x138] sm:$0xff]
    %v1068 = vld [vmem:[#allocation9 + $0x140] sm:$0xff]
    %v1069 = vld [vmem:[#allocation9 + $0x148] sm:$0xff]
    %v1070 = vld [vmem:[#allocation9 + $0x150] sm:$0xff]
    %v1071 = vld [vmem:[#allocation9 + $0x158] sm:$0xff]
    %v1072 = vld [vmem:[#allocation9 + $0x160] sm:$0xff]
    %v1073 = vld [vmem:[#allocation9 + $0x168] sm:$0xff]
    %v1074 = vld [vmem:[#allocation9 + $0x170] sm:$0xff]
    %v1075 = vld [vmem:[#allocation9 + $0x178] sm:$0xff]
    %1076 = vmatpush.msra.mxu0 %v1073
    %1077 = vmatpush.msra.mxu0 %v1070
    %1078 = vmatpush.msra.mxu0 %v1067
    %1079 = vmatpush.msra.mxu0 %v1064
    %1080 = vmatpush.msra.mxu0 %v1061
    %1081 = vmatpush.msra.mxu0 %v1058
    %1082 = vmatpush.msra.mxu0 %v1055
    %1083 = vmatpush.msra.mxu0 %v1052
    %1084 = vmatpush.msra.mxu0 %v1049
    %1085 = vmatpush.msra.mxu0 %v1046
    %1086 = vmatpush.msra.mxu0 %v1043
    %1087 = vmatpush.msra.mxu0 %v1040
    %1088 = vmatpush.msra.mxu0 %v1037
    %1089 = vmatpush.msra.mxu0 %v1034
    %1090 = vmatpush.msra.mxu0 %v1031
    %1091 = vmatpush.msra.mxu0 %v1028
    %1092 = vmatmul.f32.gmra.mxu0 %v907
    %v1093 = vpop.f32.mrf.mxu0
    %v1094 = vadd.f32 0.0, %v1093
    %1095 = vdwg.mxu0
    %1096 = vmatpush.msra.mxu0 %v1074
    %1097 = vmatpush.msra.mxu0 %v1071
    %1098 = vmatpush.msra.mxu0 %v1068
    %1099 = vmatpush.msra.mxu0 %v1065
    %1100 = vmatpush.msra.mxu0 %v1062
    %1101 = vmatpush.msra.mxu0 %v1059
    %1102 = vmatpush.msra.mxu0 %v1056
    %1103 = vmatpush.msra.mxu0 %v1053
    %1104 = vmatpush.msra.mxu0 %v1050
    %1105 = vmatpush.msra.mxu0 %v1047
    %1106 = vmatpush.msra.mxu0 %v1044
    %1107 = vmatpush.msra.mxu0 %v1041
    %1108 = vmatpush.msra.mxu0 %v1038
    %1109 = vmatpush.msra.mxu0 %v1035
    %1110 = vmatpush.msra.mxu0 %v1032
    %1111 = vmatpush.msra.mxu0 %v1029
    %1112 = vmatmul.f32.gmra.mxu0 %v907
    %v1113 = vpop.f32.mrf.mxu0
    %v1114 = vadd.f32 0.0, %v1113
    %1115 = vdwg.mxu0
    %1116 = vmatpush.msra.mxu0 %v1075
    %1117 = vmatpush.msra.mxu0 %v1072
    %1118 = vmatpush.msra.mxu0 %v1069
    %1119 = vmatpush.msra.mxu0 %v1066
    %1120 = vmatpush.msra.mxu0 %v1063
    %1121 = vmatpush.msra.mxu0 %v1060
    %1122 = vmatpush.msra.mxu0 %v1057
    %1123 = vmatpush.msra.mxu0 %v1054
    %1124 = vmatpush.msra.mxu0 %v1051
    %1125 = vmatpush.msra.mxu0 %v1048
    %1126 = vmatpush.msra.mxu0 %v1045
    %1127 = vmatpush.msra.mxu0 %v1042
    %1128 = vmatpush.msra.mxu0 %v1039
    %1129 = vmatpush.msra.mxu0 %v1036
    %1130 = vmatpush.msra.mxu0 %v1033
    %1131 = vmatpush.msra.mxu0 %v1030
    %1132 = vmatmul.f32.gmra.mxu0 %v907
    %v1133 = vpop.f32.mrf.mxu0
    %v1134 = vadd.f32 0.0, %v1133
    %1135 = vdwg.mxu0
    %v1136 = vadd.f32 %v986, %v1094
    %v1137 = vxor.u32 %v1136, 2147483648
    %v1138 = vmul.f32 %v1137, 1.442695
    %v1139 = vpow.pop %v1138
    %v1140 = vadd.f32 %v1139, 1.0
    %v1141 = vrcp.pop %v1140
    %v1142 = vmul.f32 %v1140, %v1141
    %v1143 = vsub.f32 1.0, %v1142
    %v1144 = vmul.f32 %v1141, %v1143
    %v1145 = vadd.f32 %v1141, %v1144
    %vm1146 = vweird.f32 %v1140
    %vm1147 = vweird.f32 %v1141
    %vm1148 = vmor %vm1146, %vm1147
    %v1149 = vsel %vm1148, %v1141, %v1145
    %v1150 = vand.u32 2147483647, %v1140
    %vm1151 = vcmp.eq.f32.partialorder %v1150, 8.507059e+37
    %v1152 = vand.u32 %v1140, 2147483648
    %v1153 = vor.u32 1.1754944e-38, %v1152
    %v1154 = vsel %vm1151, %v1153, %v1149
    %v1155 = vmul.f32 1.0, %v1154
    %v1156 = vadd.f32 %v1006, %v1114
    %v1157 = vxor.u32 %v1156, 2147483648
    %v1158 = vmul.f32 %v1157, 1.442695
    %v1159 = vpow.pop %v1158
    %v1160 = vadd.f32 %v1159, 1.0
    %v1161 = vrcp.pop %v1160
    %v1162 = vmul.f32 %v1160, %v1161
    %v1163 = vsub.f32 1.0, %v1162
    %v1164 = vmul.f32 %v1161, %v1163
    %v1165 = vadd.f32 %v1161, %v1164
    %vm1166 = vweird.f32 %v1160
    %vm1167 = vweird.f32 %v1161
    %vm1168 = vmor %vm1166, %vm1167
    %v1169 = vsel %vm1168, %v1161, %v1165
    %v1170 = vand.u32 2147483647, %v1160
    %vm1171 = vcmp.eq.f32.partialorder %v1170, 8.507059e+37
    %v1172 = vand.u32 %v1160, 2147483648
    %v1173 = vor.u32 1.1754944e-38, %v1172
    %v1174 = vsel %vm1171, %v1173, %v1169
    %v1175 = vmul.f32 1.0, %v1174
    %v1176 = vld [vmem:[%s6] sm:$0x1]
    %v1177 = vadd.f32 %v1134, %v1176
    %v1178 = vmul.f32 %v1155, %v1177
    %v1179 = vadd.f32 %v1026, %v1178
    %v1180 = vtanh.pop %v1179
    %v1181 = vsub.f32 %v907, %v1180
    %v1182 = vmul.f32 %v1175, %v1181
    %v1183 = vadd.f32 %v1180, %v1182
    %1184 = vst [vmem:[#allocation10 + $0x3] sm:$0x1] %v1183
    %s1185 = sld [smem:[#allocation3 + $0x4]]
    %s1186 = scalar_lea.vmem [#allocation4], %s1185
    %v1187 = vld [vmem:[%s1186] sm:$0x1]
    %v1188 = vld [vmem:[#allocation7] sm:$0xff]
    %v1189 = vld [vmem:[#allocation7 + $0x8] sm:$0xff]
    %v1190 = vld [vmem:[#allocation7 + $0x10] sm:$0xff]
    %v1191 = vld [vmem:[#allocation7 + $0x18] sm:$0xff]
    %v1192 = vld [vmem:[#allocation7 + $0x20] sm:$0xff]
    %v1193 = vld [vmem:[#allocation7 + $0x28] sm:$0xff]
    %v1194 = vld [vmem:[#allocation7 + $0x30] sm:$0xff]
    %v1195 = vld [vmem:[#allocation7 + $0x38] sm:$0xff]
    %v1196 = vld [vmem:[#allocation7 + $0x40] sm:$0xff]
    %v1197 = vld [vmem:[#allocation7 + $0x48] sm:$0xff]
    %v1198 = vld [vmem:[#allocation7 + $0x50] sm:$0xff]
    %v1199 = vld [vmem:[#allocation7 + $0x58] sm:$0xff]
    %v1200 = vld [vmem:[#allocation7 + $0x60] sm:$0xff]
    %v1201 = vld [vmem:[#allocation7 + $0x68] sm:$0xff]
    %v1202 = vld [vmem:[#allocation7 + $0x70] sm:$0xff]
    %v1203 = vld [vmem:[#allocation7 + $0x78] sm:$0xff]
    %v1204 = vld [vmem:[#allocation7 + $0x80] sm:$0xff]
    %v1205 = vld [vmem:[#allocation7 + $0x88] sm:$0xff]
    %v1206 = vld [vmem:[#allocation7 + $0x90] sm:$0xff]
    %v1207 = vld [vmem:[#allocation7 + $0x98] sm:$0xff]
    %v1208 = vld [vmem:[#allocation7 + $0xa0] sm:$0xff]
    %v1209 = vld [vmem:[#allocation7 + $0xa8] sm:$0xff]
    %v1210 = vld [vmem:[#allocation7 + $0xb0] sm:$0xff]
    %v1211 = vld [vmem:[#allocation7 + $0xb8] sm:$0xff]
    %v1212 = vld [vmem:[#allocation7 + $0xc0] sm:$0xff]
    %v1213 = vld [vmem:[#allocation7 + $0xc8] sm:$0xff]
    %v1214 = vld [vmem:[#allocation7 + $0xd0] sm:$0xff]
    %v1215 = vld [vmem:[#allocation7 + $0xd8] sm:$0xff]
    %v1216 = vld [vmem:[#allocation7 + $0xe0] sm:$0xff]
    %v1217 = vld [vmem:[#allocation7 + $0xe8] sm:$0xff]
    %v1218 = vld [vmem:[#allocation7 + $0xf0] sm:$0xff]
    %v1219 = vld [vmem:[#allocation7 + $0xf8] sm:$0xff]
    %v1220 = vld [vmem:[#allocation7 + $0x100] sm:$0xff]
    %v1221 = vld [vmem:[#allocation7 + $0x108] sm:$0xff]
    %v1222 = vld [vmem:[#allocation7 + $0x110] sm:$0xff]
    %v1223 = vld [vmem:[#allocation7 + $0x118] sm:$0xff]
    %v1224 = vld [vmem:[#allocation7 + $0x120] sm:$0xff]
    %v1225 = vld [vmem:[#allocation7 + $0x128] sm:$0xff]
    %v1226 = vld [vmem:[#allocation7 + $0x130] sm:$0xff]
    %v1227 = vld [vmem:[#allocation7 + $0x138] sm:$0xff]
    %v1228 = vld [vmem:[#allocation7 + $0x140] sm:$0xff]
    %v1229 = vld [vmem:[#allocation7 + $0x148] sm:$0xff]
    %v1230 = vld [vmem:[#allocation7 + $0x150] sm:$0xff]
    %v1231 = vld [vmem:[#allocation7 + $0x158] sm:$0xff]
    %v1232 = vld [vmem:[#allocation7 + $0x160] sm:$0xff]
    %v1233 = vld [vmem:[#allocation7 + $0x168] sm:$0xff]
    %v1234 = vld [vmem:[#allocation7 + $0x170] sm:$0xff]
    %v1235 = vld [vmem:[#allocation7 + $0x178] sm:$0xff]
    %v1236 = vld [vmem:[%s5] sm:$0x7]
    %v1238 = vperm.slane %v1236, 0
    %v1239 = vperm.slane %v1236, 1
    %v1240 = vperm.slane %v1236, 2
    %1244 = vmatpush.msra.mxu0 %v1233
    %1245 = vmatpush.msra.mxu0 %v1230
    %1246 = vmatpush.msra.mxu0 %v1227
    %1247 = vmatpush.msra.mxu0 %v1224
    %1248 = vmatpush.msra.mxu0 %v1221
    %1249 = vmatpush.msra.mxu0 %v1218
    %1250 = vmatpush.msra.mxu0 %v1215
    %1251 = vmatpush.msra.mxu0 %v1212
    %1252 = vmatpush.msra.mxu0 %v1209
    %1253 = vmatpush.msra.mxu0 %v1206
    %1254 = vmatpush.msra.mxu0 %v1203
    %1255 = vmatpush.msra.mxu0 %v1200
    %1256 = vmatpush.msra.mxu0 %v1197
    %1257 = vmatpush.msra.mxu0 %v1194
    %1258 = vmatpush.msra.mxu0 %v1191
    %1259 = vmatpush.msra.mxu0 %v1188
    %1260 = vmatmul.f32.gmra.mxu0 %v1187
    %v1261 = vpop.f32.mrf.mxu0
    %v1262 = vadd.f32 %v1238, %v1261
    %1263 = vdwg.mxu0
    %1264 = vmatpush.msra.mxu0 %v1234
    %1265 = vmatpush.msra.mxu0 %v1231
    %1266 = vmatpush.msra.mxu0 %v1228
    %1267 = vmatpush.msra.mxu0 %v1225
    %1268 = vmatpush.msra.mxu0 %v1222
    %1269 = vmatpush.msra.mxu0 %v1219
    %1270 = vmatpush.msra.mxu0 %v1216
    %1271 = vmatpush.msra.mxu0 %v1213
    %1272 = vmatpush.msra.mxu0 %v1210
    %1273 = vmatpush.msra.mxu0 %v1207
    %1274 = vmatpush.msra.mxu0 %v1204
    %1275 = vmatpush.msra.mxu0 %v1201
    %1276 = vmatpush.msra.mxu0 %v1198
    %1277 = vmatpush.msra.mxu0 %v1195
    %1278 = vmatpush.msra.mxu0 %v1192
    %1279 = vmatpush.msra.mxu0 %v1189
    %1280 = vmatmul.f32.gmra.mxu0 %v1187
    %v1281 = vpop.f32.mrf.mxu0
    %v1282 = vadd.f32 %v1239, %v1281
    %1283 = vdwg.mxu0
    %1284 = vmatpush.msra.mxu0 %v1235
    %1285 = vmatpush.msra.mxu0 %v1232
    %1286 = vmatpush.msra.mxu0 %v1229
    %1287 = vmatpush.msra.mxu0 %v1226
    %1288 = vmatpush.msra.mxu0 %v1223
    %1289 = vmatpush.msra.mxu0 %v1220
    %1290 = vmatpush.msra.mxu0 %v1217
    %1291 = vmatpush.msra.mxu0 %v1214
    %1292 = vmatpush.msra.mxu0 %v1211
    %1293 = vmatpush.msra.mxu0 %v1208
    %1294 = vmatpush.msra.mxu0 %v1205
    %1295 = vmatpush.msra.mxu0 %v1202
    %1296 = vmatpush.msra.mxu0 %v1199
    %1297 = vmatpush.msra.mxu0 %v1196
    %1298 = vmatpush.msra.mxu0 %v1193
    %1299 = vmatpush.msra.mxu0 %v1190
    %1300 = vmatmul.f32.gmra.mxu0 %v1187
    %v1301 = vpop.f32.mrf.mxu0
    %v1302 = vadd.f32 %v1240, %v1301
    %1303 = vdwg.mxu0
    %v1304 = vld [vmem:[#allocation9] sm:$0xff]
    %v1305 = vld [vmem:[#allocation9 + $0x8] sm:$0xff]
    %v1306 = vld [vmem:[#allocation9 + $0x10] sm:$0xff]
    %v1307 = vld [vmem:[#allocation9 + $0x18] sm:$0xff]
    %v1308 = vld [vmem:[#allocation9 + $0x20] sm:$0xff]
    %v1309 = vld [vmem:[#allocation9 + $0x28] sm:$0xff]
    %v1310 = vld [vmem:[#allocation9 + $0x30] sm:$0xff]
    %v1311 = vld [vmem:[#allocation9 + $0x38] sm:$0xff]
    %v1312 = vld [vmem:[#allocation9 + $0x40] sm:$0xff]
    %v1313 = vld [vmem:[#allocation9 + $0x48] sm:$0xff]
    %v1314 = vld [vmem:[#allocation9 + $0x50] sm:$0xff]
    %v1315 = vld [vmem:[#allocation9 + $0x58] sm:$0xff]
    %v1316 = vld [vmem:[#allocation9 + $0x60] sm:$0xff]
    %v1317 = vld [vmem:[#allocation9 + $0x68] sm:$0xff]
    %v1318 = vld [vmem:[#allocation9 + $0x70] sm:$0xff]
    %v1319 = vld [vmem:[#allocation9 + $0x78] sm:$0xff]
    %v1320 = vld [vmem:[#allocation9 + $0x80] sm:$0xff]
    %v1321 = vld [vmem:[#allocation9 + $0x88] sm:$0xff]
    %v1322 = vld [vmem:[#allocation9 + $0x90] sm:$0xff]
    %v1323 = vld [vmem:[#allocation9 + $0x98] sm:$0xff]
    %v1324 = vld [vmem:[#allocation9 + $0xa0] sm:$0xff]
    %v1325 = vld [vmem:[#allocation9 + $0xa8] sm:$0xff]
    %v1326 = vld [vmem:[#allocation9 + $0xb0] sm:$0xff]
    %v1327 = vld [vmem:[#allocation9 + $0xb8] sm:$0xff]
    %v1328 = vld [vmem:[#allocation9 + $0xc0] sm:$0xff]
    %v1329 = vld [vmem:[#allocation9 + $0xc8] sm:$0xff]
    %v1330 = vld [vmem:[#allocation9 + $0xd0] sm:$0xff]
    %v1331 = vld [vmem:[#allocation9 + $0xd8] sm:$0xff]
    %v1332 = vld [vmem:[#allocation9 + $0xe0] sm:$0xff]
    %v1333 = vld [vmem:[#allocation9 + $0xe8] sm:$0xff]
    %v1334 = vld [vmem:[#allocation9 + $0xf0] sm:$0xff]
    %v1335 = vld [vmem:[#allocation9 + $0xf8] sm:$0xff]
    %v1336 = vld [vmem:[#allocation9 + $0x100] sm:$0xff]
    %v1337 = vld [vmem:[#allocation9 + $0x108] sm:$0xff]
    %v1338 = vld [vmem:[#allocation9 + $0x110] sm:$0xff]
    %v1339 = vld [vmem:[#allocation9 + $0x118] sm:$0xff]
    %v1340 = vld [vmem:[#allocation9 + $0x120] sm:$0xff]
    %v1341 = vld [vmem:[#allocation9 + $0x128] sm:$0xff]
    %v1342 = vld [vmem:[#allocation9 + $0x130] sm:$0xff]
    %v1343 = vld [vmem:[#allocation9 + $0x138] sm:$0xff]
    %v1344 = vld [vmem:[#allocation9 + $0x140] sm:$0xff]
    %v1345 = vld [vmem:[#allocation9 + $0x148] sm:$0xff]
    %v1346 = vld [vmem:[#allocation9 + $0x150] sm:$0xff]
    %v1347 = vld [vmem:[#allocation9 + $0x158] sm:$0xff]
    %v1348 = vld [vmem:[#allocation9 + $0x160] sm:$0xff]
    %v1349 = vld [vmem:[#allocation9 + $0x168] sm:$0xff]
    %v1350 = vld [vmem:[#allocation9 + $0x170] sm:$0xff]
    %v1351 = vld [vmem:[#allocation9 + $0x178] sm:$0xff]
    %1352 = vmatpush.msra.mxu0 %v1349
    %1353 = vmatpush.msra.mxu0 %v1346
    %1354 = vmatpush.msra.mxu0 %v1343
    %1355 = vmatpush.msra.mxu0 %v1340
    %1356 = vmatpush.msra.mxu0 %v1337
    %1357 = vmatpush.msra.mxu0 %v1334
    %1358 = vmatpush.msra.mxu0 %v1331
    %1359 = vmatpush.msra.mxu0 %v1328
    %1360 = vmatpush.msra.mxu0 %v1325
    %1361 = vmatpush.msra.mxu0 %v1322
    %1362 = vmatpush.msra.mxu0 %v1319
    %1363 = vmatpush.msra.mxu0 %v1316
    %1364 = vmatpush.msra.mxu0 %v1313
    %1365 = vmatpush.msra.mxu0 %v1310
    %1366 = vmatpush.msra.mxu0 %v1307
    %1367 = vmatpush.msra.mxu0 %v1304
    %1368 = vmatmul.f32.gmra.mxu0 %v1183
    %v1369 = vpop.f32.mrf.mxu0
    %v1370 = vadd.f32 0.0, %v1369
    %1371 = vdwg.mxu0
    %1372 = vmatpush.msra.mxu0 %v1350
    %1373 = vmatpush.msra.mxu0 %v1347
    %1374 = vmatpush.msra.mxu0 %v1344
    %1375 = vmatpush.msra.mxu0 %v1341
    %1376 = vmatpush.msra.mxu0 %v1338
    %1377 = vmatpush.msra.mxu0 %v1335
    %1378 = vmatpush.msra.mxu0 %v1332
    %1379 = vmatpush.msra.mxu0 %v1329
    %1380 = vmatpush.msra.mxu0 %v1326
    %1381 = vmatpush.msra.mxu0 %v1323
    %1382 = vmatpush.msra.mxu0 %v1320
    %1383 = vmatpush.msra.mxu0 %v1317
    %1384 = vmatpush.msra.mxu0 %v1314
    %1385 = vmatpush.msra.mxu0 %v1311
    %1386 = vmatpush.msra.mxu0 %v1308
    %1387 = vmatpush.msra.mxu0 %v1305
    %1388 = vmatmul.f32.gmra.mxu0 %v1183
    %v1389 = vpop.f32.mrf.mxu0
    %v1390 = vadd.f32 0.0, %v1389
    %1391 = vdwg.mxu0
    %1392 = vmatpush.msra.mxu0 %v1351
    %1393 = vmatpush.msra.mxu0 %v1348
    %1394 = vmatpush.msra.mxu0 %v1345
    %1395 = vmatpush.msra.mxu0 %v1342
    %1396 = vmatpush.msra.mxu0 %v1339
    %1397 = vmatpush.msra.mxu0 %v1336
    %1398 = vmatpush.msra.mxu0 %v1333
    %1399 = vmatpush.msra.mxu0 %v1330
    %1400 = vmatpush.msra.mxu0 %v1327
    %1401 = vmatpush.msra.mxu0 %v1324
    %1402 = vmatpush.msra.mxu0 %v1321
    %1403 = vmatpush.msra.mxu0 %v1318
    %1404 = vmatpush.msra.mxu0 %v1315
    %1405 = vmatpush.msra.mxu0 %v1312
    %1406 = vmatpush.msra.mxu0 %v1309
    %1407 = vmatpush.msra.mxu0 %v1306
    %1408 = vmatmul.f32.gmra.mxu0 %v1183
    %v1409 = vpop.f32.mrf.mxu0
    %v1410 = vadd.f32 0.0, %v1409
    %1411 = vdwg.mxu0
    %v1412 = vadd.f32 %v1262, %v1370
    %v1413 = vxor.u32 %v1412, 2147483648
    %v1414 = vmul.f32 %v1413, 1.442695
    %v1415 = vpow.pop %v1414
    %v1416 = vadd.f32 %v1415, 1.0
    %v1417 = vrcp.pop %v1416
    %v1418 = vmul.f32 %v1416, %v1417
    %v1419 = vsub.f32 1.0, %v1418
    %v1420 = vmul.f32 %v1417, %v1419
    %v1421 = vadd.f32 %v1417, %v1420
    %vm1422 = vweird.f32 %v1416
    %vm1423 = vweird.f32 %v1417
    %vm1424 = vmor %vm1422, %vm1423
    %v1425 = vsel %vm1424, %v1417, %v1421
    %v1426 = vand.u32 2147483647, %v1416
    %vm1427 = vcmp.eq.f32.partialorder %v1426, 8.507059e+37
    %v1428 = vand.u32 %v1416, 2147483648
    %v1429 = vor.u32 1.1754944e-38, %v1428
    %v1430 = vsel %vm1427, %v1429, %v1425
    %v1431 = vmul.f32 1.0, %v1430
    %v1432 = vadd.f32 %v1282, %v1390
    %v1433 = vxor.u32 %v1432, 2147483648
    %v1434 = vmul.f32 %v1433, 1.442695
    %v1435 = vpow.pop %v1434
    %v1436 = vadd.f32 %v1435, 1.0
    %v1437 = vrcp.pop %v1436
    %v1438 = vmul.f32 %v1436, %v1437
    %v1439 = vsub.f32 1.0, %v1438
    %v1440 = vmul.f32 %v1437, %v1439
    %v1441 = vadd.f32 %v1437, %v1440
    %vm1442 = vweird.f32 %v1436
    %vm1443 = vweird.f32 %v1437
    %vm1444 = vmor %vm1442, %vm1443
    %v1445 = vsel %vm1444, %v1437, %v1441
    %v1446 = vand.u32 2147483647, %v1436
    %vm1447 = vcmp.eq.f32.partialorder %v1446, 8.507059e+37
    %v1448 = vand.u32 %v1436, 2147483648
    %v1449 = vor.u32 1.1754944e-38, %v1448
    %v1450 = vsel %vm1447, %v1449, %v1445
    %v1451 = vmul.f32 1.0, %v1450
    %v1452 = vld [vmem:[%s6] sm:$0x1]
    %v1453 = vadd.f32 %v1410, %v1452
    %v1454 = vmul.f32 %v1431, %v1453
    %v1455 = vadd.f32 %v1302, %v1454
    %v1456 = vtanh.pop %v1455
    %v1457 = vsub.f32 %v1183, %v1456
    %v1458 = vmul.f32 %v1451, %v1457
    %v1459 = vadd.f32 %v1456, %v1458
    %1460 = vst [vmem:[#allocation10 + $0x4] sm:$0x1] %v1459
    %s1461 = sld [smem:[#allocation3 + $0x5]]
    %s1462 = scalar_lea.vmem [#allocation4], %s1461
    %v1463 = vld [vmem:[%s1462] sm:$0x1]
    %v1464 = vld [vmem:[#allocation7] sm:$0xff]
    %v1465 = vld [vmem:[#allocation7 + $0x8] sm:$0xff]
    %v1466 = vld [vmem:[#allocation7 + $0x10] sm:$0xff]
    %v1467 = vld [vmem:[#allocation7 + $0x18] sm:$0xff]
    %v1468 = vld [vmem:[#allocation7 + $0x20] sm:$0xff]
    %v1469 = vld [vmem:[#allocation7 + $0x28] sm:$0xff]
    %v1470 = vld [vmem:[#allocation7 + $0x30] sm:$0xff]
    %v1471 = vld [vmem:[#allocation7 + $0x38] sm:$0xff]
    %v1472 = vld [vmem:[#allocation7 + $0x40] sm:$0xff]
    %v1473 = vld [vmem:[#allocation7 + $0x48] sm:$0xff]
    %v1474 = vld [vmem:[#allocation7 + $0x50] sm:$0xff]
    %v1475 = vld [vmem:[#allocation7 + $0x58] sm:$0xff]
    %v1476 = vld [vmem:[#allocation7 + $0x60] sm:$0xff]
    %v1477 = vld [vmem:[#allocation7 + $0x68] sm:$0xff]
    %v1478 = vld [vmem:[#allocation7 + $0x70] sm:$0xff]
    %v1479 = vld [vmem:[#allocation7 + $0x78] sm:$0xff]
    %v1480 = vld [vmem:[#allocation7 + $0x80] sm:$0xff]
    %v1481 = vld [vmem:[#allocation7 + $0x88] sm:$0xff]
    %v1482 = vld [vmem:[#allocation7 + $0x90] sm:$0xff]
    %v1483 = vld [vmem:[#allocation7 + $0x98] sm:$0xff]
    %v1484 = vld [vmem:[#allocation7 + $0xa0] sm:$0xff]
    %v1485 = vld [vmem:[#allocation7 + $0xa8] sm:$0xff]
    %v1486 = vld [vmem:[#allocation7 + $0xb0] sm:$0xff]
    %v1487 = vld [vmem:[#allocation7 + $0xb8] sm:$0xff]
    %v1488 = vld [vmem:[#allocation7 + $0xc0] sm:$0xff]
    %v1489 = vld [vmem:[#allocation7 + $0xc8] sm:$0xff]
    %v1490 = vld [vmem:[#allocation7 + $0xd0] sm:$0xff]
    %v1491 = vld [vmem:[#allocation7 + $0xd8] sm:$0xff]
    %v1492 = vld [vmem:[#allocation7 + $0xe0] sm:$0xff]
    %v1493 = vld [vmem:[#allocation7 + $0xe8] sm:$0xff]
    %v1494 = vld [vmem:[#allocation7 + $0xf0] sm:$0xff]
    %v1495 = vld [vmem:[#allocation7 + $0xf8] sm:$0xff]
    %v1496 = vld [vmem:[#allocation7 + $0x100] sm:$0xff]
    %v1497 = vld [vmem:[#allocation7 + $0x108] sm:$0xff]
    %v1498 = vld [vmem:[#allocation7 + $0x110] sm:$0xff]
    %v1499 = vld [vmem:[#allocation7 + $0x118] sm:$0xff]
    %v1500 = vld [vmem:[#allocation7 + $0x120] sm:$0xff]
    %v1501 = vld [vmem:[#allocation7 + $0x128] sm:$0xff]
    %v1502 = vld [vmem:[#allocation7 + $0x130] sm:$0xff]
    %v1503 = vld [vmem:[#allocation7 + $0x138] sm:$0xff]
    %v1504 = vld [vmem:[#allocation7 + $0x140] sm:$0xff]
    %v1505 = vld [vmem:[#allocation7 + $0x148] sm:$0xff]
    %v1506 = vld [vmem:[#allocation7 + $0x150] sm:$0xff]
    %v1507 = vld [vmem:[#allocation7 + $0x158] sm:$0xff]
    %v1508 = vld [vmem:[#allocation7 + $0x160] sm:$0xff]
    %v1509 = vld [vmem:[#allocation7 + $0x168] sm:$0xff]
    %v1510 = vld [vmem:[#allocation7 + $0x170] sm:$0xff]
    %v1511 = vld [vmem:[#allocation7 + $0x178] sm:$0xff]
    %v1512 = vld [vmem:[%s5] sm:$0x7]
    %v1514 = vperm.slane %v1512, 0
    %v1515 = vperm.slane %v1512, 1
    %v1516 = vperm.slane %v1512, 2
    %1520 = vmatpush.msra.mxu0 %v1509
    %1521 = vmatpush.msra.mxu0 %v1506
    %1522 = vmatpush.msra.mxu0 %v1503
    %1523 = vmatpush.msra.mxu0 %v1500
    %1524 = vmatpush.msra.mxu0 %v1497
    %1525 = vmatpush.msra.mxu0 %v1494
    %1526 = vmatpush.msra.mxu0 %v1491
    %1527 = vmatpush.msra.mxu0 %v1488
    %1528 = vmatpush.msra.mxu0 %v1485
    %1529 = vmatpush.msra.mxu0 %v1482
    %1530 = vmatpush.msra.mxu0 %v1479
    %1531 = vmatpush.msra.mxu0 %v1476
    %1532 = vmatpush.msra.mxu0 %v1473
    %1533 = vmatpush.msra.mxu0 %v1470
    %1534 = vmatpush.msra.mxu0 %v1467
    %1535 = vmatpush.msra.mxu0 %v1464
    %1536 = vmatmul.f32.gmra.mxu0 %v1463
    %v1537 = vpop.f32.mrf.mxu0
    %v1538 = vadd.f32 %v1514, %v1537
    %1539 = vdwg.mxu0
    %1540 = vmatpush.msra.mxu0 %v1510
    %1541 = vmatpush.msra.mxu0 %v1507
    %1542 = vmatpush.msra.mxu0 %v1504
    %1543 = vmatpush.msra.mxu0 %v1501
    %1544 = vmatpush.msra.mxu0 %v1498
    %1545 = vmatpush.msra.mxu0 %v1495
    %1546 = vmatpush.msra.mxu0 %v1492
    %1547 = vmatpush.msra.mxu0 %v1489
    %1548 = vmatpush.msra.mxu0 %v1486
    %1549 = vmatpush.msra.mxu0 %v1483
    %1550 = vmatpush.msra.mxu0 %v1480
    %1551 = vmatpush.msra.mxu0 %v1477
    %1552 = vmatpush.msra.mxu0 %v1474
    %1553 = vmatpush.msra.mxu0 %v1471
    %1554 = vmatpush.msra.mxu0 %v1468
    %1555 = vmatpush.msra.mxu0 %v1465
    %1556 = vmatmul.f32.gmra.mxu0 %v1463
    %v1557 = vpop.f32.mrf.mxu0
    %v1558 = vadd.f32 %v1515, %v1557
    %1559 = vdwg.mxu0
    %1560 = vmatpush.msra.mxu0 %v1511
    %1561 = vmatpush.msra.mxu0 %v1508
    %1562 = vmatpush.msra.mxu0 %v1505
    %1563 = vmatpush.msra.mxu0 %v1502
    %1564 = vmatpush.msra.mxu0 %v1499
    %1565 = vmatpush.msra.mxu0 %v1496
    %1566 = vmatpush.msra.mxu0 %v1493
    %1567 = vmatpush.msra.mxu0 %v1490
    %1568 = vmatpush.msra.mxu0 %v1487
    %1569 = vmatpush.msra.mxu0 %v1484
    %1570 = vmatpush.msra.mxu0 %v1481
    %1571 = vmatpush.msra.mxu0 %v1478
    %1572 = vmatpush.msra.mxu0 %v1475
    %1573 = vmatpush.msra.mxu0 %v1472
    %1574 = vmatpush.msra.mxu0 %v1469
    %1575 = vmatpush.msra.mxu0 %v1466
    %1576 = vmatmul.f32.gmra.mxu0 %v1463
    %v1577 = vpop.f32.mrf.mxu0
    %v1578 = vadd.f32 %v1516, %v1577
    %1579 = vdwg.mxu0
    %v1580 = vld [vmem:[#allocation9] sm:$0xff]
    %v1581 = vld [vmem:[#allocation9 + $0x8] sm:$0xff]
    %v1582 = vld [vmem:[#allocation9 + $0x10] sm:$0xff]
    %v1583 = vld [vmem:[#allocation9 + $0x18] sm:$0xff]
    %v1584 = vld [vmem:[#allocation9 + $0x20] sm:$0xff]
    %v1585 = vld [vmem:[#allocation9 + $0x28] sm:$0xff]
    %v1586 = vld [vmem:[#allocation9 + $0x30] sm:$0xff]
    %v1587 = vld [vmem:[#allocation9 + $0x38] sm:$0xff]
    %v1588 = vld [vmem:[#allocation9 + $0x40] sm:$0xff]
    %v1589 = vld [vmem:[#allocation9 + $0x48] sm:$0xff]
    %v1590 = vld [vmem:[#allocation9 + $0x50] sm:$0xff]
    %v1591 = vld [vmem:[#allocation9 + $0x58] sm:$0xff]
    %v1592 = vld [vmem:[#allocation9 + $0x60] sm:$0xff]
    %v1593 = vld [vmem:[#allocation9 + $0x68] sm:$0xff]
    %v1594 = vld [vmem:[#allocation9 + $0x70] sm:$0xff]
    %v1595 = vld [vmem:[#allocation9 + $0x78] sm:$0xff]
    %v1596 = vld [vmem:[#allocation9 + $0x80] sm:$0xff]
    %v1597 = vld [vmem:[#allocation9 + $0x88] sm:$0xff]
    %v1598 = vld [vmem:[#allocation9 + $0x90] sm:$0xff]
    %v1599 = vld [vmem:[#allocation9 + $0x98] sm:$0xff]
    %v1600 = vld [vmem:[#allocation9 + $0xa0] sm:$0xff]
    %v1601 = vld [vmem:[#allocation9 + $0xa8] sm:$0xff]
    %v1602 = vld [vmem:[#allocation9 + $0xb0] sm:$0xff]
    %v1603 = vld [vmem:[#allocation9 + $0xb8] sm:$0xff]
    %v1604 = vld [vmem:[#allocation9 + $0xc0] sm:$0xff]
    %v1605 = vld [vmem:[#allocation9 + $0xc8] sm:$0xff]
    %v1606 = vld [vmem:[#allocation9 + $0xd0] sm:$0xff]
    %v1607 = vld [vmem:[#allocation9 + $0xd8] sm:$0xff]
    %v1608 = vld [vmem:[#allocation9 + $0xe0] sm:$0xff]
    %v1609 = vld [vmem:[#allocation9 + $0xe8] sm:$0xff]
    %v1610 = vld [vmem:[#allocation9 + $0xf0] sm:$0xff]
    %v1611 = vld [vmem:[#allocation9 + $0xf8] sm:$0xff]
    %v1612 = vld [vmem:[#allocation9 + $0x100] sm:$0xff]
    %v1613 = vld [vmem:[#allocation9 + $0x108] sm:$0xff]
    %v1614 = vld [vmem:[#allocation9 + $0x110] sm:$0xff]
    %v1615 = vld [vmem:[#allocation9 + $0x118] sm:$0xff]
    %v1616 = vld [vmem:[#allocation9 + $0x120] sm:$0xff]
    %v1617 = vld [vmem:[#allocation9 + $0x128] sm:$0xff]
    %v1618 = vld [vmem:[#allocation9 + $0x130] sm:$0xff]
    %v1619 = vld [vmem:[#allocation9 + $0x138] sm:$0xff]
    %v1620 = vld [vmem:[#allocation9 + $0x140] sm:$0xff]
    %v1621 = vld [vmem:[#allocation9 + $0x148] sm:$0xff]
    %v1622 = vld [vmem:[#allocation9 + $0x150] sm:$0xff]
    %v1623 = vld [vmem:[#allocation9 + $0x158] sm:$0xff]
    %v1624 = vld [vmem:[#allocation9 + $0x160] sm:$0xff]
    %v1625 = vld [vmem:[#allocation9 + $0x168] sm:$0xff]
    %v1626 = vld [vmem:[#allocation9 + $0x170] sm:$0xff]
    %v1627 = vld [vmem:[#allocation9 + $0x178] sm:$0xff]
    %1628 = vmatpush.msra.mxu0 %v1625
    %1629 = vmatpush.msra.mxu0 %v1622
    %1630 = vmatpush.msra.mxu0 %v1619
    %1631 = vmatpush.msra.mxu0 %v1616
    %1632 = vmatpush.msra.mxu0 %v1613
    %1633 = vmatpush.msra.mxu0 %v1610
    %1634 = vmatpush.msra.mxu0 %v1607
    %1635 = vmatpush.msra.mxu0 %v1604
    %1636 = vmatpush.msra.mxu0 %v1601
    %1637 = vmatpush.msra.mxu0 %v1598
    %1638 = vmatpush.msra.mxu0 %v1595
    %1639 = vmatpush.msra.mxu0 %v1592
    %1640 = vmatpush.msra.mxu0 %v1589
    %1641 = vmatpush.msra.mxu0 %v1586
    %1642 = vmatpush.msra.mxu0 %v1583
    %1643 = vmatpush.msra.mxu0 %v1580
    %1644 = vmatmul.f32.gmra.mxu0 %v1459
    %v1645 = vpop.f32.mrf.mxu0
    %v1646 = vadd.f32 0.0, %v1645
    %1647 = vdwg.mxu0
    %1648 = vmatpush.msra.mxu0 %v1626
    %1649 = vmatpush.msra.mxu0 %v1623
    %1650 = vmatpush.msra.mxu0 %v1620
    %1651 = vmatpush.msra.mxu0 %v1617
    %1652 = vmatpush.msra.mxu0 %v1614
    %1653 = vmatpush.msra.mxu0 %v1611
    %1654 = vmatpush.msra.mxu0 %v1608
    %1655 = vmatpush.msra.mxu0 %v1605
    %1656 = vmatpush.msra.mxu0 %v1602
    %1657 = vmatpush.msra.mxu0 %v1599
    %1658 = vmatpush.msra.mxu0 %v1596
    %1659 = vmatpush.msra.mxu0 %v1593
    %1660 = vmatpush.msra.mxu0 %v1590
    %1661 = vmatpush.msra.mxu0 %v1587
    %1662 = vmatpush.msra.mxu0 %v1584
    %1663 = vmatpush.msra.mxu0 %v1581
    %1664 = vmatmul.f32.gmra.mxu0 %v1459
    %v1665 = vpop.f32.mrf.mxu0
    %v1666 = vadd.f32 0.0, %v1665
    %1667 = vdwg.mxu0
    %1668 = vmatpush.msra.mxu0 %v1627
    %1669 = vmatpush.msra.mxu0 %v1624
    %1670 = vmatpush.msra.mxu0 %v1621
    %1671 = vmatpush.msra.mxu0 %v1618
    %1672 = vmatpush.msra.mxu0 %v1615
    %1673 = vmatpush.msra.mxu0 %v1612
    %1674 = vmatpush.msra.mxu0 %v1609
    %1675 = vmatpush.msra.mxu0 %v1606
    %1676 = vmatpush.msra.mxu0 %v1603
    %1677 = vmatpush.msra.mxu0 %v1600
    %1678 = vmatpush.msra.mxu0 %v1597
    %1679 = vmatpush.msra.mxu0 %v1594
    %1680 = vmatpush.msra.mxu0 %v1591
    %1681 = vmatpush.msra.mxu0 %v1588
    %1682 = vmatpush.msra.mxu0 %v1585
    %1683 = vmatpush.msra.mxu0 %v1582
    %1684 = vmatmul.f32.gmra.mxu0 %v1459
    %v1685 = vpop.f32.mrf.mxu0
    %v1686 = vadd.f32 0.0, %v1685
    %1687 = vdwg.mxu0
    %v1688 = vadd.f32 %v1538, %v1646
    %v1689 = vxor.u32 %v1688, 2147483648
    %v1690 = vmul.f32 %v1689, 1.442695
    %v1691 = vpow.pop %v1690
    %v1692 = vadd.f32 %v1691, 1.0
    %v1693 = vrcp.pop %v1692
    %v1694 = vmul.f32 %v1692, %v1693
    %v1695 = vsub.f32 1.0, %v1694
    %v1696 = vmul.f32 %v1693, %v1695
    %v1697 = vadd.f32 %v1693, %v1696
    %vm1698 = vweird.f32 %v1692
    %vm1699 = vweird.f32 %v1693
    %vm1700 = vmor %vm1698, %vm1699
    %v1701 = vsel %vm1700, %v1693, %v1697
    %v1702 = vand.u32 2147483647, %v1692
    %vm1703 = vcmp.eq.f32.partialorder %v1702, 8.507059e+37
    %v1704 = vand.u32 %v1692, 2147483648
    %v1705 = vor.u32 1.1754944e-38, %v1704
    %v1706 = vsel %vm1703, %v1705, %v1701
    %v1707 = vmul.f32 1.0, %v1706
    %v1708 = vadd.f32 %v1558, %v1666
    %v1709 = vxor.u32 %v1708, 2147483648
    %v1710 = vmul.f32 %v1709, 1.442695
    %v1711 = vpow.pop %v1710
    %v1712 = vadd.f32 %v1711, 1.0
    %v1713 = vrcp.pop %v1712
    %v1714 = vmul.f32 %v1712, %v1713
    %v1715 = vsub.f32 1.0, %v1714
    %v1716 = vmul.f32 %v1713, %v1715
    %v1717 = vadd.f32 %v1713, %v1716
    %vm1718 = vweird.f32 %v1712
    %vm1719 = vweird.f32 %v1713
    %vm1720 = vmor %vm1718, %vm1719
    %v1721 = vsel %vm1720, %v1713, %v1717
    %v1722 = vand.u32 2147483647, %v1712
    %vm1723 = vcmp.eq.f32.partialorder %v1722, 8.507059e+37
    %v1724 = vand.u32 %v1712, 2147483648
    %v1725 = vor.u32 1.1754944e-38, %v1724
    %v1726 = vsel %vm1723, %v1725, %v1721
    %v1727 = vmul.f32 1.0, %v1726
    %v1728 = vld [vmem:[%s6] sm:$0x1]
    %v1729 = vadd.f32 %v1686, %v1728
    %v1730 = vmul.f32 %v1707, %v1729
    %v1731 = vadd.f32 %v1578, %v1730
    %v1732 = vtanh.pop %v1731
    %v1733 = vsub.f32 %v1459, %v1732
    %v1734 = vmul.f32 %v1727, %v1733
    %v1735 = vadd.f32 %v1732, %v1734
    %1736 = vst [vmem:[#allocation10 + $0x5] sm:$0x1] %v1735
    %s1737 = sld [smem:[#allocation3 + $0x6]]
    %s1738 = scalar_lea.vmem [#allocation4], %s1737
    %v1739 = vld [vmem:[%s1738] sm:$0x1]
    %v1740 = vld [vmem:[#allocation7] sm:$0xff]
    %v1741 = vld [vmem:[#allocation7 + $0x8] sm:$0xff]
    %v1742 = vld [vmem:[#allocation7 + $0x10] sm:$0xff]
    %v1743 = vld [vmem:[#allocation7 + $0x18] sm:$0xff]
    %v1744 = vld [vmem:[#allocation7 + $0x20] sm:$0xff]
    %v1745 = vld [vmem:[#allocation7 + $0x28] sm:$0xff]
    %v1746 = vld [vmem:[#allocation7 + $0x30] sm:$0xff]
    %v1747 = vld [vmem:[#allocation7 + $0x38] sm:$0xff]
    %v1748 = vld [vmem:[#allocation7 + $0x40] sm:$0xff]
    %v1749 = vld [vmem:[#allocation7 + $0x48] sm:$0xff]
    %v1750 = vld [vmem:[#allocation7 + $0x50] sm:$0xff]
    %v1751 = vld [vmem:[#allocation7 + $0x58] sm:$0xff]
    %v1752 = vld [vmem:[#allocation7 + $0x60] sm:$0xff]
    %v1753 = vld [vmem:[#allocation7 + $0x68] sm:$0xff]
    %v1754 = vld [vmem:[#allocation7 + $0x70] sm:$0xff]
    %v1755 = vld [vmem:[#allocation7 + $0x78] sm:$0xff]
    %v1756 = vld [vmem:[#allocation7 + $0x80] sm:$0xff]
    %v1757 = vld [vmem:[#allocation7 + $0x88] sm:$0xff]
    %v1758 = vld [vmem:[#allocation7 + $0x90] sm:$0xff]
    %v1759 = vld [vmem:[#allocation7 + $0x98] sm:$0xff]
    %v1760 = vld [vmem:[#allocation7 + $0xa0] sm:$0xff]
    %v1761 = vld [vmem:[#allocation7 + $0xa8] sm:$0xff]
    %v1762 = vld [vmem:[#allocation7 + $0xb0] sm:$0xff]
    %v1763 = vld [vmem:[#allocation7 + $0xb8] sm:$0xff]
    %v1764 = vld [vmem:[#allocation7 + $0xc0] sm:$0xff]
    %v1765 = vld [vmem:[#allocation7 + $0xc8] sm:$0xff]
    %v1766 = vld [vmem:[#allocation7 + $0xd0] sm:$0xff]
    %v1767 = vld [vmem:[#allocation7 + $0xd8] sm:$0xff]
    %v1768 = vld [vmem:[#allocation7 + $0xe0] sm:$0xff]
    %v1769 = vld [vmem:[#allocation7 + $0xe8] sm:$0xff]
    %v1770 = vld [vmem:[#allocation7 + $0xf0] sm:$0xff]
    %v1771 = vld [vmem:[#allocation7 + $0xf8] sm:$0xff]
    %v1772 = vld [vmem:[#allocation7 + $0x100] sm:$0xff]
    %v1773 = vld [vmem:[#allocation7 + $0x108] sm:$0xff]
    %v1774 = vld [vmem:[#allocation7 + $0x110] sm:$0xff]
    %v1775 = vld [vmem:[#allocation7 + $0x118] sm:$0xff]
    %v1776 = vld [vmem:[#allocation7 + $0x120] sm:$0xff]
    %v1777 = vld [vmem:[#allocation7 + $0x128] sm:$0xff]
    %v1778 = vld [vmem:[#allocation7 + $0x130] sm:$0xff]
    %v1779 = vld [vmem:[#allocation7 + $0x138] sm:$0xff]
    %v1780 = vld [vmem:[#allocation7 + $0x140] sm:$0xff]
    %v1781 = vld [vmem:[#allocation7 + $0x148] sm:$0xff]
    %v1782 = vld [vmem:[#allocation7 + $0x150] sm:$0xff]
    %v1783 = vld [vmem:[#allocation7 + $0x158] sm:$0xff]
    %v1784 = vld [vmem:[#allocation7 + $0x160] sm:$0xff]
    %v1785 = vld [vmem:[#allocation7 + $0x168] sm:$0xff]
    %v1786 = vld [vmem:[#allocation7 + $0x170] sm:$0xff]
    %v1787 = vld [vmem:[#allocation7 + $0x178] sm:$0xff]
    %v1788 = vld [vmem:[%s5] sm:$0x7]
    %v1790 = vperm.slane %v1788, 0
    %v1791 = vperm.slane %v1788, 1
    %v1792 = vperm.slane %v1788, 2
    %1796 = vmatpush.msra.mxu0 %v1785
    %1797 = vmatpush.msra.mxu0 %v1782
    %1798 = vmatpush.msra.mxu0 %v1779
    %1799 = vmatpush.msra.mxu0 %v1776
    %1800 = vmatpush.msra.mxu0 %v1773
    %1801 = vmatpush.msra.mxu0 %v1770
    %1802 = vmatpush.msra.mxu0 %v1767
    %1803 = vmatpush.msra.mxu0 %v1764
    %1804 = vmatpush.msra.mxu0 %v1761
    %1805 = vmatpush.msra.mxu0 %v1758
    %1806 = vmatpush.msra.mxu0 %v1755
    %1807 = vmatpush.msra.mxu0 %v1752
    %1808 = vmatpush.msra.mxu0 %v1749
    %1809 = vmatpush.msra.mxu0 %v1746
    %1810 = vmatpush.msra.mxu0 %v1743
    %1811 = vmatpush.msra.mxu0 %v1740
    %1812 = vmatmul.f32.gmra.mxu0 %v1739
    %v1813 = vpop.f32.mrf.mxu0
    %v1814 = vadd.f32 %v1790, %v1813
    %1815 = vdwg.mxu0
    %1816 = vmatpush.msra.mxu0 %v1786
    %1817 = vmatpush.msra.mxu0 %v1783
    %1818 = vmatpush.msra.mxu0 %v1780
    %1819 = vmatpush.msra.mxu0 %v1777
    %1820 = vmatpush.msra.mxu0 %v1774
    %1821 = vmatpush.msra.mxu0 %v1771
    %1822 = vmatpush.msra.mxu0 %v1768
    %1823 = vmatpush.msra.mxu0 %v1765
    %1824 = vmatpush.msra.mxu0 %v1762
    %1825 = vmatpush.msra.mxu0 %v1759
    %1826 = vmatpush.msra.mxu0 %v1756
    %1827 = vmatpush.msra.mxu0 %v1753
    %1828 = vmatpush.msra.mxu0 %v1750
    %1829 = vmatpush.msra.mxu0 %v1747
    %1830 = vmatpush.msra.mxu0 %v1744
    %1831 = vmatpush.msra.mxu0 %v1741
    %1832 = vmatmul.f32.gmra.mxu0 %v1739
    %v1833 = vpop.f32.mrf.mxu0
    %v1834 = vadd.f32 %v1791, %v1833
    %1835 = vdwg.mxu0
    %1836 = vmatpush.msra.mxu0 %v1787
    %1837 = vmatpush.msra.mxu0 %v1784
    %1838 = vmatpush.msra.mxu0 %v1781
    %1839 = vmatpush.msra.mxu0 %v1778
    %1840 = vmatpush.msra.mxu0 %v1775
    %1841 = vmatpush.msra.mxu0 %v1772
    %1842 = vmatpush.msra.mxu0 %v1769
    %1843 = vmatpush.msra.mxu0 %v1766
    %1844 = vmatpush.msra.mxu0 %v1763
    %1845 = vmatpush.msra.mxu0 %v1760
    %1846 = vmatpush.msra.mxu0 %v1757
    %1847 = vmatpush.msra.mxu0 %v1754
    %1848 = vmatpush.msra.mxu0 %v1751
    %1849 = vmatpush.msra.mxu0 %v1748
    %1850 = vmatpush.msra.mxu0 %v1745
    %1851 = vmatpush.msra.mxu0 %v1742
    %1852 = vmatmul.f32.gmra.mxu0 %v1739
    %v1853 = vpop.f32.mrf.mxu0
    %v1854 = vadd.f32 %v1792, %v1853
    %1855 = vdwg.mxu0
    %v1856 = vld [vmem:[#allocation9] sm:$0xff]
    %v1857 = vld [vmem:[#allocation9 + $0x8] sm:$0xff]
    %v1858 = vld [vmem:[#allocation9 + $0x10] sm:$0xff]
    %v1859 = vld [vmem:[#allocation9 + $0x18] sm:$0xff]
    %v1860 = vld [vmem:[#allocation9 + $0x20] sm:$0xff]
    %v1861 = vld [vmem:[#allocation9 + $0x28] sm:$0xff]
    %v1862 = vld [vmem:[#allocation9 + $0x30] sm:$0xff]
    %v1863 = vld [vmem:[#allocation9 + $0x38] sm:$0xff]
    %v1864 = vld [vmem:[#allocation9 + $0x40] sm:$0xff]
    %v1865 = vld [vmem:[#allocation9 + $0x48] sm:$0xff]
    %v1866 = vld [vmem:[#allocation9 + $0x50] sm:$0xff]
    %v1867 = vld [vmem:[#allocation9 + $0x58] sm:$0xff]
    %v1868 = vld [vmem:[#allocation9 + $0x60] sm:$0xff]
    %v1869 = vld [vmem:[#allocation9 + $0x68] sm:$0xff]
    %v1870 = vld [vmem:[#allocation9 + $0x70] sm:$0xff]
    %v1871 = vld [vmem:[#allocation9 + $0x78] sm:$0xff]
    %v1872 = vld [vmem:[#allocation9 + $0x80] sm:$0xff]
    %v1873 = vld [vmem:[#allocation9 + $0x88] sm:$0xff]
    %v1874 = vld [vmem:[#allocation9 + $0x90] sm:$0xff]
    %v1875 = vld [vmem:[#allocation9 + $0x98] sm:$0xff]
    %v1876 = vld [vmem:[#allocation9 + $0xa0] sm:$0xff]
    %v1877 = vld [vmem:[#allocation9 + $0xa8] sm:$0xff]
    %v1878 = vld [vmem:[#allocation9 + $0xb0] sm:$0xff]
    %v1879 = vld [vmem:[#allocation9 + $0xb8] sm:$0xff]
    %v1880 = vld [vmem:[#allocation9 + $0xc0] sm:$0xff]
    %v1881 = vld [vmem:[#allocation9 + $0xc8] sm:$0xff]
    %v1882 = vld [vmem:[#allocation9 + $0xd0] sm:$0xff]
    %v1883 = vld [vmem:[#allocation9 + $0xd8] sm:$0xff]
    %v1884 = vld [vmem:[#allocation9 + $0xe0] sm:$0xff]
    %v1885 = vld [vmem:[#allocation9 + $0xe8] sm:$0xff]
    %v1886 = vld [vmem:[#allocation9 + $0xf0] sm:$0xff]
    %v1887 = vld [vmem:[#allocation9 + $0xf8] sm:$0xff]
    %v1888 = vld [vmem:[#allocation9 + $0x100] sm:$0xff]
    %v1889 = vld [vmem:[#allocation9 + $0x108] sm:$0xff]
    %v1890 = vld [vmem:[#allocation9 + $0x110] sm:$0xff]
    %v1891 = vld [vmem:[#allocation9 + $0x118] sm:$0xff]
    %v1892 = vld [vmem:[#allocation9 + $0x120] sm:$0xff]
    %v1893 = vld [vmem:[#allocation9 + $0x128] sm:$0xff]
    %v1894 = vld [vmem:[#allocation9 + $0x130] sm:$0xff]
    %v1895 = vld [vmem:[#allocation9 + $0x138] sm:$0xff]
    %v1896 = vld [vmem:[#allocation9 + $0x140] sm:$0xff]
    %v1897 = vld [vmem:[#allocation9 + $0x148] sm:$0xff]
    %v1898 = vld [vmem:[#allocation9 + $0x150] sm:$0xff]
    %v1899 = vld [vmem:[#allocation9 + $0x158] sm:$0xff]
    %v1900 = vld [vmem:[#allocation9 + $0x160] sm:$0xff]
    %v1901 = vld [vmem:[#allocation9 + $0x168] sm:$0xff]
    %v1902 = vld [vmem:[#allocation9 + $0x170] sm:$0xff]
    %v1903 = vld [vmem:[#allocation9 + $0x178] sm:$0xff]
    %1904 = vmatpush.msra.mxu0 %v1901
    %1905 = vmatpush.msra.mxu0 %v1898
    %1906 = vmatpush.msra.mxu0 %v1895
    %1907 = vmatpush.msra.mxu0 %v1892
    %1908 = vmatpush.msra.mxu0 %v1889
    %1909 = vmatpush.msra.mxu0 %v1886
    %1910 = vmatpush.msra.mxu0 %v1883
    %1911 = vmatpush.msra.mxu0 %v1880
    %1912 = vmatpush.msra.mxu0 %v1877
    %1913 = vmatpush.msra.mxu0 %v1874
    %1914 = vmatpush.msra.mxu0 %v1871
    %1915 = vmatpush.msra.mxu0 %v1868
    %1916 = vmatpush.msra.mxu0 %v1865
    %1917 = vmatpush.msra.mxu0 %v1862
    %1918 = vmatpush.msra.mxu0 %v1859
    %1919 = vmatpush.msra.mxu0 %v1856
    %1920 = vmatmul.f32.gmra.mxu0 %v1735
    %v1921 = vpop.f32.mrf.mxu0
    %v1922 = vadd.f32 0.0, %v1921
    %1923 = vdwg.mxu0
    %1924 = vmatpush.msra.mxu0 %v1902
    %1925 = vmatpush.msra.mxu0 %v1899
    %1926 = vmatpush.msra.mxu0 %v1896
    %1927 = vmatpush.msra.mxu0 %v1893
    %1928 = vmatpush.msra.mxu0 %v1890
    %1929 = vmatpush.msra.mxu0 %v1887
    %1930 = vmatpush.msra.mxu0 %v1884
    %1931 = vmatpush.msra.mxu0 %v1881
    %1932 = vmatpush.msra.mxu0 %v1878
    %1933 = vmatpush.msra.mxu0 %v1875
    %1934 = vmatpush.msra.mxu0 %v1872
    %1935 = vmatpush.msra.mxu0 %v1869
    %1936 = vmatpush.msra.mxu0 %v1866
    %1937 = vmatpush.msra.mxu0 %v1863
    %1938 = vmatpush.msra.mxu0 %v1860
    %1939 = vmatpush.msra.mxu0 %v1857
    %1940 = vmatmul.f32.gmra.mxu0 %v1735
    %v1941 = vpop.f32.mrf.mxu0
    %v1942 = vadd.f32 0.0, %v1941
    %1943 = vdwg.mxu0
    %1944 = vmatpush.msra.mxu0 %v1903
    %1945 = vmatpush.msra.mxu0 %v1900
    %1946 = vmatpush.msra.mxu0 %v1897
    %1947 = vmatpush.msra.mxu0 %v1894
    %1948 = vmatpush.msra.mxu0 %v1891
    %1949 = vmatpush.msra.mxu0 %v1888
    %1950 = vmatpush.msra.mxu0 %v1885
    %1951 = vmatpush.msra.mxu0 %v1882
    %1952 = vmatpush.msra.mxu0 %v1879
    %1953 = vmatpush.msra.mxu0 %v1876
    %1954 = vmatpush.msra.mxu0 %v1873
    %1955 = vmatpush.msra.mxu0 %v1870
    %1956 = vmatpush.msra.mxu0 %v1867
    %1957 = vmatpush.msra.mxu0 %v1864
    %1958 = vmatpush.msra.mxu0 %v1861
    %1959 = vmatpush.msra.mxu0 %v1858
    %1960 = vmatmul.f32.gmra.mxu0 %v1735
    %v1961 = vpop.f32.mrf.mxu0
    %v1962 = vadd.f32 0.0, %v1961
    %1963 = vdwg.mxu0
    %v1964 = vadd.f32 %v1814, %v1922
    %v1965 = vxor.u32 %v1964, 2147483648
    %v1966 = vmul.f32 %v1965, 1.442695
    %v1967 = vpow.pop %v1966
    %v1968 = vadd.f32 %v1967, 1.0
    %v1969 = vrcp.pop %v1968
    %v1970 = vmul.f32 %v1968, %v1969
    %v1971 = vsub.f32 1.0, %v1970
    %v1972 = vmul.f32 %v1969, %v1971
    %v1973 = vadd.f32 %v1969, %v1972
    %vm1974 = vweird.f32 %v1968
    %vm1975 = vweird.f32 %v1969
    %vm1976 = vmor %vm1974, %vm1975
    %v1977 = vsel %vm1976, %v1969, %v1973
    %v1978 = vand.u32 2147483647, %v1968
    %vm1979 = vcmp.eq.f32.partialorder %v1978, 8.507059e+37
    %v1980 = vand.u32 %v1968, 2147483648
    %v1981 = vor.u32 1.1754944e-38, %v1980
    %v1982 = vsel %vm1979, %v1981, %v1977
    %v1983 = vmul.f32 1.0, %v1982
    %v1984 = vadd.f32 %v1834, %v1942
    %v1985 = vxor.u32 %v1984, 2147483648
    %v1986 = vmul.f32 %v1985, 1.442695
    %v1987 = vpow.pop %v1986
    %v1988 = vadd.f32 %v1987, 1.0
    %v1989 = vrcp.pop %v1988
    %v1990 = vmul.f32 %v1988, %v1989
    %v1991 = vsub.f32 1.0, %v1990
    %v1992 = vmul.f32 %v1989, %v1991
    %v1993 = vadd.f32 %v1989, %v1992
    %vm1994 = vweird.f32 %v1988
    %vm1995 = vweird.f32 %v1989
    %vm1996 = vmor %vm1994, %vm1995
    %v1997 = vsel %vm1996, %v1989, %v1993
    %v1998 = vand.u32 2147483647, %v1988
    %vm1999 = vcmp.eq.f32.partialorder %v1998, 8.507059e+37
    %v2000 = vand.u32 %v1988, 2147483648
    %v2001 = vor.u32 1.1754944e-38, %v2000
    %v2002 = vsel %vm1999, %v2001, %v1997
    %v2003 = vmul.f32 1.0, %v2002
    %v2004 = vld [vmem:[%s6] sm:$0x1]
    %v2005 = vadd.f32 %v1962, %v2004
    %v2006 = vmul.f32 %v1983, %v2005
    %v2007 = vadd.f32 %v1854, %v2006
    %v2008 = vtanh.pop %v2007
    %v2009 = vsub.f32 %v1735, %v2008
    %v2010 = vmul.f32 %v2003, %v2009
    %v2011 = vadd.f32 %v2008, %v2010
    %2012 = vst [vmem:[#allocation10 + $0x6] sm:$0x1] %v2011
    %s2013 = sld [smem:[#allocation3 + $0x7]]
    %s2014 = scalar_lea.vmem [#allocation4], %s2013
    %v2015 = vld [vmem:[%s2014] sm:$0x1]
    %v2016 = vld [vmem:[#allocation7] sm:$0xff]
    %v2017 = vld [vmem:[#allocation7 + $0x8] sm:$0xff]
    %v2018 = vld [vmem:[#allocation7 + $0x10] sm:$0xff]
    %v2019 = vld [vmem:[#allocation7 + $0x18] sm:$0xff]
    %v2020 = vld [vmem:[#allocation7 + $0x20] sm:$0xff]
    %v2021 = vld [vmem:[#allocation7 + $0x28] sm:$0xff]
    %v2022 = vld [vmem:[#allocation7 + $0x30] sm:$0xff]
    %v2023 = vld [vmem:[#allocation7 + $0x38] sm:$0xff]
    %v2024 = vld [vmem:[#allocation7 + $0x40] sm:$0xff]
    %v2025 = vld [vmem:[#allocation7 + $0x48] sm:$0xff]
    %v2026 = vld [vmem:[#allocation7 + $0x50] sm:$0xff]
    %v2027 = vld [vmem:[#allocation7 + $0x58] sm:$0xff]
    %v2028 = vld [vmem:[#allocation7 + $0x60] sm:$0xff]
    %v2029 = vld [vmem:[#allocation7 + $0x68] sm:$0xff]
    %v2030 = vld [vmem:[#allocation7 + $0x70] sm:$0xff]
    %v2031 = vld [vmem:[#allocation7 + $0x78] sm:$0xff]
    %v2032 = vld [vmem:[#allocation7 + $0x80] sm:$0xff]
    %v2033 = vld [vmem:[#allocation7 + $0x88] sm:$0xff]
    %v2034 = vld [vmem:[#allocation7 + $0x90] sm:$0xff]
    %v2035 = vld [vmem:[#allocation7 + $0x98] sm:$0xff]
    %v2036 = vld [vmem:[#allocation7 + $0xa0] sm:$0xff]
    %v2037 = vld [vmem:[#allocation7 + $0xa8] sm:$0xff]
    %v2038 = vld [vmem:[#allocation7 + $0xb0] sm:$0xff]
    %v2039 = vld [vmem:[#allocation7 + $0xb8] sm:$0xff]
    %v2040 = vld [vmem:[#allocation7 + $0xc0] sm:$0xff]
    %v2041 = vld [vmem:[#allocation7 + $0xc8] sm:$0xff]
    %v2042 = vld [vmem:[#allocation7 + $0xd0] sm:$0xff]
    %v2043 = vld [vmem:[#allocation7 + $0xd8] sm:$0xff]
    %v2044 = vld [vmem:[#allocation7 + $0xe0] sm:$0xff]
    %v2045 = vld [vmem:[#allocation7 + $0xe8] sm:$0xff]
    %v2046 = vld [vmem:[#allocation7 + $0xf0] sm:$0xff]
    %v2047 = vld [vmem:[#allocation7 + $0xf8] sm:$0xff]
    %v2048 = vld [vmem:[#allocation7 + $0x100] sm:$0xff]
    %v2049 = vld [vmem:[#allocation7 + $0x108] sm:$0xff]
    %v2050 = vld [vmem:[#allocation7 + $0x110] sm:$0xff]
    %v2051 = vld [vmem:[#allocation7 + $0x118] sm:$0xff]
    %v2052 = vld [vmem:[#allocation7 + $0x120] sm:$0xff]
    %v2053 = vld [vmem:[#allocation7 + $0x128] sm:$0xff]
    %v2054 = vld [vmem:[#allocation7 + $0x130] sm:$0xff]
    %v2055 = vld [vmem:[#allocation7 + $0x138] sm:$0xff]
    %v2056 = vld [vmem:[#allocation7 + $0x140] sm:$0xff]
    %v2057 = vld [vmem:[#allocation7 + $0x148] sm:$0xff]
    %v2058 = vld [vmem:[#allocation7 + $0x150] sm:$0xff]
    %v2059 = vld [vmem:[#allocation7 + $0x158] sm:$0xff]
    %v2060 = vld [vmem:[#allocation7 + $0x160] sm:$0xff]
    %v2061 = vld [vmem:[#allocation7 + $0x168] sm:$0xff]
    %v2062 = vld [vmem:[#allocation7 + $0x170] sm:$0xff]
    %v2063 = vld [vmem:[#allocation7 + $0x178] sm:$0xff]
    %v2064 = vld [vmem:[%s5] sm:$0x7]
    %v2066 = vperm.slane %v2064, 0
    %v2067 = vperm.slane %v2064, 1
    %v2068 = vperm.slane %v2064, 2
    %2072 = vmatpush.msra.mxu0 %v2061
    %2073 = vmatpush.msra.mxu0 %v2058
    %2074 = vmatpush.msra.mxu0 %v2055
    %2075 = vmatpush.msra.mxu0 %v2052
    %2076 = vmatpush.msra.mxu0 %v2049
    %2077 = vmatpush.msra.mxu0 %v2046
    %2078 = vmatpush.msra.mxu0 %v2043
    %2079 = vmatpush.msra.mxu0 %v2040
    %2080 = vmatpush.msra.mxu0 %v2037
    %2081 = vmatpush.msra.mxu0 %v2034
    %2082 = vmatpush.msra.mxu0 %v2031
    %2083 = vmatpush.msra.mxu0 %v2028
    %2084 = vmatpush.msra.mxu0 %v2025
    %2085 = vmatpush.msra.mxu0 %v2022
    %2086 = vmatpush.msra.mxu0 %v2019
    %2087 = vmatpush.msra.mxu0 %v2016
    %2088 = vmatmul.f32.gmra.mxu0 %v2015
    %v2089 = vpop.f32.mrf.mxu0
    %v2090 = vadd.f32 %v2066, %v2089
    %2091 = vdwg.mxu0
    %2092 = vmatpush.msra.mxu0 %v2062
    %2093 = vmatpush.msra.mxu0 %v2059
    %2094 = vmatpush.msra.mxu0 %v2056
    %2095 = vmatpush.msra.mxu0 %v2053
    %2096 = vmatpush.msra.mxu0 %v2050
    %2097 = vmatpush.msra.mxu0 %v2047
    %2098 = vmatpush.msra.mxu0 %v2044
    %2099 = vmatpush.msra.mxu0 %v2041
    %2100 = vmatpush.msra.mxu0 %v2038
    %2101 = vmatpush.msra.mxu0 %v2035
    %2102 = vmatpush.msra.mxu0 %v2032
    %2103 = vmatpush.msra.mxu0 %v2029
    %2104 = vmatpush.msra.mxu0 %v2026
    %2105 = vmatpush.msra.mxu0 %v2023
    %2106 = vmatpush.msra.mxu0 %v2020
    %2107 = vmatpush.msra.mxu0 %v2017
    %2108 = vmatmul.f32.gmra.mxu0 %v2015
    %v2109 = vpop.f32.mrf.mxu0
    %v2110 = vadd.f32 %v2067, %v2109
    %2111 = vdwg.mxu0
    %2112 = vmatpush.msra.mxu0 %v2063
    %2113 = vmatpush.msra.mxu0 %v2060
    %2114 = vmatpush.msra.mxu0 %v2057
    %2115 = vmatpush.msra.mxu0 %v2054
    %2116 = vmatpush.msra.mxu0 %v2051
    %2117 = vmatpush.msra.mxu0 %v2048
    %2118 = vmatpush.msra.mxu0 %v2045
    %2119 = vmatpush.msra.mxu0 %v2042
    %2120 = vmatpush.msra.mxu0 %v2039
    %2121 = vmatpush.msra.mxu0 %v2036
    %2122 = vmatpush.msra.mxu0 %v2033
    %2123 = vmatpush.msra.mxu0 %v2030
    %2124 = vmatpush.msra.mxu0 %v2027
    %2125 = vmatpush.msra.mxu0 %v2024
    %2126 = vmatpush.msra.mxu0 %v2021
    %2127 = vmatpush.msra.mxu0 %v2018
    %2128 = vmatmul.f32.gmra.mxu0 %v2015
    %v2129 = vpop.f32.mrf.mxu0
    %v2130 = vadd.f32 %v2068, %v2129
    %2131 = vdwg.mxu0
    %v2132 = vld [vmem:[#allocation9] sm:$0xff]
    %v2133 = vld [vmem:[#allocation9 + $0x8] sm:$0xff]
    %v2134 = vld [vmem:[#allocation9 + $0x10] sm:$0xff]
    %v2135 = vld [vmem:[#allocation9 + $0x18] sm:$0xff]
    %v2136 = vld [vmem:[#allocation9 + $0x20] sm:$0xff]
    %v2137 = vld [vmem:[#allocation9 + $0x28] sm:$0xff]
    %v2138 = vld [vmem:[#allocation9 + $0x30] sm:$0xff]
    %v2139 = vld [vmem:[#allocation9 + $0x38] sm:$0xff]
    %v2140 = vld [vmem:[#allocation9 + $0x40] sm:$0xff]
    %v2141 = vld [vmem:[#allocation9 + $0x48] sm:$0xff]
    %v2142 = vld [vmem:[#allocation9 + $0x50] sm:$0xff]
    %v2143 = vld [vmem:[#allocation9 + $0x58] sm:$0xff]
    %v2144 = vld [vmem:[#allocation9 + $0x60] sm:$0xff]
    %v2145 = vld [vmem:[#allocation9 + $0x68] sm:$0xff]
    %v2146 = vld [vmem:[#allocation9 + $0x70] sm:$0xff]
    %v2147 = vld [vmem:[#allocation9 + $0x78] sm:$0xff]
    %v2148 = vld [vmem:[#allocation9 + $0x80] sm:$0xff]
    %v2149 = vld [vmem:[#allocation9 + $0x88] sm:$0xff]
    %v2150 = vld [vmem:[#allocation9 + $0x90] sm:$0xff]
    %v2151 = vld [vmem:[#allocation9 + $0x98] sm:$0xff]
    %v2152 = vld [vmem:[#allocation9 + $0xa0] sm:$0xff]
    %v2153 = vld [vmem:[#allocation9 + $0xa8] sm:$0xff]
    %v2154 = vld [vmem:[#allocation9 + $0xb0] sm:$0xff]
    %v2155 = vld [vmem:[#allocation9 + $0xb8] sm:$0xff]
    %v2156 = vld [vmem:[#allocation9 + $0xc0] sm:$0xff]
    %v2157 = vld [vmem:[#allocation9 + $0xc8] sm:$0xff]
    %v2158 = vld [vmem:[#allocation9 + $0xd0] sm:$0xff]
    %v2159 = vld [vmem:[#allocation9 + $0xd8] sm:$0xff]
    %v2160 = vld [vmem:[#allocation9 + $0xe0] sm:$0xff]
    %v2161 = vld [vmem:[#allocation9 + $0xe8] sm:$0xff]
    %v2162 = vld [vmem:[#allocation9 + $0xf0] sm:$0xff]
    %v2163 = vld [vmem:[#allocation9 + $0xf8] sm:$0xff]
    %v2164 = vld [vmem:[#allocation9 + $0x100] sm:$0xff]
    %v2165 = vld [vmem:[#allocation9 + $0x108] sm:$0xff]
    %v2166 = vld [vmem:[#allocation9 + $0x110] sm:$0xff]
    %v2167 = vld [vmem:[#allocation9 + $0x118] sm:$0xff]
    %v2168 = vld [vmem:[#allocation9 + $0x120] sm:$0xff]
    %v2169 = vld [vmem:[#allocation9 + $0x128] sm:$0xff]
    %v2170 = vld [vmem:[#allocation9 + $0x130] sm:$0xff]
    %v2171 = vld [vmem:[#allocation9 + $0x138] sm:$0xff]
    %v2172 = vld [vmem:[#allocation9 + $0x140] sm:$0xff]
    %v2173 = vld [vmem:[#allocation9 + $0x148] sm:$0xff]
    %v2174 = vld [vmem:[#allocation9 + $0x150] sm:$0xff]
    %v2175 = vld [vmem:[#allocation9 + $0x158] sm:$0xff]
    %v2176 = vld [vmem:[#allocation9 + $0x160] sm:$0xff]
    %v2177 = vld [vmem:[#allocation9 + $0x168] sm:$0xff]
    %v2178 = vld [vmem:[#allocation9 + $0x170] sm:$0xff]
    %v2179 = vld [vmem:[#allocation9 + $0x178] sm:$0xff]
    %2180 = vmatpush.msra.mxu0 %v2177
    %2181 = vmatpush.msra.mxu0 %v2174
    %2182 = vmatpush.msra.mxu0 %v2171
    %2183 = vmatpush.msra.mxu0 %v2168
    %2184 = vmatpush.msra.mxu0 %v2165
    %2185 = vmatpush.msra.mxu0 %v2162
    %2186 = vmatpush.msra.mxu0 %v2159
    %2187 = vmatpush.msra.mxu0 %v2156
    %2188 = vmatpush.msra.mxu0 %v2153
    %2189 = vmatpush.msra.mxu0 %v2150
    %2190 = vmatpush.msra.mxu0 %v2147
    %2191 = vmatpush.msra.mxu0 %v2144
    %2192 = vmatpush.msra.mxu0 %v2141
    %2193 = vmatpush.msra.mxu0 %v2138
    %2194 = vmatpush.msra.mxu0 %v2135
    %2195 = vmatpush.msra.mxu0 %v2132
    %2196 = vmatmul.f32.gmra.mxu0 %v2011
    %v2197 = vpop.f32.mrf.mxu0
    %v2198 = vadd.f32 0.0, %v2197
    %2199 = vdwg.mxu0
    %2200 = vmatpush.msra.mxu0 %v2178
    %2201 = vmatpush.msra.mxu0 %v2175
    %2202 = vmatpush.msra.mxu0 %v2172
    %2203 = vmatpush.msra.mxu0 %v2169
    %2204 = vmatpush.msra.mxu0 %v2166
    %2205 = vmatpush.msra.mxu0 %v2163
    %2206 = vmatpush.msra.mxu0 %v2160
    %2207 = vmatpush.msra.mxu0 %v2157
    %2208 = vmatpush.msra.mxu0 %v2154
    %2209 = vmatpush.msra.mxu0 %v2151
    %2210 = vmatpush.msra.mxu0 %v2148
    %2211 = vmatpush.msra.mxu0 %v2145
    %2212 = vmatpush.msra.mxu0 %v2142
    %2213 = vmatpush.msra.mxu0 %v2139
    %2214 = vmatpush.msra.mxu0 %v2136
    %2215 = vmatpush.msra.mxu0 %v2133
    %2216 = vmatmul.f32.gmra.mxu0 %v2011
    %v2217 = vpop.f32.mrf.mxu0
    %v2218 = vadd.f32 0.0, %v2217
    %2219 = vdwg.mxu0
    %2220 = vmatpush.msra.mxu0 %v2179
    %2221 = vmatpush.msra.mxu0 %v2176
    %2222 = vmatpush.msra.mxu0 %v2173
    %2223 = vmatpush.msra.mxu0 %v2170
    %2224 = vmatpush.msra.mxu0 %v2167
    %2225 = vmatpush.msra.mxu0 %v2164
    %2226 = vmatpush.msra.mxu0 %v2161
    %2227 = vmatpush.msra.mxu0 %v2158
    %2228 = vmatpush.msra.mxu0 %v2155
    %2229 = vmatpush.msra.mxu0 %v2152
    %2230 = vmatpush.msra.mxu0 %v2149
    %2231 = vmatpush.msra.mxu0 %v2146
    %2232 = vmatpush.msra.mxu0 %v2143
    %2233 = vmatpush.msra.mxu0 %v2140
    %2234 = vmatpush.msra.mxu0 %v2137
    %2235 = vmatpush.msra.mxu0 %v2134
    %2236 = vmatmul.f32.gmra.mxu0 %v2011
    %v2237 = vpop.f32.mrf.mxu0
    %v2238 = vadd.f32 0.0, %v2237
    %2239 = vdwg.mxu0
    %v2240 = vadd.f32 %v2090, %v2198
    %v2241 = vxor.u32 %v2240, 2147483648
    %v2242 = vmul.f32 %v2241, 1.442695
    %v2243 = vpow.pop %v2242
    %v2244 = vadd.f32 %v2243, 1.0
    %v2245 = vrcp.pop %v2244
    %v2246 = vmul.f32 %v2244, %v2245
    %v2247 = vsub.f32 1.0, %v2246
    %v2248 = vmul.f32 %v2245, %v2247
    %v2249 = vadd.f32 %v2245, %v2248
    %vm2250 = vweird.f32 %v2244
    %vm2251 = vweird.f32 %v2245
    %vm2252 = vmor %vm2250, %vm2251
    %v2253 = vsel %vm2252, %v2245, %v2249
    %v2254 = vand.u32 2147483647, %v2244
    %vm2255 = vcmp.eq.f32.partialorder %v2254, 8.507059e+37
    %v2256 = vand.u32 %v2244, 2147483648
    %v2257 = vor.u32 1.1754944e-38, %v2256
    %v2258 = vsel %vm2255, %v2257, %v2253
    %v2259 = vmul.f32 1.0, %v2258
    %v2260 = vadd.f32 %v2110, %v2218
    %v2261 = vxor.u32 %v2260, 2147483648
    %v2262 = vmul.f32 %v2261, 1.442695
    %v2263 = vpow.pop %v2262
    %v2264 = vadd.f32 %v2263, 1.0
    %v2265 = vrcp.pop %v2264
    %v2266 = vmul.f32 %v2264, %v2265
    %v2267 = vsub.f32 1.0, %v2266
    %v2268 = vmul.f32 %v2265, %v2267
    %v2269 = vadd.f32 %v2265, %v2268
    %vm2270 = vweird.f32 %v2264
    %vm2271 = vweird.f32 %v2265
    %vm2272 = vmor %vm2270, %vm2271
    %v2273 = vsel %vm2272, %v2265, %v2269
    %v2274 = vand.u32 2147483647, %v2264
    %vm2275 = vcmp.eq.f32.partialorder %v2274, 8.507059e+37
    %v2276 = vand.u32 %v2264, 2147483648
    %v2277 = vor.u32 1.1754944e-38, %v2276
    %v2278 = vsel %vm2275, %v2277, %v2273
    %v2279 = vmul.f32 1.0, %v2278
    %v2280 = vld [vmem:[%s6] sm:$0x1]
    %v2281 = vadd.f32 %v2238, %v2280
    %v2282 = vmul.f32 %v2259, %v2281
    %v2283 = vadd.f32 %v2130, %v2282
    %v2284 = vtanh.pop %v2283
    %v2285 = vsub.f32 %v2011, %v2284
    %v2286 = vmul.f32 %v2279, %v2285
    %v2287 = vadd.f32 %v2284, %v2286
    %2288 = vst [vmem:[#allocation10 + $0x7] sm:$0x1] %v2287
    // Predicated region
    $region38: #{tpu_custom_call.1} parent=1 // pred_check
      _
    $region39: #{tpu_custom_call.1} parent=1 // pred_check_branch
      %2290 = sbr.rel (0) target = $region41
    $region40: #{tpu_custom_call.1} parent=1 // pred_region
      %2292 = vsyncadd [#allocation6], 0
      %s2294 = sshll.u32 [#allocation10], 4
      %s2295 = int_to_ptr.vmem [resolvable:$true] %s2294
      %s2296 = sshll.u32 %s7, 4
      %s2297 = int_to_ptr.hbm [resolvable:$true] %s2296
      %2299 = dma.vmem_to_hbm [thread:$0]  %s2295, 128, %s2297, [#allocation6]
    $region41: #{tpu_custom_call.1} parent=1 // pred_fallthru
      _
    // Predicated region
    $region42: #{tpu_custom_call.1} parent=1 // pred_check
      _
    $region43: #{tpu_custom_call.1} parent=1 // pred_check_branch
      %2301 = sbr.rel (0) target = $region45
    $region44: #{tpu_custom_call.1} parent=1 // pred_region
      %2303 = dma.done [#allocation6], 128
    $region45: #{tpu_custom_call.1} parent=1 // pred_fallthru
      _
    %2304 = vsyncpa [#allocation5], 1
    %2305 = vsyncpa [#allocation8], 1
    %2306 = vsyncpa [#allocation6], 1

</llo_original>
